<compile_context>
chip_gen: v7x
topology: tpu7x:2x2x1
jax: 0.10.0
libtpu: 0.0.40
codegen_flags: <defaults>
</compile_context>

<pallas_src>
import functools

import jax
import jax.numpy as jnp
from jax import lax
from jax.experimental import pallas as pl
from jax.experimental.pallas import tpu as pltpu


def _cast_tuple(t, length=1):
    return t if isinstance(t, tuple) else (t,) * length


_PAD_MODE_TO_JNP = {
    "constant": "constant",
    "replicate": "edge",
    "reflect": "reflect",
    "circular": "wrap",
}


def _causal_pad(x, kernel_size, pad_mode, disable_spatial_padding):
    """F.pad(x, (wp, wp, hp, hp, kt-1, 0), mode=...) with the module's fallback."""
    kt, kh, kw = kernel_size
    time_pad = kt - 1
    if disable_spatial_padding:
        hp = wp = 0
    else:
        hp = kh // 2
        wp = kw // 2
    t = x.shape[2]
    mode = pad_mode if time_pad < t else "constant"
    jnp_mode = _PAD_MODE_TO_JNP[mode]
    pad_widths = ((0, 0), (0, 0), (time_pad, 0), (hp, hp), (wp, wp))
    if jnp_mode == "constant":
        return jnp.pad(x, pad_widths)
    return jnp.pad(x, pad_widths, mode=jnp_mode)


def _conv3d_kernel(x_ref, w_ref, b_ref, o_ref, acc_ref, *, kh, kw, h_out, w_out):
    # x_ref:   (C_in, H_p, W_p)           padded input slab at time index t*st + dt
    # w_ref:   (kt, kh, kw, C_out, C_in)  full weight, resident in VMEM
    # b_ref:   (C_out, 1)                 bias (f32), resident in VMEM
    # o_ref:   (C_out, H_out, W_out)      output slab for output time index t
    # acc_ref: (C_out, H_out*W_out)       f32 accumulator, persists across the kt axis
    dt = pl.program_id(2)
    kt = pl.num_programs(2)

    @pl.when(dt == 0)
    def _init():
        acc_ref[...] = jnp.zeros_like(acc_ref)

    w_t = w_ref[dt]                       # (kh, kw, C_out, C_in)
    acc = acc_ref[...]
    for dh in range(kh):                  # small static loops over spatial taps
        for dw in range(kw):
            win = x_ref[:, dh:dh + h_out, dw:dw + w_out]      # (C_in, H_out, W_out)
            rhs = win.reshape(win.shape[0], h_out * w_out)    # lane-dense (C_in, HW)
            lhs = w_t[dh, dw]                                 # (C_out, C_in)
            acc = acc + jnp.dot(lhs, rhs, preferred_element_type=jnp.float32)
    acc_ref[...] = acc

    @pl.when(dt == kt - 1)
    def _finalize():
        y = acc_ref[...] + b_ref[...]                         # (C_out, HW) + (C_out, 1)
        o_ref[...] = y.reshape(y.shape[0], h_out, w_out).astype(o_ref.dtype)


def causal_conv3d(x, weight, bias=None, *, stride=(1, 1, 1),
                  pad_mode="constant", disable_spatial_padding=False):
    """Pallas implementation of CausalConv3d.forward.

    x:      (B, C_in, T, H, W)
    weight: (C_out, C_in, kt, kh, kw)   (torch Conv3d layout)
    bias:   (C_out,) or None
    """
    b_, c_in, t, h, w = x.shape
    c_out, c_in_w, kt, kh, kw = weight.shape
    assert c_in_w == c_in, "weight C_in must match input channels"
    st, sh, sw = _cast_tuple(stride, 3)
    # TODO(synk): spatial strides > 1 (downsampling convs) are not implemented in the
    # Pallas kernel; time stride is supported through the grid index_map.
    assert sh == 1 and sw == 1, "only spatial stride 1 is supported by this kernel"

    x_pad = _causal_pad(x, (kt, kh, kw), pad_mode, disable_spatial_padding)
    _, _, t_p, h_p, w_p = x_pad.shape
    t_out = (t_p - kt) // st + 1
    h_out = h_p - kh + 1
    w_out = w_p - kw + 1
    hw_out = h_out * w_out

    # (C_out, C_in, kt, kh, kw) -> (kt, kh, kw, C_out, C_in): channels on the
    # sublane/lane axes, kernel taps as cheap leading indices. Tiny one-off copy.
    w_r = jnp.transpose(weight, (2, 3, 4, 0, 1))
    if bias is None:
        bias = jnp.zeros((c_out,), jnp.float32)
    b_r = bias.astype(jnp.float32).reshape(c_out, 1)

    # VMEM budget: double-buffered in/out blocks + resident weight/bias + f32 acc.
    isz = jnp.dtype(x.dtype).itemsize
    need = (2 * c_in * h_p * w_p * isz              # x block, double buffered
            + 2 * c_out * h_out * w_out * isz       # out block, double buffered
            + 2 * w_r.size * jnp.dtype(w_r.dtype).itemsize
            + 2 * b_r.size * 4
            + c_out * hw_out * 4)                   # f32 accumulator
    vmem_limit = int(min(max(2 * need, 16 * 1024 * 1024), 64 * 1024 * 1024))

    kernel = functools.partial(_conv3d_kernel, kh=kh, kw=kw,
                               h_out=h_out, w_out=w_out)

    out = pl.pallas_call(
        kernel,
        out_shape=jax.ShapeDtypeStruct((b_, c_out, t_out, h_out, w_out), x.dtype),
        grid_spec=pltpu.PrefetchScalarGridSpec(
            num_scalar_prefetch=0,
            grid=(b_, t_out, kt),
            in_specs=[
                # One padded time slice per step; time offset = t*stride_t + dt.
                pl.BlockSpec((None, c_in, None, h_p, w_p),
                             lambda bi, ti, dt: (bi, 0, ti * st + dt, 0, 0)),
                # Whole weight, constant index_map -> loaded once, stays resident.
                pl.BlockSpec((kt, kh, kw, c_out, c_in),
                             lambda bi, ti, dt: (0, 0, 0, 0, 0)),
                # Bias, constant index_map -> resident.
                pl.BlockSpec((c_out, 1), lambda bi, ti, dt: (0, 0)),
            ],
            # Output block is revisited for all dt of a given (b, t): accumulator.
            out_specs=pl.BlockSpec((None, c_out, None, h_out, w_out),
                                   lambda bi, ti, dt: (bi, 0, ti, 0, 0)),
            scratch_shapes=[pltpu.VMEM((c_out, hw_out), jnp.float32)],
        ),
        compiler_params=pltpu.CompilerParams(
            dimension_semantics=("parallel", "parallel", "arbitrary"),
            vmem_limit_bytes=vmem_limit),
    )(x_pad, w_r, b_r)
    return out


def _ref_causal_conv3d(x, weight, bias=None, *, stride=(1, 1, 1),
                       pad_mode="constant", disable_spatial_padding=False):
    """Pure-JAX reference matching the PyTorch CausalConv3d forward."""
    c_out = weight.shape[0]
    kt, kh, kw = weight.shape[2:]
    x_pad = _causal_pad(x, (kt, kh, kw), pad_mode, disable_spatial_padding)
    out = lax.conv_general_dilated(
        x_pad.astype(jnp.float32), weight.astype(jnp.float32),
        window_strides=_cast_tuple(stride, 3), padding="VALID",
        dimension_numbers=("NCDHW", "OIDHW", "NCDHW"))
    if bias is not None:
        out = out + bias.astype(jnp.float32).reshape(1, c_out, 1, 1, 1)
    return out.astype(x.dtype)


if __name__ == "__main__":
    key = jax.random.PRNGKey(0)
    k1, k2, k3, k4, k5, k6 = jax.random.split(key, 6)

    # Config 1: cubic kernel, constant padding, stride 1 (the common magvit2 block).
    B, C_in, T, H, W = 2, 4, 8, 16, 16
    C_out = 8
    x1 = jax.random.normal(k1, (B, C_in, T, H, W), dtype=jnp.float32)
    w1 = 0.1 * jax.random.normal(k2, (C_out, C_in, 3, 3, 3), dtype=jnp.float32)
    b1 = 0.1 * jax.random.normal(k3, (C_out,), dtype=jnp.float32)
    out1 = jax.block_until_ready(causal_conv3d(x1, w1, b1))
    ref1 = _ref_causal_conv3d(x1, w1, b1)
    assert out1.shape == (B, C_out, T, H, W) and out1.dtype == x1.dtype
    assert jnp.allclose(out1, ref1, atol=1e-3, rtol=1e-3)

    # Config 2: replicate padding, even time kernel, equal in/out channels.
    x2 = jax.random.normal(k4, (2, 4, 5, 8, 8), dtype=jnp.float32)
    w2 = 0.1 * jax.random.normal(k5, (4, 4, 2, 3, 3), dtype=jnp.float32)
    b2 = 0.1 * jax.random.normal(k6, (4,), dtype=jnp.float32)
    out2 = jax.block_until_ready(causal_conv3d(x2, w2, b2, pad_mode="replicate"))
    ref2 = _ref_causal_conv3d(x2, w2, b2, pad_mode="replicate")
    assert out2.shape == (2, 4, 5, 8, 8)
    assert jnp.allclose(out2, ref2, atol=1e-3, rtol=1e-3)

    # Config 3: spatial padding disabled, no bias.
    x3 = jax.random.normal(k1, (1, 4, 6, 12, 12), dtype=jnp.float32)
    w3 = 0.1 * jax.random.normal(k2, (4, 4, 3, 3, 3), dtype=jnp.float32)
    out3 = jax.block_until_ready(
        causal_conv3d(x3, w3, None, disable_spatial_padding=True))
    ref3 = _ref_causal_conv3d(x3, w3, None, disable_spatial_padding=True)
    assert out3.shape == (1, 4, 6, 10, 10)
    assert jnp.allclose(out3, ref3, atol=1e-3, rtol=1e-3)

    print("KERNEL_OK")
</pallas_src>

<mosaic_0001>
module attributes {stable_mosaic.version = 11 : i64} {
  func.func @_conv3d_kernel(%arg0: i32, %arg1: i32, %arg2: i32, %arg3: memref<1x4x1x18x18xf32, #tpu.memory_space<vmem>>, %arg4: memref<3x3x3x8x4xf32, #tpu.memory_space<vmem>>, %arg5: memref<8x1xf32, #tpu.memory_space<vmem>>, %arg6: memref<1x8x1x16x16xf32, #tpu.memory_space<vmem>>, %arg7: memref<8x256xf32, #tpu.memory_space<vmem>>) attributes {dimension_semantics = [#tpu.dimension_semantics<parallel>, #tpu.dimension_semantics<parallel>, #tpu.dimension_semantics<arbitrary>], iteration_bounds = array<i64: 2, 8, 3>, scalar_prefetch = 0 : i64, scratch_operands = 1 : i64, tpu.core_type = #tpu.core_type<tc>, window_params = [{transform_indices = @transform_0, window_bounds = array<i64: 1, 4, 1, 18, 18>}, {pipeline_mode = #tpu.pipeline_mode<synchronous>, transform_indices = @transform_1, window_bounds = array<i64: 3, 3, 3, 8, 4>}, {pipeline_mode = #tpu.pipeline_mode<synchronous>, transform_indices = @transform_2, window_bounds = array<i64: 8, 1>}, {transform_indices = @transform_3, window_bounds = array<i64: 1, 8, 1, 16, 16>}]} {
    %c0_i32 = arith.constant 0 : i32
    %0 = arith.cmpi eq, %arg2, %c0_i32 : i32
    %1 = arith.extui %0 : i1 to i32
    %c0_i32_0 = arith.constant 0 : i32
    %2 = arith.cmpi ne, %1, %c0_i32_0 : i32
    scf.if %2 {
      %cst_60 = arith.constant 0.000000e+00 : f32
      %74 = vector.broadcast %cst_60 : f32 to vector<8x256xf32>
      %c0_61 = arith.constant 0 : index
      %c0_62 = arith.constant 0 : index
      %75 = vector.load %arg7[%c0_61, %c0_62] : memref<8x256xf32, #tpu.memory_space<vmem>>, vector<8x256xf32>
      tpu.vector_store %arg7[%c0_61, %c0_62], %74 {strides = array<i32>} : memref<8x256xf32, #tpu.memory_space<vmem>>, vector<8x256xf32>,
    } else {
    }
    %3 = arith.index_cast %arg2 : i32 to index
    %c0 = arith.constant 0 : index
    %c0_1 = arith.constant 0 : index
    %c0_2 = arith.constant 0 : index
    %c0_3 = arith.constant 0 : index
    %4 = vector.load %arg4[%3, %c0, %c0_1, %c0_2, %c0_3] : memref<3x3x3x8x4xf32, #tpu.memory_space<vmem>>, vector<1x3x3x8x4xf32>
    %5 = vector.shape_cast %4 : vector<1x3x3x8x4xf32> to vector<3x3x8x4xf32>
    %c0_4 = arith.constant 0 : index
    %c0_5 = arith.constant 0 : index
    %6 = vector.load %arg7[%c0_4, %c0_5] : memref<8x256xf32, #tpu.memory_space<vmem>>, vector<8x256xf32>
    %c0_6 = arith.constant 0 : index
    %c0_7 = arith.constant 0 : index
    %c0_8 = arith.constant 0 : index
    %c0_9 = arith.constant 0 : index
    %c0_10 = arith.constant 0 : index
    %7 = vector.load %arg3[%c0_6, %c0_7, %c0_8, %c0_9, %c0_10] : memref<1x4x1x18x18xf32, #tpu.memory_space<vmem>>, vector<1x4x1x16x16xf32>
    %8 = vector.shape_cast %7 : vector<1x4x1x16x16xf32> to vector<4x16x16xf32>
    %9 = vector.shape_cast %8 : vector<4x16x16xf32> to vector<4x256xf32>
    %10 = vector.extract_strided_slice %5 {offsets = [0, 0, 0, 0], sizes = [1, 1, 8, 4], strides = [1, 1, 1, 1]} : vector<3x3x8x4xf32> to vector<1x1x8x4xf32>
    %11 = vector.shape_cast %10 : vector<1x1x8x4xf32> to vector<8x4xf32>
    %cst = arith.constant dense<0.000000e+00> : vector<8x256xf32>
    %12 = tpu.matmul %11, %9, %cst {dimension_numbers = #tpu.dot_dimension_numbers<[1], [0], [0], [1], [0, 0, 1, 1], [], []>} : vector<8x4xf32>, vector<4x256xf32>, vector<8x256xf32> -> vector<8x256xf32>
    %13 = arith.addf %6, %12 : vector<8x256xf32>
    %c0_11 = arith.constant 0 : index
    %c0_12 = arith.constant 0 : index
    %c0_13 = arith.constant 0 : index
    %c0_14 = arith.constant 0 : index
    %c1 = arith.constant 1 : index
    %14 = vector.load %arg3[%c0_11, %c0_12, %c0_13, %c0_14, %c1] : memref<1x4x1x18x18xf32, #tpu.memory_space<vmem>>, vector<1x4x1x16x16xf32>
    %15 = vector.shape_cast %14 : vector<1x4x1x16x16xf32> to vector<4x16x16xf32>
    %16 = vector.shape_cast %15 : vector<4x16x16xf32> to vector<4x256xf32>
    %17 = vector.extract_strided_slice %5 {offsets = [0, 1, 0, 0], sizes = [1, 1, 8, 4], strides = [1, 1, 1, 1]} : vector<3x3x8x4xf32> to vector<1x1x8x4xf32>
    %18 = vector.shape_cast %17 : vector<1x1x8x4xf32> to vector<8x4xf32>
    %cst_15 = arith.constant dense<0.000000e+00> : vector<8x256xf32>
    %19 = tpu.matmul %18, %16, %cst_15 {dimension_numbers = #tpu.dot_dimension_numbers<[1], [0], [0], [1], [0, 0, 1, 1], [], []>} : vector<8x4xf32>, vector<4x256xf32>, vector<8x256xf32> -> vector<8x256xf32>
    %20 = arith.addf %13, %19 : vector<8x256xf32>
    %c0_16 = arith.constant 0 : index
    %c0_17 = arith.constant 0 : index
    %c0_18 = arith.constant 0 : index
    %c0_19 = arith.constant 0 : index
    %c2 = arith.constant 2 : index
    %21 = vector.load %arg3[%c0_16, %c0_17, %c0_18, %c0_19, %c2] : memref<1x4x1x18x18xf32, #tpu.memory_space<vmem>>, vector<1x4x1x16x16xf32>
    %22 = vector.shape_cast %21 : vector<1x4x1x16x16xf32> to vector<4x16x16xf32>
    %23 = vector.shape_cast %22 : vector<4x16x16xf32> to vector<4x256xf32>
    %24 = vector.extract_strided_slice %5 {offsets = [0, 2, 0, 0], sizes = [1, 1, 8, 4], strides = [1, 1, 1, 1]} : vector<3x3x8x4xf32> to vector<1x1x8x4xf32>
    %25 = vector.shape_cast %24 : vector<1x1x8x4xf32> to vector<8x4xf32>
    %cst_20 = arith.constant dense<0.000000e+00> : vector<8x256xf32>
    %26 = tpu.matmul %25, %23, %cst_20 {dimension_numbers = #tpu.dot_dimension_numbers<[1], [0], [0], [1], [0, 0, 1, 1], [], []>} : vector<8x4xf32>, vector<4x256xf32>, vector<8x256xf32> -> vector<8x256xf32>
    %27 = arith.addf %20, %26 : vector<8x256xf32>
    %c0_21 = arith.constant 0 : index
    %c0_22 = arith.constant 0 : index
    %c0_23 = arith.constant 0 : index
    %c1_24 = arith.constant 1 : index
    %c0_25 = arith.constant 0 : index
    %28 = vector.load %arg3[%c0_21, %c0_22, %c0_23, %c1_24, %c0_25] : memref<1x4x1x18x18xf32, #tpu.memory_space<vmem>>, vector<1x4x1x16x16xf32>
    %29 = vector.shape_cast %28 : vector<1x4x1x16x16xf32> to vector<4x16x16xf32>
    %30 = vector.shape_cast %29 : vector<4x16x16xf32> to vector<4x256xf32>
    %31 = vector.extract_strided_slice %5 {offsets = [1, 0, 0, 0], sizes = [1, 1, 8, 4], strides = [1, 1, 1, 1]} : vector<3x3x8x4xf32> to vector<1x1x8x4xf32>
    %32 = vector.shape_cast %31 : vector<1x1x8x4xf32> to vector<8x4xf32>
    %cst_26 = arith.constant dense<0.000000e+00> : vector<8x256xf32>
    %33 = tpu.matmul %32, %30, %cst_26 {dimension_numbers = #tpu.dot_dimension_numbers<[1], [0], [0], [1], [0, 0, 1, 1], [], []>} : vector<8x4xf32>, vector<4x256xf32>, vector<8x256xf32> -> vector<8x256xf32>
    %34 = arith.addf %27, %33 : vector<8x256xf32>
    %c0_27 = arith.constant 0 : index
    %c0_28 = arith.constant 0 : index
    %c0_29 = arith.constant 0 : index
    %c1_30 = arith.constant 1 : index
    %c1_31 = arith.constant 1 : index
    %35 = vector.load %arg3[%c0_27, %c0_28, %c0_29, %c1_30, %c1_31] : memref<1x4x1x18x18xf32, #tpu.memory_space<vmem>>, vector<1x4x1x16x16xf32>
    %36 = vector.shape_cast %35 : vector<1x4x1x16x16xf32> to vector<4x16x16xf32>
    %37 = vector.shape_cast %36 : vector<4x16x16xf32> to vector<4x256xf32>
    %38 = vector.extract_strided_slice %5 {offsets = [1, 1, 0, 0], sizes = [1, 1, 8, 4], strides = [1, 1, 1, 1]} : vector<3x3x8x4xf32> to vector<1x1x8x4xf32>
    %39 = vector.shape_cast %38 : vector<1x1x8x4xf32> to vector<8x4xf32>
    %cst_32 = arith.constant dense<0.000000e+00> : vector<8x256xf32>
    %40 = tpu.matmul %39, %37, %cst_32 {dimension_numbers = #tpu.dot_dimension_numbers<[1], [0], [0], [1], [0, 0, 1, 1], [], []>} : vector<8x4xf32>, vector<4x256xf32>, vector<8x256xf32> -> vector<8x256xf32>
    %41 = arith.addf %34, %40 : vector<8x256xf32>
    %c0_33 = arith.constant 0 : index
    %c0_34 = arith.constant 0 : index
    %c0_35 = arith.constant 0 : index
    %c1_36 = arith.constant 1 : index
    %c2_37 = arith.constant 2 : index
    %42 = vector.load %arg3[%c0_33, %c0_34, %c0_35, %c1_36, %c2_37] : memref<1x4x1x18x18xf32, #tpu.memory_space<vmem>>, vector<1x4x1x16x16xf32>
    %43 = vector.shape_cast %42 : vector<1x4x1x16x16xf32> to vector<4x16x16xf32>
    %44 = vector.shape_cast %43 : vector<4x16x16xf32> to vector<4x256xf32>
    %45 = vector.extract_strided_slice %5 {offsets = [1, 2, 0, 0], sizes = [1, 1, 8, 4], strides = [1, 1, 1, 1]} : vector<3x3x8x4xf32> to vector<1x1x8x4xf32>
    %46 = vector.shape_cast %45 : vector<1x1x8x4xf32> to vector<8x4xf32>
    %cst_38 = arith.constant dense<0.000000e+00> : vector<8x256xf32>
    %47 = tpu.matmul %46, %44, %cst_38 {dimension_numbers = #tpu.dot_dimension_numbers<[1], [0], [0], [1], [0, 0, 1, 1], [], []>} : vector<8x4xf32>, vector<4x256xf32>, vector<8x256xf32> -> vector<8x256xf32>
    %48 = arith.addf %41, %47 : vector<8x256xf32>
    %c0_39 = arith.constant 0 : index
    %c0_40 = arith.constant 0 : index
    %c0_41 = arith.constant 0 : index
    %c2_42 = arith.constant 2 : index
    %c0_43 = arith.constant 0 : index
    %49 = vector.load %arg3[%c0_39, %c0_40, %c0_41, %c2_42, %c0_43] : memref<1x4x1x18x18xf32, #tpu.memory_space<vmem>>, vector<1x4x1x16x16xf32>
    %50 = vector.shape_cast %49 : vector<1x4x1x16x16xf32> to vector<4x16x16xf32>
    %51 = vector.shape_cast %50 : vector<4x16x16xf32> to vector<4x256xf32>
    %52 = vector.extract_strided_slice %5 {offsets = [2, 0, 0, 0], sizes = [1, 1, 8, 4], strides = [1, 1, 1, 1]} : vector<3x3x8x4xf32> to vector<1x1x8x4xf32>
    %53 = vector.shape_cast %52 : vector<1x1x8x4xf32> to vector<8x4xf32>
    %cst_44 = arith.constant dense<0.000000e+00> : vector<8x256xf32>
    %54 = tpu.matmul %53, %51, %cst_44 {dimension_numbers = #tpu.dot_dimension_numbers<[1], [0], [0], [1], [0, 0, 1, 1], [], []>} : vector<8x4xf32>, vector<4x256xf32>, vector<8x256xf32> -> vector<8x256xf32>
    %55 = arith.addf %48, %54 : vector<8x256xf32>
    %c0_45 = arith.constant 0 : index
    %c0_46 = arith.constant 0 : index
    %c0_47 = arith.constant 0 : index
    %c2_48 = arith.constant 2 : index
    %c1_49 = arith.constant 1 : index
    %56 = vector.load %arg3[%c0_45, %c0_46, %c0_47, %c2_48, %c1_49] : memref<1x4x1x18x18xf32, #tpu.memory_space<vmem>>, vector<1x4x1x16x16xf32>
    %57 = vector.shape_cast %56 : vector<1x4x1x16x16xf32> to vector<4x16x16xf32>
    %58 = vector.shape_cast %57 : vector<4x16x16xf32> to vector<4x256xf32>
    %59 = vector.extract_strided_slice %5 {offsets = [2, 1, 0, 0], sizes = [1, 1, 8, 4], strides = [1, 1, 1, 1]} : vector<3x3x8x4xf32> to vector<1x1x8x4xf32>
    %60 = vector.shape_cast %59 : vector<1x1x8x4xf32> to vector<8x4xf32>
    %cst_50 = arith.constant dense<0.000000e+00> : vector<8x256xf32>
    %61 = tpu.matmul %60, %58, %cst_50 {dimension_numbers = #tpu.dot_dimension_numbers<[1], [0], [0], [1], [0, 0, 1, 1], [], []>} : vector<8x4xf32>, vector<4x256xf32>, vector<8x256xf32> -> vector<8x256xf32>
    %62 = arith.addf %55, %61 : vector<8x256xf32>
    %c0_51 = arith.constant 0 : index
    %c0_52 = arith.constant 0 : index
    %c0_53 = arith.constant 0 : index
    %c2_54 = arith.constant 2 : index
    %c2_55 = arith.constant 2 : index
    %63 = vector.load %arg3[%c0_51, %c0_52, %c0_53, %c2_54, %c2_55] : memref<1x4x1x18x18xf32, #tpu.memory_space<vmem>>, vector<1x4x1x16x16xf32>
    %64 = vector.shape_cast %63 : vector<1x4x1x16x16xf32> to vector<4x16x16xf32>
    %65 = vector.shape_cast %64 : vector<4x16x16xf32> to vector<4x256xf32>
    %66 = vector.extract_strided_slice %5 {offsets = [2, 2, 0, 0], sizes = [1, 1, 8, 4], strides = [1, 1, 1, 1]} : vector<3x3x8x4xf32> to vector<1x1x8x4xf32>
    %67 = vector.shape_cast %66 : vector<1x1x8x4xf32> to vector<8x4xf32>
    %cst_56 = arith.constant dense<0.000000e+00> : vector<8x256xf32>
    %68 = tpu.matmul %67, %65, %cst_56 {dimension_numbers = #tpu.dot_dimension_numbers<[1], [0], [0], [1], [0, 0, 1, 1], [], []>} : vector<8x4xf32>, vector<4x256xf32>, vector<8x256xf32> -> vector<8x256xf32>
    %69 = arith.addf %62, %68 : vector<8x256xf32>
    %c0_57 = arith.constant 0 : index
    %c0_58 = arith.constant 0 : index
    %70 = vector.load %arg7[%c0_57, %c0_58] : memref<8x256xf32, #tpu.memory_space<vmem>>, vector<8x256xf32>
    tpu.vector_store %arg7[%c0_57, %c0_58], %69 {strides = array<i32>} : memref<8x256xf32, #tpu.memory_space<vmem>>, vector<8x256xf32>,
    %c2_i32 = arith.constant 2 : i32
    %71 = arith.cmpi eq, %arg2, %c2_i32 : i32
    %72 = arith.extui %71 : i1 to i32
    %c0_i32_59 = arith.constant 0 : i32
    %73 = arith.cmpi ne, %72, %c0_i32_59 : i32
    scf.if %73 {
      %c0_60 = arith.constant 0 : index
      %c0_61 = arith.constant 0 : index
      %74 = vector.load %arg7[%c0_60, %c0_61] : memref<8x256xf32, #tpu.memory_space<vmem>>, vector<8x256xf32>
      %c0_62 = arith.constant 0 : index
      %c0_63 = arith.constant 0 : index
      %75 = vector.load %arg5[%c0_62, %c0_63] : memref<8x1xf32, #tpu.memory_space<vmem>>, vector<8x1xf32>
      %76 = vector.broadcast %75 : vector<8x1xf32> to vector<8x256xf32>
      %77 = arith.addf %74, %76 : vector<8x256xf32>
      %78 = vector.shape_cast %77 : vector<8x256xf32> to vector<8x16x16xf32>
      %c0_64 = arith.constant 0 : index
      %c0_65 = arith.constant 0 : index
      %c0_66 = arith.constant 0 : index
      %c0_67 = arith.constant 0 : index
      %c0_68 = arith.constant 0 : index
      %79 = vector.load %arg6[%c0_64, %c0_65, %c0_66, %c0_67, %c0_68] : memref<1x8x1x16x16xf32, #tpu.memory_space<vmem>>, vector<1x8x1x16x16xf32>
      %80 = vector.shape_cast %79 : vector<1x8x1x16x16xf32> to vector<8x16x16xf32>
      %81 = vector.shape_cast %78 : vector<8x16x16xf32> to vector<1x8x1x16x16xf32>
      tpu.vector_store %arg6[%c0_64, %c0_65, %c0_66, %c0_67, %c0_68], %81 {strides = array<i32>} : memref<1x8x1x16x16xf32, #tpu.memory_space<vmem>>, vector<1x8x1x16x16xf32>,
    } else {
    }
    return
  }
  func.func @transform_0(%arg0: i32, %arg1: i32, %arg2: i32) -> (i32, i32, i32, i32, i32) {
    %c1_i32 = arith.constant 1 : i32
    %0 = arith.muli %arg1, %c1_i32 : i32
    %1 = arith.addi %0, %arg2 : i32
    %c0_i32 = arith.constant 0 : i32
    %c0_i32_0 = arith.constant 0 : i32
    %c0_i32_1 = arith.constant 0 : i32
    %c0_i32_2 = arith.constant 0 : i32
    return %arg0, %c0_i32, %1, %c0_i32_0, %c0_i32_1 : i32, i32, i32, i32, i32
  }
  func.func @transform_1(%arg0: i32, %arg1: i32, %arg2: i32) -> (i32, i32, i32, i32, i32) {
    %c0_i32 = arith.constant 0 : i32
    %c0_i32_0 = arith.constant 0 : i32
    %c0_i32_1 = arith.constant 0 : i32
    %c0_i32_2 = arith.constant 0 : i32
    %c0_i32_3 = arith.constant 0 : i32
    %c0_i32_4 = arith.constant 0 : i32
    return %c0_i32, %c0_i32_0, %c0_i32_1, %c0_i32_2, %c0_i32_3 : i32, i32, i32, i32, i32
  }
  func.func @transform_2(%arg0: i32, %arg1: i32, %arg2: i32) -> (i32, i32) {
    %c0_i32 = arith.constant 0 : i32
    %c0_i32_0 = arith.constant 0 : i32
    %c0_i32_1 = arith.constant 0 : i32
    return %c0_i32, %c0_i32_0 : i32, i32
  }
  func.func @transform_3(%arg0: i32, %arg1: i32, %arg2: i32) -> (i32, i32, i32, i32, i32) {
    %c0_i32 = arith.constant 0 : i32
    %c0_i32_0 = arith.constant 0 : i32
    %c0_i32_1 = arith.constant 0 : i32
    %c0_i32_2 = arith.constant 0 : i32
    return %arg0, %c0_i32, %arg1, %c0_i32_0, %c0_i32_1 : i32, i32, i32, i32, i32
  }
}

</mosaic_0001>

<llo_original>
// kernel: tpu_custom_call.1
$region0: #{tpu_custom_call.1}
  #allocation0 [shape = 'u32[]', space=smem, size = 0x4, offset = 0x4, fixed_abs, tag = 'smem constant byte address 0x4 - core index']
  #allocation1 [shape = 'u32[144,128]{1,0:T(1,128)}', space=vmem, size = 0x12000, scoped, tag = 'internal scratch']
  #allocation2 [shape = 'f32[8,256]{1,0:T(8,128)}', space=vmem, size = 0x2000, scoped, tag = 'scratch operand']
  #allocation6 [shape = 's32[]', space=sflag, size = 0x4, offset = 0, fixed_abs, tag = 'sflag constant byte address 0x0 - dummy sync flag']
  %s0 = inlined_call_operand.vmem [shape: f32[2,4,10,18,18], index: 0, kind: input, shape index: {}]
  %s1 = inlined_call_operand.vmem [shape: f32[3,3,3,8,4], index: 1, kind: input, shape index: {}]
  %s2 = inlined_call_operand.vmem [shape: f32[8,1], index: 2, kind: input, shape index: {}]
  %s3 = inlined_call_operand.hbm [shape: f32[2,8,8,16,16], index: 3, kind: output, shape index: {}]
  %s4 = sld [smem:[#allocation0]]
  $region91: #{tpu_custom_call.1} parent=0
    _
  %s6 = ssub.s32 1, %s4
  %s7 = scalar_select 0, %s6, %s4
  $region1: #{tpu_custom_call.1} parent=0
    #allocation3 [shape = 'u8[98304]{0}', space=vmem, size = 0x18000, scoped, tag = 'input window, operand 0']
    #allocation4 [shape = 'u8[131072]{0}', space=vmem, size = 0x20000, scoped, tag = 'output window, operand 0']
    #allocation5 [shape = 's32[2]{0}', space=sflag, size = 0x8, scoped, tag = 'scoped memory for tpu_custom_call.1']
    %8 = vsyncpa [#allocation5], 0
    %s9 = scalar_lea.sflag [#allocation5], 1
    %10 = vsyncpa %s9, 0
    loop: start=0, step=1, limit=50
    $region2: #{tpu_custom_call.1} parent=1 // loop_pre_header
      _
    $region3: #{tpu_custom_call.1} parent=1 // loop_header
      %s12 = sphi 0, %s16
      %p13 = scmp.ge.s32.totalorder %s12, 50
      %s19 = sphi 0, %s38
      %s20 = sphi 0, %s34
      %s21 = sphi 0, %s30
      %s22 = sphi 0, %s19
      %s23 = sphi 0, %s20
      %s24 = sphi 0, %s21
      %s25 = sphi 0, %s22
      %s26 = sphi 0, %s23
      %s27 = sphi 0, %s24
      %s45 = sphi 0, %s47
      %s48 = sphi 0, %s45
      %s49 = sphi 0, %s48
      %s65 = sphi 0, %s49
      %s69 = sphi 0, %s69
      %s71 = sphi 0, %s69
      %s72 = sphi 0, %s71
      %s86 = sphi 0, %s72
      %s90 = sphi 0, %s90
      %s92 = sphi 0, %s90
      %s93 = sphi 0, %s92
      %s107 = sphi 0, %s93
      %s115 = sphi 0, %s117
      %s118 = sphi 0, %s115
      %s119 = sphi 0, %s118
      %s135 = sphi 0, %s119
    $region4: #{tpu_custom_call.1} parent=1 // loop_header_branch
      %15 = sbr.rel (%p13) target = $region8
    $region5: #{tpu_custom_call.1} parent=1 // loop_body
      %s17 = ssub.s32 %s12, 1
      %s18 = ssub.s32 %s12, 2
      %s28 = sadd.s32 1, %s21
      %p29 = scmp.ge.s32.totalorder %s28, 3
      %s30 = scalar_select %p29, 0, %s28
      %s31 = sadd.s32 1, %s20
      %s32 = scalar_select %p29, %s31, %s20
      %p33 = scmp.ge.s32.totalorder %s32, 8
      %s34 = scalar_select %p33, 0, %s32
      %s35 = sadd.s32 1, %s19
      %s36 = scalar_select %p33, %s35, %s19
      %p37 = scmp.ge.s32.totalorder %s36, 2
      %s38 = scalar_select %p37, 0, %s36
      %s39 = sadd.s32 %s20, %s21
      %s40 = sadd.s32 %s34, %s30
      %s41 = ssub.s32 %s19, %s38
      %s42 = ssub.s32 %s39, %s40
      %s43 = sor.u32 %s41, %s42
      %p44 = scmp.eq.s32.totalorder %s43, 0
      %s46 = sadd.s32 %s45, 1
      %s47 = scalar_select %p44, %s45, %s46
      %p50 = pneg %p44
      %p51 = scmp.eq.s32.totalorder %s12, 47
      %p52 = por %p50, %p51
      %p53 = scmp.ne.s32.totalorder %s45, %s48
      %p54 = scmp.eq.s32.totalorder %s12, 0
      %p55 = por %p53, %p54
      %p56 = scmp.ne.s32.totalorder %s45, %s48
      %p57 = scmp.eq.s32.totalorder %s17, 47
      %p58 = por %p56, %p57
      %p59 = scmp.ne.s32.totalorder %s48, %s49
      %p60 = scmp.eq.s32.totalorder %s17, 0
      %p61 = por %p59, %p60
      %p62 = scmp.ne.s32.totalorder %s48, %s49
      %p63 = scmp.eq.s32.totalorder %s18, 47
      %p64 = por %p62, %p63
      %p66 = scmp.ne.s32.totalorder %s49, %s65
      %p67 = scmp.eq.s32.totalorder %s18, 0
      %p68 = por %p66, %p67
      %s70 = sadd.s32 %s69, 1
      %p73 = scmp.eq.s32.totalorder %s12, 47
      %p74 = scmp.ne.s32.totalorder %s69, %s71
      %p75 = scmp.eq.s32.totalorder %s12, 0
      %p76 = por %p74, %p75
      %p77 = scmp.ne.s32.totalorder %s69, %s71
      %p78 = scmp.eq.s32.totalorder %s17, 47
      %p79 = por %p77, %p78
      %p80 = scmp.ne.s32.totalorder %s71, %s72
      %p81 = scmp.eq.s32.totalorder %s17, 0
      %p82 = por %p80, %p81
      %p83 = scmp.ne.s32.totalorder %s71, %s72
      %p84 = scmp.eq.s32.totalorder %s18, 47
      %p85 = por %p83, %p84
      %p87 = scmp.ne.s32.totalorder %s72, %s86
      %p88 = scmp.eq.s32.totalorder %s18, 0
      %p89 = por %p87, %p88
      %s91 = sadd.s32 %s90, 1
      %p94 = scmp.eq.s32.totalorder %s12, 47
      %p95 = scmp.ne.s32.totalorder %s90, %s92
      %p96 = scmp.eq.s32.totalorder %s12, 0
      %p97 = por %p95, %p96
      %p98 = scmp.ne.s32.totalorder %s90, %s92
      %p99 = scmp.eq.s32.totalorder %s17, 47
      %p100 = por %p98, %p99
      %p101 = scmp.ne.s32.totalorder %s92, %s93
      %p102 = scmp.eq.s32.totalorder %s17, 0
      %p103 = por %p101, %p102
      %p104 = scmp.ne.s32.totalorder %s92, %s93
      %p105 = scmp.eq.s32.totalorder %s18, 47
      %p106 = por %p104, %p105
      %p108 = scmp.ne.s32.totalorder %s93, %s107
      %p109 = scmp.eq.s32.totalorder %s18, 0
      %p110 = por %p108, %p109
      %s111 = ssub.s32 %s19, %s38
      %s112 = ssub.s32 %s20, %s34
      %s113 = sor.u32 %s111, %s112
      %p114 = scmp.eq.s32.totalorder %s113, 0
      %s116 = sadd.s32 %s115, 1
      %s117 = scalar_select %p114, %s115, %s116
      %p120 = pneg %p114
      %p121 = scmp.eq.s32.totalorder %s12, 47
      %p122 = por %p120, %p121
      %p123 = scmp.ne.s32.totalorder %s115, %s118
      %p124 = scmp.eq.s32.totalorder %s12, 0
      %p125 = por %p123, %p124
      %p126 = scmp.ne.s32.totalorder %s115, %s118
      %p127 = scmp.eq.s32.totalorder %s17, 47
      %p128 = por %p126, %p127
      %p129 = scmp.ne.s32.totalorder %s118, %s119
      %p130 = scmp.eq.s32.totalorder %s17, 0
      %p131 = por %p129, %p130
      %p132 = scmp.ne.s32.totalorder %s118, %s119
      %p133 = scmp.eq.s32.totalorder %s18, 47
      %p134 = por %p132, %p133
      %p136 = scmp.ne.s32.totalorder %s119, %s135
      %p137 = scmp.eq.s32.totalorder %s18, 0
      %p138 = por %p136, %p137
      %p139 = scmp.le.s32.totalorder 1, %s12
      %p140 = scmp.lt.s32.totalorder %s12, 49
      %p141 = pnand %p139, %p140
      %p142 = pneg %p141
      // Predicated region
      $region9: #{tpu_custom_call.1} parent=5 // pred_check
        _
      $region10: #{tpu_custom_call.1} parent=5 // pred_check_branch
        %144 = sbr.rel (%p141) target = $region12
      $region11: #{tpu_custom_call.1} parent=5 // pred_region
        %s145 = ssub.s32 %s12, 1
        // Predicated region
        $region13: #{tpu_custom_call.1} parent=11 // pred_check
          %p146 = pneg %p82
        $region14: #{tpu_custom_call.1} parent=11 // pred_check_branch
          %148 = sbr.rel (%p146) target = $region16
        $region15: #{tpu_custom_call.1} parent=11 // pred_region
          _
        $region16: #{tpu_custom_call.1} parent=11 // pred_fallthru
          _
        // Predicated region
        $region17: #{tpu_custom_call.1} parent=11 // pred_check
          %p149 = pneg %p103
        $region18: #{tpu_custom_call.1} parent=11 // pred_check_branch
          %151 = sbr.rel (%p149) target = $region20
        $region19: #{tpu_custom_call.1} parent=11 // pred_region
          _
        $region20: #{tpu_custom_call.1} parent=11 // pred_fallthru
          _
      $region12: #{tpu_custom_call.1} parent=5 // pred_fallthru
        _
      %p152 = scmp.lt.s32.totalorder %s12, 48
      // Predicated region
      $region21: #{tpu_custom_call.1} parent=5 // pred_check
        %p153 = pneg %p152
      $region22: #{tpu_custom_call.1} parent=5 // pred_check_branch
        %155 = sbr.rel (%p153) target = $region24
      $region23: #{tpu_custom_call.1} parent=5 // pred_region
        // Predicated region
        $region25: #{tpu_custom_call.1} parent=23 // pred_check
          %p156 = pneg %p55
        $region26: #{tpu_custom_call.1} parent=23 // pred_check_branch
          %158 = sbr.rel (%p156) target = $region28
        $region27: #{tpu_custom_call.1} parent=23 // pred_region
          %s159 = sand.u32 %s45, 1
          %s160 = sand.u32 %s45, 1
          %s161 = smul.addr %s160, 96
          %s162 = scalar_lea.vmem [#allocation3], %s161
          %s163 = sadd.s32 %s20, %s21
          %s164 = smul.addr %s163, 3
          %s165 = smul.addr %s19, 120
          %s166 = sadd.s32 %s164, %s165
          %s167 = smul.addr %s166, 8
          %s168 = scalar_lea.vmem %s0, %s167
          // Predicated region
          $region29: #{tpu_custom_call.1} parent=27 // pred_check
            _
          $region30: #{tpu_custom_call.1} parent=27 // pred_check_branch
            %170 = sbr.rel (0) target = $region32
          $region31: #{tpu_custom_call.1} parent=27 // pred_region
            // Predicated region
            $region33: #{tpu_custom_call.1} parent=31 // pred_check
              _
            $region34: #{tpu_custom_call.1} parent=31 // pred_check_branch
              %172 = sbr.rel (0) target = $region36
            $region35: #{tpu_custom_call.1} parent=31 // pred_region
              // Predicated region
              $region48: #{tpu_custom_call.1} parent=35 // pred_check
                _
              $region49: #{tpu_custom_call.1} parent=35 // pred_check_branch
                %209 = sbr.rel (0) target = $region51
              $region50: #{tpu_custom_call.1} parent=35 // pred_region
                loop: start=0, step=1, limit=1
                $region52: #{tpu_custom_call.1} parent=50 // loop_pre_header
                  _
                $region53: #{tpu_custom_call.1} parent=50 // loop_header
                  %s211 = sphi 0, %s215
                  %p212 = scmp.ge.s32.totalorder %s211, 1
                  %s216 = sphi %s168, %s168
                  %s217 = sphi %s162, %s162
                $region54: #{tpu_custom_call.1} parent=50 // loop_header_branch
                  %214 = sbr.rel (%p212) target = $region58
                $region55: #{tpu_custom_call.1} parent=50 // loop_body
                  %v218 = vld [vmem:[%s216] sm:$0xff]
                  %219 = vst [vmem:[%s217] sm:$0xff] %v218
                  %v220 = vld [vmem:[%s216 + $0x8] sm:$0xff]
                  %221 = vst [vmem:[%s217 + $0x8] sm:$0xff] %v220
                  %v222 = vld [vmem:[%s216 + $0x10] sm:$0xff]
                  %223 = vst [vmem:[%s217 + $0x10] sm:$0xff] %v222
                  %v224 = vld [vmem:[%s216 + $0xf0] sm:$0xff]
                  %225 = vst [vmem:[%s217 + $0x18] sm:$0xff] %v224
                  %v226 = vld [vmem:[%s216 + $0xf8] sm:$0xff]
                  %227 = vst [vmem:[%s217 + $0x20] sm:$0xff] %v226
                  %v228 = vld [vmem:[%s216 + $0x100] sm:$0xff]
                  %229 = vst [vmem:[%s217 + $0x28] sm:$0xff] %v228
                  %v230 = vld [vmem:[%s216 + $0x1e0] sm:$0xff]
                  %231 = vst [vmem:[%s217 + $0x30] sm:$0xff] %v230
                  %v232 = vld [vmem:[%s216 + $0x1e8] sm:$0xff]
                  %233 = vst [vmem:[%s217 + $0x38] sm:$0xff] %v232
                  %v234 = vld [vmem:[%s216 + $0x1f0] sm:$0xff]
                  %235 = vst [vmem:[%s217 + $0x40] sm:$0xff] %v234
                  %v236 = vld [vmem:[%s216 + $0x2d0] sm:$0xff]
                  %237 = vst [vmem:[%s217 + $0x48] sm:$0xff] %v236
                  %v238 = vld [vmem:[%s216 + $0x2d8] sm:$0xff]
                  %239 = vst [vmem:[%s217 + $0x50] sm:$0xff] %v238
                  %v240 = vld [vmem:[%s216 + $0x2e0] sm:$0xff]
                  %241 = vst [vmem:[%s217 + $0x58] sm:$0xff] %v240
                $region56: #{tpu_custom_call.1} parent=50 // loop_footer
                  %s215 = sadd.s32 1, %s211
                $region57: #{tpu_custom_call.1} parent=50 // loop_footer_branch
                  %210 = sbr.rel target = $region53
                $region58: #{tpu_custom_call.1} parent=50 // loop_exit
                  _
              $region51: #{tpu_custom_call.1} parent=35 // pred_fallthru
                _
              // Predicated region
              $region59: #{tpu_custom_call.1} parent=35 // pred_check
                _
              $region60: #{tpu_custom_call.1} parent=35 // pred_check_branch
                %243 = sbr.rel target = $region62
              $region61: #{tpu_custom_call.1} parent=35 // pred_region
                _
              $region62: #{tpu_custom_call.1} parent=35 // pred_fallthru
                _
            $region36: #{tpu_custom_call.1} parent=31 // pred_fallthru
              _
            // Predicated region
            $region37: #{tpu_custom_call.1} parent=31 // pred_check
              _
            $region38: #{tpu_custom_call.1} parent=31 // pred_check_branch
              %174 = sbr.rel target = $region40
            $region39: #{tpu_custom_call.1} parent=31 // pred_region
              loop: start=0, step=1, limit=1
              $region41: #{tpu_custom_call.1} parent=39 // loop_pre_header
                _
              $region42: #{tpu_custom_call.1} parent=39 // loop_header
                %s177 = sphi 0, %s181
                %p178 = scmp.ge.s32.totalorder %s177, 1
                %s182 = sphi %s168, %s168
                %s183 = sphi %s162, %s162
              $region43: #{tpu_custom_call.1} parent=39 // loop_header_branch
                %180 = sbr.rel (%p178) target = $region47
              $region44: #{tpu_custom_call.1} parent=39 // loop_body
                %v184 = vld [vmem:[%s182] sm:$0xff]
                %185 = vst [vmem:[%s183] sm:$0xff] %v184
                %v186 = vld [vmem:[%s182 + $0x8] sm:$0xff]
                %187 = vst [vmem:[%s183 + $0x8] sm:$0xff] %v186
                %v188 = vld [vmem:[%s182 + $0x10] sm:$0xff]
                %189 = vst [vmem:[%s183 + $0x10] sm:$0xff] %v188
                %v190 = vld [vmem:[%s182 + $0xf0] sm:$0xff]
                %191 = vst [vmem:[%s183 + $0x18] sm:$0xff] %v190
                %v192 = vld [vmem:[%s182 + $0xf8] sm:$0xff]
                %193 = vst [vmem:[%s183 + $0x20] sm:$0xff] %v192
                %v194 = vld [vmem:[%s182 + $0x100] sm:$0xff]
                %195 = vst [vmem:[%s183 + $0x28] sm:$0xff] %v194
                %v196 = vld [vmem:[%s182 + $0x1e0] sm:$0xff]
                %197 = vst [vmem:[%s183 + $0x30] sm:$0xff] %v196
                %v198 = vld [vmem:[%s182 + $0x1e8] sm:$0xff]
                %199 = vst [vmem:[%s183 + $0x38] sm:$0xff] %v198
                %v200 = vld [vmem:[%s182 + $0x1f0] sm:$0xff]
                %201 = vst [vmem:[%s183 + $0x40] sm:$0xff] %v200
                %v202 = vld [vmem:[%s182 + $0x2d0] sm:$0xff]
                %203 = vst [vmem:[%s183 + $0x48] sm:$0xff] %v202
                %v204 = vld [vmem:[%s182 + $0x2d8] sm:$0xff]
                %205 = vst [vmem:[%s183 + $0x50] sm:$0xff] %v204
                %v206 = vld [vmem:[%s182 + $0x2e0] sm:$0xff]
                %207 = vst [vmem:[%s183 + $0x58] sm:$0xff] %v206
              $region45: #{tpu_custom_call.1} parent=39 // loop_footer
                %s181 = sadd.s32 1, %s177
              $region46: #{tpu_custom_call.1} parent=39 // loop_footer_branch
                %176 = sbr.rel target = $region42
              $region47: #{tpu_custom_call.1} parent=39 // loop_exit
                _
            $region40: #{tpu_custom_call.1} parent=31 // pred_fallthru
              _
          $region32: #{tpu_custom_call.1} parent=27 // pred_fallthru
            _
          %244 = vnop
        $region28: #{tpu_custom_call.1} parent=23 // pred_fallthru
          _
      $region24: #{tpu_custom_call.1} parent=5 // pred_fallthru
        _
      %p245 = scmp.le.s32.totalorder 1, %s12
      %p246 = scmp.lt.s32.totalorder %s12, 49
      %p247 = pnand %p245, %p246
      %p248 = pneg %p247
      // Predicated region
      $region63: #{tpu_custom_call.1} parent=5 // pred_check
        _
      $region64: #{tpu_custom_call.1} parent=5 // pred_check_branch
        %250 = sbr.rel (%p247) target = $region66
      $region65: #{tpu_custom_call.1} parent=5 // pred_region
        %s251 = ssub.s32 %s12, 1
        %s252 = sand.u32 %s48, 1
        %s253 = sand.u32 %s48, 1
        %s254 = smul.addr %s253, 96
        %s255 = scalar_lea.vmem [#allocation3], %s254
        // Predicated region
        $region67: #{tpu_custom_call.1} parent=65 // pred_check
          %p256 = pneg %p61
        $region68: #{tpu_custom_call.1} parent=65 // pred_check_branch
          %258 = sbr.rel (%p256) target = $region70
        $region69: #{tpu_custom_call.1} parent=65 // pred_region
          _
        $region70: #{tpu_custom_call.1} parent=65 // pred_fallthru
          _
        %s259 = sand.u32 %s48, 1
        %s260 = sand.u32 %s48, 1
        %s261 = smul.addr %s260, 96
        %s262 = scalar_lea.vmem [#allocation3], %s261
        %p263 = pneg %p61
        %p264 = pneg %p58
        %p265 = pneg %p82
        %p266 = pneg %p79
        %p267 = pneg %p103
        %p268 = pneg %p100
        %p269 = pneg %p131
        %p270 = pneg %p128
        %s271 = sand.u32 %s118, 1
        %s272 = scalar_lea.sflag [#allocation5], %s271
        %s273 = sand.u32 %s118, 1
        %s274 = smul.addr %s273, 128
        %s275 = scalar_lea.vmem [#allocation4], %s274
        %s276 = sadd.s32 %s23, %s24
        %p277 = scmp.eq.s32.totalorder %s24, 0
        // Predicated region
        $region71: #{tpu_custom_call.1} parent=65 // pred_check
          %p278 = pneg %p277
        $region72: #{tpu_custom_call.1} parent=65 // pred_check_branch
          %280 = sbr.rel (%p278) target = $region74
        $region73: #{tpu_custom_call.1} parent=65 // pred_region
          %281 = vst [vmem:[#allocation2] sm:$0xff] 0.0
          %282 = vst [vmem:[#allocation2 + $0x8] sm:$0xff] 0.0
        $region74: #{tpu_custom_call.1} parent=65 // pred_fallthru
          _
        %s283 = smul.u32 %s24, 72
        %s284 = scalar_lea.vmem %s1, %s283
        %v285 = vld [vmem:[%s284] sm:$0xff]
        %v286 = vld [vmem:[%s284 + $0x8] sm:$0xff]
        %v287 = vld [vmem:[%s284 + $0x10] sm:$0xff]
        %v288 = vld [vmem:[%s284 + $0x18] sm:$0xff]
        %v289 = vld [vmem:[%s284 + $0x20] sm:$0xff]
        %v290 = vld [vmem:[%s284 + $0x28] sm:$0xff]
        %v291 = vld [vmem:[%s284 + $0x30] sm:$0xff]
        %v292 = vld [vmem:[%s284 + $0x38] sm:$0xff]
        %v293 = vld [vmem:[%s284 + $0x40] sm:$0xff]
        %v294 = vld [vmem:[#allocation2] sm:$0xff]
        %v295 = vld [vmem:[#allocation2 + $0x8] sm:$0xff]
        %v296 = vld [vmem:[%s255] sm:$0xff]
        %v297 = vld [vmem:[%s255 + $0x8] sm:$0xff]
        %v298 = vld [vmem:[%s255 + $0x18] sm:$0xff]
        %v299 = vld [vmem:[%s255 + $0x20] sm:$0xff]
        %v300 = vld [vmem:[%s255 + $0x30] sm:$0xff]
        %v301 = vld [vmem:[%s255 + $0x38] sm:$0xff]
        %v302 = vld [vmem:[%s255 + $0x48] sm:$0xff]
        %v303 = vld [vmem:[%s255 + $0x50] sm:$0xff]
        %v304 = vcombine.low %v296, %v300
        %v305 = vcombine.high %v296, %v300
        %v307 = vunpack.c.l.s4 1983009808
        %v308 = vunpack.c.0.s8 %v307
        %v309 = vlaneseq
        %v310 = vshrl.u32 %v309, 7
        %v311 = vsub.s32 %v308, %v310
        %v312 = vrot.slane %v304, %v311
        %v314 = vunpack.c.l.s4 1983009808
        %v315 = vunpack.c.0.s8 %v314
        %v316 = vlaneseq
        %v317 = vshrl.u32 %v316, 7
        %v318 = vsub.s32 %v315, %v317
        %v319 = vrot.slane %v305, %v318
        %v320 = vcombine.low %v298, %v302
        %v321 = vcombine.high %v298, %v302
        %v323 = vunpack.c.l.s4 1983009808
        %v324 = vunpack.c.0.s8 %v323
        %v325 = vlaneseq
        %v326 = vshrl.u32 %v325, 7
        %v327 = vsub.s32 %v324, %v326
        %v328 = vrot.slane %v320, %v327
        %v330 = vunpack.c.l.s4 1983009808
        %v331 = vunpack.c.0.s8 %v330
        %v332 = vlaneseq
        %v333 = vshrl.u32 %v332, 7
        %v334 = vsub.s32 %v331, %v333
        %v335 = vrot.slane %v321, %v334
        %v336 = vcombine.low %v312, %v328
        %v337 = vcombine.high %v312, %v328
        %v339 = vunpack.c.l.s4 1934713408
        %v340 = vunpack.c.0.s8 %v339
        %v341 = vlaneseq
        %v342 = vshrl.u32 %v341, 7
        %v343 = vsub.s32 %v340, %v342
        %v344 = vrot.slane %v336, %v343
        %v346 = vunpack.c.l.s4 1934713408
        %v347 = vunpack.c.0.s8 %v346
        %v348 = vlaneseq
        %v349 = vshrl.u32 %v348, 7
        %v350 = vsub.s32 %v347, %v349
        %v351 = vrot.slane %v337, %v350
        %v352 = vcombine.low %v319, %v335
        %v353 = vcombine.high %v319, %v335
        %v355 = vunpack.c.l.s4 1934713408
        %v356 = vunpack.c.0.s8 %v355
        %v357 = vlaneseq
        %v358 = vshrl.u32 %v357, 7
        %v359 = vsub.s32 %v356, %v358
        %v360 = vrot.slane %v352, %v359
        %v362 = vunpack.c.l.s4 1934713408
        %v363 = vunpack.c.0.s8 %v362
        %v364 = vlaneseq
        %v365 = vshrl.u32 %v364, 7
        %v366 = vsub.s32 %v363, %v365
        %v367 = vrot.slane %v353, %v366
        %v368 = vcombine.high %v344, 0.0
        %v369 = vcombine.high %v351, 0.0
        %v370 = vcombine.high %v360, 0.0
        %v371 = vcombine.high %v367, 0.0
        %v372 = vcombine.low %v297, %v301
        %v373 = vcombine.high %v297, %v301
        %v375 = vunpack.c.l.s4 1983009808
        %v376 = vunpack.c.0.s8 %v375
        %v377 = vlaneseq
        %v378 = vshrl.u32 %v377, 7
        %v379 = vsub.s32 %v376, %v378
        %v380 = vrot.slane %v372, %v379
        %v382 = vunpack.c.l.s4 1983009808
        %v383 = vunpack.c.0.s8 %v382
        %v384 = vlaneseq
        %v385 = vshrl.u32 %v384, 7
        %v386 = vsub.s32 %v383, %v385
        %v387 = vrot.slane %v373, %v386
        %v388 = vcombine.low %v299, %v303
        %v389 = vcombine.high %v299, %v303
        %v391 = vunpack.c.l.s4 1983009808
        %v392 = vunpack.c.0.s8 %v391
        %v393 = vlaneseq
        %v394 = vshrl.u32 %v393, 7
        %v395 = vsub.s32 %v392, %v394
        %v396 = vrot.slane %v388, %v395
        %v398 = vunpack.c.l.s4 1983009808
        %v399 = vunpack.c.0.s8 %v398
        %v400 = vlaneseq
        %v401 = vshrl.u32 %v400, 7
        %v402 = vsub.s32 %v399, %v401
        %v403 = vrot.slane %v389, %v402
        %v404 = vcombine.low %v380, %v396
        %v405 = vcombine.high %v380, %v396
        %v407 = vunpack.c.l.s4 1934713408
        %v408 = vunpack.c.0.s8 %v407
        %v409 = vlaneseq
        %v410 = vshrl.u32 %v409, 7
        %v411 = vsub.s32 %v408, %v410
        %v412 = vrot.slane %v404, %v411
        %v414 = vunpack.c.l.s4 1934713408
        %v415 = vunpack.c.0.s8 %v414
        %v416 = vlaneseq
        %v417 = vshrl.u32 %v416, 7
        %v418 = vsub.s32 %v415, %v417
        %v419 = vrot.slane %v405, %v418
        %v420 = vcombine.low %v387, %v403
        %v421 = vcombine.high %v387, %v403
        %v423 = vunpack.c.l.s4 1934713408
        %v424 = vunpack.c.0.s8 %v423
        %v425 = vlaneseq
        %v426 = vshrl.u32 %v425, 7
        %v427 = vsub.s32 %v424, %v426
        %v428 = vrot.slane %v420, %v427
        %v430 = vunpack.c.l.s4 1934713408
        %v431 = vunpack.c.0.s8 %v430
        %v432 = vlaneseq
        %v433 = vshrl.u32 %v432, 7
        %v434 = vsub.s32 %v431, %v433
        %v435 = vrot.slane %v421, %v434
        %v436 = vcombine.high %v412, 0.0
        %v437 = vcombine.high %v419, 0.0
        %v438 = vcombine.high %v428, 0.0
        %v439 = vcombine.high %v435, 0.0
        %441 = vrot.lane.b32.xlu0 %v368, 16
        %v442 = vpop.permute.xlu0 %441
        %445 = vrot.lane.b32.xlu0 %v351, 32
        %v446 = vpop.permute.xlu0 %445
        %449 = vrot.lane.b32.xlu0 %v369, 48
        %v450 = vpop.permute.xlu0 %449
        %453 = vrot.lane.b32.xlu0 %v360, 64
        %v454 = vpop.permute.xlu0 %453
        %457 = vrot.lane.b32.xlu0 %v370, 80
        %v458 = vpop.permute.xlu0 %457
        %461 = vrot.lane.b32.xlu0 %v367, 96
        %v462 = vpop.permute.xlu0 %461
        %465 = vrot.lane.b32.xlu0 %v371, 112
        %v466 = vpop.permute.xlu0 %465
        %469 = vrot.lane.b32.xlu0 %v436, 16
        %v470 = vpop.permute.xlu0 %469
        %473 = vrot.lane.b32.xlu0 %v419, 32
        %v474 = vpop.permute.xlu0 %473
        %477 = vrot.lane.b32.xlu0 %v437, 48
        %v478 = vpop.permute.xlu0 %477
        %481 = vrot.lane.b32.xlu0 %v428, 64
        %v482 = vpop.permute.xlu0 %481
        %485 = vrot.lane.b32.xlu0 %v438, 80
        %v486 = vpop.permute.xlu0 %485
        %489 = vrot.lane.b32.xlu0 %v435, 96
        %v490 = vpop.permute.xlu0 %489
        %493 = vrot.lane.b32.xlu0 %v439, 112
        %v494 = vpop.permute.xlu0 %493
        %vm496 = vcmask 130048
        %v497 = vsel %vm496, %v344, %v442
        %vm498 = vcmask 261120
        %v499 = vsel %vm498, %v497, %v446
        %vm500 = vcmask 392192
        %v501 = vsel %vm500, %v499, %v450
        %vm502 = vcmask 523264
        %v503 = vsel %vm502, %v501, %v454
        %vm504 = vcmask 654336
        %v505 = vsel %vm504, %v503, %v458
        %vm506 = vcmask 785408
        %v507 = vsel %vm506, %v505, %v462
        %vm508 = vcmask 916480
        %v509 = vsel %vm508, %v507, %v466
        %v510 = vsel %vm496, %v412, %v470
        %v511 = vsel %vm498, %v510, %v474
        %v512 = vsel %vm500, %v511, %v478
        %v513 = vsel %vm502, %v512, %v482
        %v514 = vsel %vm504, %v513, %v486
        %v515 = vsel %vm506, %v514, %v490
        %v516 = vsel %vm508, %v515, %v494
        %vm517 = vcmask 31744
        %v519 = vsel %vm517, %v285, 0
        %vm521 = vcmask 1043456
        %v523 = vsel %vm521, %v509, 0
        %v526 = vsel %vm521, %v516, 0
        %528 = vmatprep.subr.mxu0 %v526
        %529 = vmatpush1.msra.mxu0 %v523
        %530 = vmatprep.subr.mxu0 0.0
        %531 = vmatpush1.msra.mxu0 0.0
        %532 = vmatprep.subr.mxu0 0.0
        %533 = vmatpush1.msra.mxu0 0.0
        %534 = vmatprep.subr.mxu0 0.0
        %535 = vmatpush1.msra.mxu0 0.0
        %536 = vmatprep.subr.mxu0 0.0
        %537 = vmatpush1.msra.mxu0 0.0
        %538 = vmatprep.subr.mxu0 0.0
        %539 = vmatpush1.msra.mxu0 0.0
        %540 = vmatprep.subr.mxu0 0.0
        %541 = vmatpush1.msra.mxu0 0.0
        %542 = vmatprep.subr.mxu0 0.0
        %543 = vmatpush1.msra.mxu0 0.0
        %544 = vmatprep.subr.mxu0 0.0
        %545 = vmatpush1.msra.mxu0 0.0
        %546 = vmatprep.subr.mxu0 0.0
        %547 = vmatpush1.msra.mxu0 0.0
        %548 = vmatprep.subr.mxu0 0.0
        %549 = vmatpush1.msra.mxu0 0.0
        %550 = vmatprep.subr.mxu0 0.0
        %551 = vmatpush1.msra.mxu0 0.0
        %552 = vmatprep.subr.mxu0 0.0
        %553 = vmatpush1.msra.mxu0 0.0
        %554 = vmatprep.subr.mxu0 0.0
        %555 = vmatpush1.msra.mxu0 0.0
        %556 = vmatprep.subr.mxu0 0.0
        %557 = vmatpush1.msra.mxu0 0.0
        %558 = vmatprep.subr.mxu0 0.0
        %559 = vmatpush1.msra.mxu0 0.0
        %560 = vmatprep.subr.mxu0 0.0
        %561 = vmatpush1.msra.mxu0 0.0
        %562 = vmatprep.subr.mxu0 0.0
        %563 = vmatpush1.msra.mxu0 0.0
        %564 = vmatprep.subr.mxu0 0.0
        %565 = vmatpush1.msra.mxu0 0.0
        %566 = vmatprep.subr.mxu0 0.0
        %567 = vmatpush1.msra.mxu0 0.0
        %568 = vmatprep.subr.mxu0 0.0
        %569 = vmatpush1.msra.mxu0 0.0
        %570 = vmatprep.subr.mxu0 0.0
        %571 = vmatpush1.msra.mxu0 0.0
        %572 = vmatprep.subr.mxu0 0.0
        %573 = vmatpush1.msra.mxu0 0.0
        %574 = vmatprep.subr.mxu0 0.0
        %575 = vmatpush1.msra.mxu0 0.0
        %576 = vmatprep.subr.mxu0 0.0
        %577 = vmatpush1.msra.mxu0 0.0
        %578 = vmatprep.subr.mxu0 0.0
        %579 = vmatpush1.msra.mxu0 0.0
        %580 = vmatprep.subr.mxu0 0.0
        %581 = vmatpush1.msra.mxu0 0.0
        %582 = vmatprep.subr.mxu0 0.0
        %583 = vmatpush1.msra.mxu0 0.0
        %584 = vmatprep.subr.mxu0 0.0
        %585 = vmatpush1.msra.mxu0 0.0
        %586 = vmatprep.subr.mxu0 0.0
        %587 = vmatpush1.msra.mxu0 0.0
        %588 = vmatprep.subr.mxu0 0.0
        %589 = vmatpush1.msra.mxu0 0.0
        %590 = vmatprep.subr.mxu0 0.0
        %591 = vmatpush1.msra.mxu0 0.0
        %592 = vmatprep.mubr.f32.mxu0 0.0
        %593 = vmatmul.mubr.f32.gmra.mrb[0].mxu0 %v519
        %v594 = vpop.f32.mrb[0].mxu0
        %v595 = vadd.f32 0.0, %v594
        %v596 = vpop.f32.mrb[0].mxu0
        %v597 = vadd.f32 0.0, %v596
        %598 = vdwg.mxu0
        %v599 = vadd.f32 %v294, %v595
        %v600 = vadd.f32 %v295, %v597
        %v601 = vld [vmem:[%s255] sm:$0xff]
        %v602 = vld [vmem:[%s255 + $0x8] sm:$0xff]
        %v603 = vld [vmem:[%s255 + $0x18] sm:$0xff]
        %v604 = vld [vmem:[%s255 + $0x20] sm:$0xff]
        %v605 = vld [vmem:[%s255 + $0x30] sm:$0xff]
        %v606 = vld [vmem:[%s255 + $0x38] sm:$0xff]
        %v607 = vld [vmem:[%s255 + $0x48] sm:$0xff]
        %v608 = vld [vmem:[%s255 + $0x50] sm:$0xff]
        %617 = vrot.lane.b32.xlu0 %v601, 127
        %v618 = vpop.permute.xlu0 %617
        %619 = vrot.lane.b32.xlu0 %v602, 127
        %v620 = vpop.permute.xlu0 %619
        %621 = vrot.lane.b32.xlu0 %v603, 127
        %v622 = vpop.permute.xlu0 %621
        %623 = vrot.lane.b32.xlu0 %v604, 127
        %v624 = vpop.permute.xlu0 %623
        %625 = vrot.lane.b32.xlu0 %v605, 127
        %v626 = vpop.permute.xlu0 %625
        %627 = vrot.lane.b32.xlu0 %v606, 127
        %v628 = vpop.permute.xlu0 %627
        %629 = vrot.lane.b32.xlu0 %v607, 127
        %v630 = vpop.permute.xlu0 %629
        %631 = vrot.lane.b32.xlu0 %v608, 127
        %v632 = vpop.permute.xlu0 %631
        %v641 = vcombine.low %v618, %v626
        %v642 = vcombine.high %v618, %v626
        %v644 = vunpack.c.l.s4 1983009808
        %v645 = vunpack.c.0.s8 %v644
        %v646 = vlaneseq
        %v647 = vshrl.u32 %v646, 7
        %v648 = vsub.s32 %v645, %v647
        %v649 = vrot.slane %v641, %v648
        %v651 = vunpack.c.l.s4 1983009808
        %v652 = vunpack.c.0.s8 %v651
        %v653 = vlaneseq
        %v654 = vshrl.u32 %v653, 7
        %v655 = vsub.s32 %v652, %v654
        %v656 = vrot.slane %v642, %v655
        %v657 = vcombine.low %v622, %v630
        %v658 = vcombine.high %v622, %v630
        %v660 = vunpack.c.l.s4 1983009808
        %v661 = vunpack.c.0.s8 %v660
        %v662 = vlaneseq
        %v663 = vshrl.u32 %v662, 7
        %v664 = vsub.s32 %v661, %v663
        %v665 = vrot.slane %v657, %v664
        %v667 = vunpack.c.l.s4 1983009808
        %v668 = vunpack.c.0.s8 %v667
        %v669 = vlaneseq
        %v670 = vshrl.u32 %v669, 7
        %v671 = vsub.s32 %v668, %v670
        %v672 = vrot.slane %v658, %v671
        %v673 = vcombine.low %v649, %v665
        %v674 = vcombine.high %v649, %v665
        %v676 = vunpack.c.l.s4 1934713408
        %v677 = vunpack.c.0.s8 %v676
        %v678 = vlaneseq
        %v679 = vshrl.u32 %v678, 7
        %v680 = vsub.s32 %v677, %v679
        %v681 = vrot.slane %v673, %v680
        %v683 = vunpack.c.l.s4 1934713408
        %v684 = vunpack.c.0.s8 %v683
        %v685 = vlaneseq
        %v686 = vshrl.u32 %v685, 7
        %v687 = vsub.s32 %v684, %v686
        %v688 = vrot.slane %v674, %v687
        %v689 = vcombine.low %v656, %v672
        %v690 = vcombine.high %v656, %v672
        %v692 = vunpack.c.l.s4 1934713408
        %v693 = vunpack.c.0.s8 %v692
        %v694 = vlaneseq
        %v695 = vshrl.u32 %v694, 7
        %v696 = vsub.s32 %v693, %v695
        %v697 = vrot.slane %v689, %v696
        %v699 = vunpack.c.l.s4 1934713408
        %v700 = vunpack.c.0.s8 %v699
        %v701 = vlaneseq
        %v702 = vshrl.u32 %v701, 7
        %v703 = vsub.s32 %v700, %v702
        %v704 = vrot.slane %v690, %v703
        %v705 = vcombine.high %v681, 0.0
        %v706 = vcombine.high %v688, 0.0
        %v707 = vcombine.high %v697, 0.0
        %v708 = vcombine.high %v704, 0.0
        %v709 = vcombine.low %v620, %v628
        %v710 = vcombine.high %v620, %v628
        %v712 = vunpack.c.l.s4 1983009808
        %v713 = vunpack.c.0.s8 %v712
        %v714 = vlaneseq
        %v715 = vshrl.u32 %v714, 7
        %v716 = vsub.s32 %v713, %v715
        %v717 = vrot.slane %v709, %v716
        %v719 = vunpack.c.l.s4 1983009808
        %v720 = vunpack.c.0.s8 %v719
        %v721 = vlaneseq
        %v722 = vshrl.u32 %v721, 7
        %v723 = vsub.s32 %v720, %v722
        %v724 = vrot.slane %v710, %v723
        %v725 = vcombine.low %v624, %v632
        %v726 = vcombine.high %v624, %v632
        %v728 = vunpack.c.l.s4 1983009808
        %v729 = vunpack.c.0.s8 %v728
        %v730 = vlaneseq
        %v731 = vshrl.u32 %v730, 7
        %v732 = vsub.s32 %v729, %v731
        %v733 = vrot.slane %v725, %v732
        %v735 = vunpack.c.l.s4 1983009808
        %v736 = vunpack.c.0.s8 %v735
        %v737 = vlaneseq
        %v738 = vshrl.u32 %v737, 7
        %v739 = vsub.s32 %v736, %v738
        %v740 = vrot.slane %v726, %v739
        %v741 = vcombine.low %v717, %v733
        %v742 = vcombine.high %v717, %v733
        %v744 = vunpack.c.l.s4 1934713408
        %v745 = vunpack.c.0.s8 %v744
        %v746 = vlaneseq
        %v747 = vshrl.u32 %v746, 7
        %v748 = vsub.s32 %v745, %v747
        %v749 = vrot.slane %v741, %v748
        %v751 = vunpack.c.l.s4 1934713408
        %v752 = vunpack.c.0.s8 %v751
        %v753 = vlaneseq
        %v754 = vshrl.u32 %v753, 7
        %v755 = vsub.s32 %v752, %v754
        %v756 = vrot.slane %v742, %v755
        %v757 = vcombine.low %v724, %v740
        %v758 = vcombine.high %v724, %v740
        %v760 = vunpack.c.l.s4 1934713408
        %v761 = vunpack.c.0.s8 %v760
        %v762 = vlaneseq
        %v763 = vshrl.u32 %v762, 7
        %v764 = vsub.s32 %v761, %v763
        %v765 = vrot.slane %v757, %v764
        %v767 = vunpack.c.l.s4 1934713408
        %v768 = vunpack.c.0.s8 %v767
        %v769 = vlaneseq
        %v770 = vshrl.u32 %v769, 7
        %v771 = vsub.s32 %v768, %v770
        %v772 = vrot.slane %v758, %v771
        %v773 = vcombine.high %v749, 0.0
        %v774 = vcombine.high %v756, 0.0
        %v775 = vcombine.high %v765, 0.0
        %v776 = vcombine.high %v772, 0.0
        %778 = vrot.lane.b32.xlu0 %v705, 16
        %v779 = vpop.permute.xlu0 %778
        %782 = vrot.lane.b32.xlu0 %v688, 32
        %v783 = vpop.permute.xlu0 %782
        %786 = vrot.lane.b32.xlu0 %v706, 48
        %v787 = vpop.permute.xlu0 %786
        %790 = vrot.lane.b32.xlu0 %v697, 64
        %v791 = vpop.permute.xlu0 %790
        %794 = vrot.lane.b32.xlu0 %v707, 80
        %v795 = vpop.permute.xlu0 %794
        %798 = vrot.lane.b32.xlu0 %v704, 96
        %v799 = vpop.permute.xlu0 %798
        %802 = vrot.lane.b32.xlu0 %v708, 112
        %v803 = vpop.permute.xlu0 %802
        %806 = vrot.lane.b32.xlu0 %v773, 16
        %v807 = vpop.permute.xlu0 %806
        %810 = vrot.lane.b32.xlu0 %v756, 32
        %v811 = vpop.permute.xlu0 %810
        %814 = vrot.lane.b32.xlu0 %v774, 48
        %v815 = vpop.permute.xlu0 %814
        %818 = vrot.lane.b32.xlu0 %v765, 64
        %v819 = vpop.permute.xlu0 %818
        %822 = vrot.lane.b32.xlu0 %v775, 80
        %v823 = vpop.permute.xlu0 %822
        %826 = vrot.lane.b32.xlu0 %v772, 96
        %v827 = vpop.permute.xlu0 %826
        %830 = vrot.lane.b32.xlu0 %v776, 112
        %v831 = vpop.permute.xlu0 %830
        %v833 = vsel %vm496, %v681, %v779
        %v834 = vsel %vm498, %v833, %v783
        %v835 = vsel %vm500, %v834, %v787
        %v836 = vsel %vm502, %v835, %v791
        %v837 = vsel %vm504, %v836, %v795
        %v838 = vsel %vm506, %v837, %v799
        %v839 = vsel %vm508, %v838, %v803
        %v840 = vsel %vm496, %v749, %v807
        %v841 = vsel %vm498, %v840, %v811
        %v842 = vsel %vm500, %v841, %v815
        %v843 = vsel %vm502, %v842, %v819
        %v844 = vsel %vm504, %v843, %v823
        %v845 = vsel %vm506, %v844, %v827
        %v846 = vsel %vm508, %v845, %v831
        %v848 = vsel %vm517, %v286, 0
        %v851 = vsel %vm521, %v839, 0
        %v854 = vsel %vm521, %v846, 0
        %856 = vmatprep.subr.mxu0 %v854
        %857 = vmatpush1.msra.mxu0 %v851
        %858 = vmatprep.subr.mxu0 0.0
        %859 = vmatpush1.msra.mxu0 0.0
        %860 = vmatprep.subr.mxu0 0.0
        %861 = vmatpush1.msra.mxu0 0.0
        %862 = vmatprep.subr.mxu0 0.0
        %863 = vmatpush1.msra.mxu0 0.0
        %864 = vmatprep.subr.mxu0 0.0
        %865 = vmatpush1.msra.mxu0 0.0
        %866 = vmatprep.subr.mxu0 0.0
        %867 = vmatpush1.msra.mxu0 0.0
        %868 = vmatprep.subr.mxu0 0.0
        %869 = vmatpush1.msra.mxu0 0.0
        %870 = vmatprep.subr.mxu0 0.0
        %871 = vmatpush1.msra.mxu0 0.0
        %872 = vmatprep.subr.mxu0 0.0
        %873 = vmatpush1.msra.mxu0 0.0
        %874 = vmatprep.subr.mxu0 0.0
        %875 = vmatpush1.msra.mxu0 0.0
        %876 = vmatprep.subr.mxu0 0.0
        %877 = vmatpush1.msra.mxu0 0.0
        %878 = vmatprep.subr.mxu0 0.0
        %879 = vmatpush1.msra.mxu0 0.0
        %880 = vmatprep.subr.mxu0 0.0
        %881 = vmatpush1.msra.mxu0 0.0
        %882 = vmatprep.subr.mxu0 0.0
        %883 = vmatpush1.msra.mxu0 0.0
        %884 = vmatprep.subr.mxu0 0.0
        %885 = vmatpush1.msra.mxu0 0.0
        %886 = vmatprep.subr.mxu0 0.0
        %887 = vmatpush1.msra.mxu0 0.0
        %888 = vmatprep.subr.mxu0 0.0
        %889 = vmatpush1.msra.mxu0 0.0
        %890 = vmatprep.subr.mxu0 0.0
        %891 = vmatpush1.msra.mxu0 0.0
        %892 = vmatprep.subr.mxu0 0.0
        %893 = vmatpush1.msra.mxu0 0.0
        %894 = vmatprep.subr.mxu0 0.0
        %895 = vmatpush1.msra.mxu0 0.0
        %896 = vmatprep.subr.mxu0 0.0
        %897 = vmatpush1.msra.mxu0 0.0
        %898 = vmatprep.subr.mxu0 0.0
        %899 = vmatpush1.msra.mxu0 0.0
        %900 = vmatprep.subr.mxu0 0.0
        %901 = vmatpush1.msra.mxu0 0.0
        %902 = vmatprep.subr.mxu0 0.0
        %903 = vmatpush1.msra.mxu0 0.0
        %904 = vmatprep.subr.mxu0 0.0
        %905 = vmatpush1.msra.mxu0 0.0
        %906 = vmatprep.subr.mxu0 0.0
        %907 = vmatpush1.msra.mxu0 0.0
        %908 = vmatprep.subr.mxu0 0.0
        %909 = vmatpush1.msra.mxu0 0.0
        %910 = vmatprep.subr.mxu0 0.0
        %911 = vmatpush1.msra.mxu0 0.0
        %912 = vmatprep.subr.mxu0 0.0
        %913 = vmatpush1.msra.mxu0 0.0
        %914 = vmatprep.subr.mxu0 0.0
        %915 = vmatpush1.msra.mxu0 0.0
        %916 = vmatprep.subr.mxu0 0.0
        %917 = vmatpush1.msra.mxu0 0.0
        %918 = vmatprep.subr.mxu0 0.0
        %919 = vmatpush1.msra.mxu0 0.0
        %920 = vmatprep.mubr.f32.mxu0 0.0
        %921 = vmatmul.mubr.f32.gmra.mrb[0].mxu0 %v848
        %v922 = vpop.f32.mrb[0].mxu0
        %v923 = vadd.f32 0.0, %v922
        %v924 = vpop.f32.mrb[0].mxu0
        %v925 = vadd.f32 0.0, %v924
        %926 = vdwg.mxu0
        %v927 = vadd.f32 %v599, %v923
        %v928 = vadd.f32 %v600, %v925
        %v929 = vld [vmem:[%s255] sm:$0xff]
        %v930 = vld [vmem:[%s255 + $0x8] sm:$0xff]
        %v931 = vld [vmem:[%s255 + $0x18] sm:$0xff]
        %v932 = vld [vmem:[%s255 + $0x20] sm:$0xff]
        %v933 = vld [vmem:[%s255 + $0x30] sm:$0xff]
        %v934 = vld [vmem:[%s255 + $0x38] sm:$0xff]
        %v935 = vld [vmem:[%s255 + $0x48] sm:$0xff]
        %v936 = vld [vmem:[%s255 + $0x50] sm:$0xff]
        %945 = vrot.lane.b32.xlu0 %v929, 126
        %v946 = vpop.permute.xlu0 %945
        %947 = vrot.lane.b32.xlu0 %v930, 126
        %v948 = vpop.permute.xlu0 %947
        %949 = vrot.lane.b32.xlu0 %v931, 126
        %v950 = vpop.permute.xlu0 %949
        %951 = vrot.lane.b32.xlu0 %v932, 126
        %v952 = vpop.permute.xlu0 %951
        %953 = vrot.lane.b32.xlu0 %v933, 126
        %v954 = vpop.permute.xlu0 %953
        %955 = vrot.lane.b32.xlu0 %v934, 126
        %v956 = vpop.permute.xlu0 %955
        %957 = vrot.lane.b32.xlu0 %v935, 126
        %v958 = vpop.permute.xlu0 %957
        %959 = vrot.lane.b32.xlu0 %v936, 126
        %v960 = vpop.permute.xlu0 %959
        %v969 = vcombine.low %v946, %v954
        %v970 = vcombine.high %v946, %v954
        %v972 = vunpack.c.l.s4 1983009808
        %v973 = vunpack.c.0.s8 %v972
        %v974 = vlaneseq
        %v975 = vshrl.u32 %v974, 7
        %v976 = vsub.s32 %v973, %v975
        %v977 = vrot.slane %v969, %v976
        %v979 = vunpack.c.l.s4 1983009808
        %v980 = vunpack.c.0.s8 %v979
        %v981 = vlaneseq
        %v982 = vshrl.u32 %v981, 7
        %v983 = vsub.s32 %v980, %v982
        %v984 = vrot.slane %v970, %v983
        %v985 = vcombine.low %v950, %v958
        %v986 = vcombine.high %v950, %v958
        %v988 = vunpack.c.l.s4 1983009808
        %v989 = vunpack.c.0.s8 %v988
        %v990 = vlaneseq
        %v991 = vshrl.u32 %v990, 7
        %v992 = vsub.s32 %v989, %v991
        %v993 = vrot.slane %v985, %v992
        %v995 = vunpack.c.l.s4 1983009808
        %v996 = vunpack.c.0.s8 %v995
        %v997 = vlaneseq
        %v998 = vshrl.u32 %v997, 7
        %v999 = vsub.s32 %v996, %v998
        %v1000 = vrot.slane %v986, %v999
        %v1001 = vcombine.low %v977, %v993
        %v1002 = vcombine.high %v977, %v993
        %v1004 = vunpack.c.l.s4 1934713408
        %v1005 = vunpack.c.0.s8 %v1004
        %v1006 = vlaneseq
        %v1007 = vshrl.u32 %v1006, 7
        %v1008 = vsub.s32 %v1005, %v1007
        %v1009 = vrot.slane %v1001, %v1008
        %v1011 = vunpack.c.l.s4 1934713408
        %v1012 = vunpack.c.0.s8 %v1011
        %v1013 = vlaneseq
        %v1014 = vshrl.u32 %v1013, 7
        %v1015 = vsub.s32 %v1012, %v1014
        %v1016 = vrot.slane %v1002, %v1015
        %v1017 = vcombine.low %v984, %v1000
        %v1018 = vcombine.high %v984, %v1000
        %v1020 = vunpack.c.l.s4 1934713408
        %v1021 = vunpack.c.0.s8 %v1020
        %v1022 = vlaneseq
        %v1023 = vshrl.u32 %v1022, 7
        %v1024 = vsub.s32 %v1021, %v1023
        %v1025 = vrot.slane %v1017, %v1024
        %v1027 = vunpack.c.l.s4 1934713408
        %v1028 = vunpack.c.0.s8 %v1027
        %v1029 = vlaneseq
        %v1030 = vshrl.u32 %v1029, 7
        %v1031 = vsub.s32 %v1028, %v1030
        %v1032 = vrot.slane %v1018, %v1031
        %v1033 = vcombine.high %v1009, 0.0
        %v1034 = vcombine.high %v1016, 0.0
        %v1035 = vcombine.high %v1025, 0.0
        %v1036 = vcombine.high %v1032, 0.0
        %v1037 = vcombine.low %v948, %v956
        %v1038 = vcombine.high %v948, %v956
        %v1040 = vunpack.c.l.s4 1983009808
        %v1041 = vunpack.c.0.s8 %v1040
        %v1042 = vlaneseq
        %v1043 = vshrl.u32 %v1042, 7
        %v1044 = vsub.s32 %v1041, %v1043
        %v1045 = vrot.slane %v1037, %v1044
        %v1047 = vunpack.c.l.s4 1983009808
        %v1048 = vunpack.c.0.s8 %v1047
        %v1049 = vlaneseq
        %v1050 = vshrl.u32 %v1049, 7
        %v1051 = vsub.s32 %v1048, %v1050
        %v1052 = vrot.slane %v1038, %v1051
        %v1053 = vcombine.low %v952, %v960
        %v1054 = vcombine.high %v952, %v960
        %v1056 = vunpack.c.l.s4 1983009808
        %v1057 = vunpack.c.0.s8 %v1056
        %v1058 = vlaneseq
        %v1059 = vshrl.u32 %v1058, 7
        %v1060 = vsub.s32 %v1057, %v1059
        %v1061 = vrot.slane %v1053, %v1060
        %v1063 = vunpack.c.l.s4 1983009808
        %v1064 = vunpack.c.0.s8 %v1063
        %v1065 = vlaneseq
        %v1066 = vshrl.u32 %v1065, 7
        %v1067 = vsub.s32 %v1064, %v1066
        %v1068 = vrot.slane %v1054, %v1067
        %v1069 = vcombine.low %v1045, %v1061
        %v1070 = vcombine.high %v1045, %v1061
        %v1072 = vunpack.c.l.s4 1934713408
        %v1073 = vunpack.c.0.s8 %v1072
        %v1074 = vlaneseq
        %v1075 = vshrl.u32 %v1074, 7
        %v1076 = vsub.s32 %v1073, %v1075
        %v1077 = vrot.slane %v1069, %v1076
        %v1079 = vunpack.c.l.s4 1934713408
        %v1080 = vunpack.c.0.s8 %v1079
        %v1081 = vlaneseq
        %v1082 = vshrl.u32 %v1081, 7
        %v1083 = vsub.s32 %v1080, %v1082
        %v1084 = vrot.slane %v1070, %v1083
        %v1085 = vcombine.low %v1052, %v1068
        %v1086 = vcombine.high %v1052, %v1068
        %v1088 = vunpack.c.l.s4 1934713408
        %v1089 = vunpack.c.0.s8 %v1088
        %v1090 = vlaneseq
        %v1091 = vshrl.u32 %v1090, 7
        %v1092 = vsub.s32 %v1089, %v1091
        %v1093 = vrot.slane %v1085, %v1092
        %v1095 = vunpack.c.l.s4 1934713408
        %v1096 = vunpack.c.0.s8 %v1095
        %v1097 = vlaneseq
        %v1098 = vshrl.u32 %v1097, 7
        %v1099 = vsub.s32 %v1096, %v1098
        %v1100 = vrot.slane %v1086, %v1099
        %v1101 = vcombine.high %v1077, 0.0
        %v1102 = vcombine.high %v1084, 0.0
        %v1103 = vcombine.high %v1093, 0.0
        %v1104 = vcombine.high %v1100, 0.0
        %1106 = vrot.lane.b32.xlu0 %v1033, 16
        %v1107 = vpop.permute.xlu0 %1106
        %1110 = vrot.lane.b32.xlu0 %v1016, 32
        %v1111 = vpop.permute.xlu0 %1110
        %1114 = vrot.lane.b32.xlu0 %v1034, 48
        %v1115 = vpop.permute.xlu0 %1114
        %1118 = vrot.lane.b32.xlu0 %v1025, 64
        %v1119 = vpop.permute.xlu0 %1118
        %1122 = vrot.lane.b32.xlu0 %v1035, 80
        %v1123 = vpop.permute.xlu0 %1122
        %1126 = vrot.lane.b32.xlu0 %v1032, 96
        %v1127 = vpop.permute.xlu0 %1126
        %1130 = vrot.lane.b32.xlu0 %v1036, 112
        %v1131 = vpop.permute.xlu0 %1130
        %1134 = vrot.lane.b32.xlu0 %v1101, 16
        %v1135 = vpop.permute.xlu0 %1134
        %1138 = vrot.lane.b32.xlu0 %v1084, 32
        %v1139 = vpop.permute.xlu0 %1138
        %1142 = vrot.lane.b32.xlu0 %v1102, 48
        %v1143 = vpop.permute.xlu0 %1142
        %1146 = vrot.lane.b32.xlu0 %v1093, 64
        %v1147 = vpop.permute.xlu0 %1146
        %1150 = vrot.lane.b32.xlu0 %v1103, 80
        %v1151 = vpop.permute.xlu0 %1150
        %1154 = vrot.lane.b32.xlu0 %v1100, 96
        %v1155 = vpop.permute.xlu0 %1154
        %1158 = vrot.lane.b32.xlu0 %v1104, 112
        %v1159 = vpop.permute.xlu0 %1158
        %v1161 = vsel %vm496, %v1009, %v1107
        %v1162 = vsel %vm498, %v1161, %v1111
        %v1163 = vsel %vm500, %v1162, %v1115
        %v1164 = vsel %vm502, %v1163, %v1119
        %v1165 = vsel %vm504, %v1164, %v1123
        %v1166 = vsel %vm506, %v1165, %v1127
        %v1167 = vsel %vm508, %v1166, %v1131
        %v1168 = vsel %vm496, %v1077, %v1135
        %v1169 = vsel %vm498, %v1168, %v1139
        %v1170 = vsel %vm500, %v1169, %v1143
        %v1171 = vsel %vm502, %v1170, %v1147
        %v1172 = vsel %vm504, %v1171, %v1151
        %v1173 = vsel %vm506, %v1172, %v1155
        %v1174 = vsel %vm508, %v1173, %v1159
        %v1176 = vsel %vm517, %v287, 0
        %v1179 = vsel %vm521, %v1167, 0
        %v1182 = vsel %vm521, %v1174, 0
        %1184 = vmatprep.subr.mxu0 %v1182
        %1185 = vmatpush1.msra.mxu0 %v1179
        %1186 = vmatprep.subr.mxu0 0.0
        %1187 = vmatpush1.msra.mxu0 0.0
        %1188 = vmatprep.subr.mxu0 0.0
        %1189 = vmatpush1.msra.mxu0 0.0
        %1190 = vmatprep.subr.mxu0 0.0
        %1191 = vmatpush1.msra.mxu0 0.0
        %1192 = vmatprep.subr.mxu0 0.0
        %1193 = vmatpush1.msra.mxu0 0.0
        %1194 = vmatprep.subr.mxu0 0.0
        %1195 = vmatpush1.msra.mxu0 0.0
        %1196 = vmatprep.subr.mxu0 0.0
        %1197 = vmatpush1.msra.mxu0 0.0
        %1198 = vmatprep.subr.mxu0 0.0
        %1199 = vmatpush1.msra.mxu0 0.0
        %1200 = vmatprep.subr.mxu0 0.0
        %1201 = vmatpush1.msra.mxu0 0.0
        %1202 = vmatprep.subr.mxu0 0.0
        %1203 = vmatpush1.msra.mxu0 0.0
        %1204 = vmatprep.subr.mxu0 0.0
        %1205 = vmatpush1.msra.mxu0 0.0
        %1206 = vmatprep.subr.mxu0 0.0
        %1207 = vmatpush1.msra.mxu0 0.0
        %1208 = vmatprep.subr.mxu0 0.0
        %1209 = vmatpush1.msra.mxu0 0.0
        %1210 = vmatprep.subr.mxu0 0.0
        %1211 = vmatpush1.msra.mxu0 0.0
        %1212 = vmatprep.subr.mxu0 0.0
        %1213 = vmatpush1.msra.mxu0 0.0
        %1214 = vmatprep.subr.mxu0 0.0
        %1215 = vmatpush1.msra.mxu0 0.0
        %1216 = vmatprep.subr.mxu0 0.0
        %1217 = vmatpush1.msra.mxu0 0.0
        %1218 = vmatprep.subr.mxu0 0.0
        %1219 = vmatpush1.msra.mxu0 0.0
        %1220 = vmatprep.subr.mxu0 0.0
        %1221 = vmatpush1.msra.mxu0 0.0
        %1222 = vmatprep.subr.mxu0 0.0
        %1223 = vmatpush1.msra.mxu0 0.0
        %1224 = vmatprep.subr.mxu0 0.0
        %1225 = vmatpush1.msra.mxu0 0.0
        %1226 = vmatprep.subr.mxu0 0.0
        %1227 = vmatpush1.msra.mxu0 0.0
        %1228 = vmatprep.subr.mxu0 0.0
        %1229 = vmatpush1.msra.mxu0 0.0
        %1230 = vmatprep.subr.mxu0 0.0
        %1231 = vmatpush1.msra.mxu0 0.0
        %1232 = vmatprep.subr.mxu0 0.0
        %1233 = vmatpush1.msra.mxu0 0.0
        %1234 = vmatprep.subr.mxu0 0.0
        %1235 = vmatpush1.msra.mxu0 0.0
        %1236 = vmatprep.subr.mxu0 0.0
        %1237 = vmatpush1.msra.mxu0 0.0
        %1238 = vmatprep.subr.mxu0 0.0
        %1239 = vmatpush1.msra.mxu0 0.0
        %1240 = vmatprep.subr.mxu0 0.0
        %1241 = vmatpush1.msra.mxu0 0.0
        %1242 = vmatprep.subr.mxu0 0.0
        %1243 = vmatpush1.msra.mxu0 0.0
        %1244 = vmatprep.subr.mxu0 0.0
        %1245 = vmatpush1.msra.mxu0 0.0
        %1246 = vmatprep.subr.mxu0 0.0
        %1247 = vmatpush1.msra.mxu0 0.0
        %1248 = vmatprep.mubr.f32.mxu0 0.0
        %1249 = vmatmul.mubr.f32.gmra.mrb[0].mxu0 %v1176
        %v1250 = vpop.f32.mrb[0].mxu0
        %v1251 = vadd.f32 0.0, %v1250
        %v1252 = vpop.f32.mrb[0].mxu0
        %v1253 = vadd.f32 0.0, %v1252
        %1254 = vdwg.mxu0
        %v1255 = vadd.f32 %v927, %v1251
        %v1256 = vadd.f32 %v928, %v1253
        %v1257 = vld [vmem:[%s255 + $0x1] sm:$0xff]
        %v1258 = vld [vmem:[%s255 + $0x9] sm:$0xff]
        %v1259 = vld [vmem:[%s255 + $0x19] sm:$0xff]
        %v1260 = vld [vmem:[%s255 + $0x21] sm:$0xff]
        %v1261 = vld [vmem:[%s255 + $0x31] sm:$0xff]
        %v1262 = vld [vmem:[%s255 + $0x39] sm:$0xff]
        %v1263 = vld [vmem:[%s255 + $0x49] sm:$0xff]
        %v1264 = vld [vmem:[%s255 + $0x51] sm:$0xff]
        %v1265 = vcombine.low %v1257, %v1261
        %v1266 = vcombine.high %v1257, %v1261
        %v1268 = vunpack.c.l.s4 1983009808
        %v1269 = vunpack.c.0.s8 %v1268
        %v1270 = vlaneseq
        %v1271 = vshrl.u32 %v1270, 7
        %v1272 = vsub.s32 %v1269, %v1271
        %v1273 = vrot.slane %v1265, %v1272
        %v1275 = vunpack.c.l.s4 1983009808
        %v1276 = vunpack.c.0.s8 %v1275
        %v1277 = vlaneseq
        %v1278 = vshrl.u32 %v1277, 7
        %v1279 = vsub.s32 %v1276, %v1278
        %v1280 = vrot.slane %v1266, %v1279
        %v1281 = vcombine.low %v1259, %v1263
        %v1282 = vcombine.high %v1259, %v1263
        %v1284 = vunpack.c.l.s4 1983009808
        %v1285 = vunpack.c.0.s8 %v1284
        %v1286 = vlaneseq
        %v1287 = vshrl.u32 %v1286, 7
        %v1288 = vsub.s32 %v1285, %v1287
        %v1289 = vrot.slane %v1281, %v1288
        %v1291 = vunpack.c.l.s4 1983009808
        %v1292 = vunpack.c.0.s8 %v1291
        %v1293 = vlaneseq
        %v1294 = vshrl.u32 %v1293, 7
        %v1295 = vsub.s32 %v1292, %v1294
        %v1296 = vrot.slane %v1282, %v1295
        %v1297 = vcombine.low %v1273, %v1289
        %v1298 = vcombine.high %v1273, %v1289
        %v1300 = vunpack.c.l.s4 1934713408
        %v1301 = vunpack.c.0.s8 %v1300
        %v1302 = vlaneseq
        %v1303 = vshrl.u32 %v1302, 7
        %v1304 = vsub.s32 %v1301, %v1303
        %v1305 = vrot.slane %v1297, %v1304
        %v1307 = vunpack.c.l.s4 1934713408
        %v1308 = vunpack.c.0.s8 %v1307
        %v1309 = vlaneseq
        %v1310 = vshrl.u32 %v1309, 7
        %v1311 = vsub.s32 %v1308, %v1310
        %v1312 = vrot.slane %v1298, %v1311
        %v1313 = vcombine.low %v1280, %v1296
        %v1314 = vcombine.high %v1280, %v1296
        %v1316 = vunpack.c.l.s4 1934713408
        %v1317 = vunpack.c.0.s8 %v1316
        %v1318 = vlaneseq
        %v1319 = vshrl.u32 %v1318, 7
        %v1320 = vsub.s32 %v1317, %v1319
        %v1321 = vrot.slane %v1313, %v1320
        %v1323 = vunpack.c.l.s4 1934713408
        %v1324 = vunpack.c.0.s8 %v1323
        %v1325 = vlaneseq
        %v1326 = vshrl.u32 %v1325, 7
        %v1327 = vsub.s32 %v1324, %v1326
        %v1328 = vrot.slane %v1314, %v1327
        %v1329 = vcombine.high %v1305, 0.0
        %v1330 = vcombine.high %v1312, 0.0
        %v1331 = vcombine.high %v1321, 0.0
        %v1332 = vcombine.high %v1328, 0.0
        %v1333 = vcombine.low %v1258, %v1262
        %v1334 = vcombine.high %v1258, %v1262
        %v1336 = vunpack.c.l.s4 1983009808
        %v1337 = vunpack.c.0.s8 %v1336
        %v1338 = vlaneseq
        %v1339 = vshrl.u32 %v1338, 7
        %v1340 = vsub.s32 %v1337, %v1339
        %v1341 = vrot.slane %v1333, %v1340
        %v1343 = vunpack.c.l.s4 1983009808
        %v1344 = vunpack.c.0.s8 %v1343
        %v1345 = vlaneseq
        %v1346 = vshrl.u32 %v1345, 7
        %v1347 = vsub.s32 %v1344, %v1346
        %v1348 = vrot.slane %v1334, %v1347
        %v1349 = vcombine.low %v1260, %v1264
        %v1350 = vcombine.high %v1260, %v1264
        %v1352 = vunpack.c.l.s4 1983009808
        %v1353 = vunpack.c.0.s8 %v1352
        %v1354 = vlaneseq
        %v1355 = vshrl.u32 %v1354, 7
        %v1356 = vsub.s32 %v1353, %v1355
        %v1357 = vrot.slane %v1349, %v1356
        %v1359 = vunpack.c.l.s4 1983009808
        %v1360 = vunpack.c.0.s8 %v1359
        %v1361 = vlaneseq
        %v1362 = vshrl.u32 %v1361, 7
        %v1363 = vsub.s32 %v1360, %v1362
        %v1364 = vrot.slane %v1350, %v1363
        %v1365 = vcombine.low %v1341, %v1357
        %v1366 = vcombine.high %v1341, %v1357
        %v1368 = vunpack.c.l.s4 1934713408
        %v1369 = vunpack.c.0.s8 %v1368
        %v1370 = vlaneseq
        %v1371 = vshrl.u32 %v1370, 7
        %v1372 = vsub.s32 %v1369, %v1371
        %v1373 = vrot.slane %v1365, %v1372
        %v1375 = vunpack.c.l.s4 1934713408
        %v1376 = vunpack.c.0.s8 %v1375
        %v1377 = vlaneseq
        %v1378 = vshrl.u32 %v1377, 7
        %v1379 = vsub.s32 %v1376, %v1378
        %v1380 = vrot.slane %v1366, %v1379
        %v1381 = vcombine.low %v1348, %v1364
        %v1382 = vcombine.high %v1348, %v1364
        %v1384 = vunpack.c.l.s4 1934713408
        %v1385 = vunpack.c.0.s8 %v1384
        %v1386 = vlaneseq
        %v1387 = vshrl.u32 %v1386, 7
        %v1388 = vsub.s32 %v1385, %v1387
        %v1389 = vrot.slane %v1381, %v1388
        %v1391 = vunpack.c.l.s4 1934713408
        %v1392 = vunpack.c.0.s8 %v1391
        %v1393 = vlaneseq
        %v1394 = vshrl.u32 %v1393, 7
        %v1395 = vsub.s32 %v1392, %v1394
        %v1396 = vrot.slane %v1382, %v1395
        %v1397 = vcombine.high %v1373, 0.0
        %v1398 = vcombine.high %v1380, 0.0
        %v1399 = vcombine.high %v1389, 0.0
        %v1400 = vcombine.high %v1396, 0.0
        %1402 = vrot.lane.b32.xlu0 %v1329, 16
        %v1403 = vpop.permute.xlu0 %1402
        %1406 = vrot.lane.b32.xlu0 %v1312, 32
        %v1407 = vpop.permute.xlu0 %1406
        %1410 = vrot.lane.b32.xlu0 %v1330, 48
        %v1411 = vpop.permute.xlu0 %1410
        %1414 = vrot.lane.b32.xlu0 %v1321, 64
        %v1415 = vpop.permute.xlu0 %1414
        %1418 = vrot.lane.b32.xlu0 %v1331, 80
        %v1419 = vpop.permute.xlu0 %1418
        %1422 = vrot.lane.b32.xlu0 %v1328, 96
        %v1423 = vpop.permute.xlu0 %1422
        %1426 = vrot.lane.b32.xlu0 %v1332, 112
        %v1427 = vpop.permute.xlu0 %1426
        %1430 = vrot.lane.b32.xlu0 %v1397, 16
        %v1431 = vpop.permute.xlu0 %1430
        %1434 = vrot.lane.b32.xlu0 %v1380, 32
        %v1435 = vpop.permute.xlu0 %1434
        %1438 = vrot.lane.b32.xlu0 %v1398, 48
        %v1439 = vpop.permute.xlu0 %1438
        %1442 = vrot.lane.b32.xlu0 %v1389, 64
        %v1443 = vpop.permute.xlu0 %1442
        %1446 = vrot.lane.b32.xlu0 %v1399, 80
        %v1447 = vpop.permute.xlu0 %1446
        %1450 = vrot.lane.b32.xlu0 %v1396, 96
        %v1451 = vpop.permute.xlu0 %1450
        %1454 = vrot.lane.b32.xlu0 %v1400, 112
        %v1455 = vpop.permute.xlu0 %1454
        %v1457 = vsel %vm496, %v1305, %v1403
        %v1458 = vsel %vm498, %v1457, %v1407
        %v1459 = vsel %vm500, %v1458, %v1411
        %v1460 = vsel %vm502, %v1459, %v1415
        %v1461 = vsel %vm504, %v1460, %v1419
        %v1462 = vsel %vm506, %v1461, %v1423
        %v1463 = vsel %vm508, %v1462, %v1427
        %v1464 = vsel %vm496, %v1373, %v1431
        %v1465 = vsel %vm498, %v1464, %v1435
        %v1466 = vsel %vm500, %v1465, %v1439
        %v1467 = vsel %vm502, %v1466, %v1443
        %v1468 = vsel %vm504, %v1467, %v1447
        %v1469 = vsel %vm506, %v1468, %v1451
        %v1470 = vsel %vm508, %v1469, %v1455
        %v1472 = vsel %vm517, %v288, 0
        %v1475 = vsel %vm521, %v1463, 0
        %v1478 = vsel %vm521, %v1470, 0
        %1480 = vmatprep.subr.mxu0 %v1478
        %1481 = vmatpush1.msra.mxu0 %v1475
        %1482 = vmatprep.subr.mxu0 0.0
        %1483 = vmatpush1.msra.mxu0 0.0
        %1484 = vmatprep.subr.mxu0 0.0
        %1485 = vmatpush1.msra.mxu0 0.0
        %1486 = vmatprep.subr.mxu0 0.0
        %1487 = vmatpush1.msra.mxu0 0.0
        %1488 = vmatprep.subr.mxu0 0.0
        %1489 = vmatpush1.msra.mxu0 0.0
        %1490 = vmatprep.subr.mxu0 0.0
        %1491 = vmatpush1.msra.mxu0 0.0
        %1492 = vmatprep.subr.mxu0 0.0
        %1493 = vmatpush1.msra.mxu0 0.0
        %1494 = vmatprep.subr.mxu0 0.0
        %1495 = vmatpush1.msra.mxu0 0.0
        %1496 = vmatprep.subr.mxu0 0.0
        %1497 = vmatpush1.msra.mxu0 0.0
        %1498 = vmatprep.subr.mxu0 0.0
        %1499 = vmatpush1.msra.mxu0 0.0
        %1500 = vmatprep.subr.mxu0 0.0
        %1501 = vmatpush1.msra.mxu0 0.0
        %1502 = vmatprep.subr.mxu0 0.0
        %1503 = vmatpush1.msra.mxu0 0.0
        %1504 = vmatprep.subr.mxu0 0.0
        %1505 = vmatpush1.msra.mxu0 0.0
        %1506 = vmatprep.subr.mxu0 0.0
        %1507 = vmatpush1.msra.mxu0 0.0
        %1508 = vmatprep.subr.mxu0 0.0
        %1509 = vmatpush1.msra.mxu0 0.0
        %1510 = vmatprep.subr.mxu0 0.0
        %1511 = vmatpush1.msra.mxu0 0.0
        %1512 = vmatprep.subr.mxu0 0.0
        %1513 = vmatpush1.msra.mxu0 0.0
        %1514 = vmatprep.subr.mxu0 0.0
        %1515 = vmatpush1.msra.mxu0 0.0
        %1516 = vmatprep.subr.mxu0 0.0
        %1517 = vmatpush1.msra.mxu0 0.0
        %1518 = vmatprep.subr.mxu0 0.0
        %1519 = vmatpush1.msra.mxu0 0.0
        %1520 = vmatprep.subr.mxu0 0.0
        %1521 = vmatpush1.msra.mxu0 0.0
        %1522 = vmatprep.subr.mxu0 0.0
        %1523 = vmatpush1.msra.mxu0 0.0
        %1524 = vmatprep.subr.mxu0 0.0
        %1525 = vmatpush1.msra.mxu0 0.0
        %1526 = vmatprep.subr.mxu0 0.0
        %1527 = vmatpush1.msra.mxu0 0.0
        %1528 = vmatprep.subr.mxu0 0.0
        %1529 = vmatpush1.msra.mxu0 0.0
        %1530 = vmatprep.subr.mxu0 0.0
        %1531 = vmatpush1.msra.mxu0 0.0
        %1532 = vmatprep.subr.mxu0 0.0
        %1533 = vmatpush1.msra.mxu0 0.0
        %1534 = vmatprep.subr.mxu0 0.0
        %1535 = vmatpush1.msra.mxu0 0.0
        %1536 = vmatprep.subr.mxu0 0.0
        %1537 = vmatpush1.msra.mxu0 0.0
        %1538 = vmatprep.subr.mxu0 0.0
        %1539 = vmatpush1.msra.mxu0 0.0
        %1540 = vmatprep.subr.mxu0 0.0
        %1541 = vmatpush1.msra.mxu0 0.0
        %1542 = vmatprep.subr.mxu0 0.0
        %1543 = vmatpush1.msra.mxu0 0.0
        %1544 = vmatprep.mubr.f32.mxu0 0.0
        %1545 = vmatmul.mubr.f32.gmra.mrb[0].mxu0 %v1472
        %v1546 = vpop.f32.mrb[0].mxu0
        %v1547 = vadd.f32 0.0, %v1546
        %v1548 = vpop.f32.mrb[0].mxu0
        %v1549 = vadd.f32 0.0, %v1548
        %1550 = vdwg.mxu0
        %v1551 = vadd.f32 %v1255, %v1547
        %v1552 = vadd.f32 %v1256, %v1549
        %v1553 = vld [vmem:[%s255 + $0x1] sm:$0xff]
        %v1554 = vld [vmem:[%s255 + $0x9] sm:$0xff]
        %v1555 = vld [vmem:[%s255 + $0x19] sm:$0xff]
        %v1556 = vld [vmem:[%s255 + $0x21] sm:$0xff]
        %v1557 = vld [vmem:[%s255 + $0x31] sm:$0xff]
        %v1558 = vld [vmem:[%s255 + $0x39] sm:$0xff]
        %v1559 = vld [vmem:[%s255 + $0x49] sm:$0xff]
        %v1560 = vld [vmem:[%s255 + $0x51] sm:$0xff]
        %1569 = vrot.lane.b32.xlu0 %v1553, 127
        %v1570 = vpop.permute.xlu0 %1569
        %1571 = vrot.lane.b32.xlu0 %v1554, 127
        %v1572 = vpop.permute.xlu0 %1571
        %1573 = vrot.lane.b32.xlu0 %v1555, 127
        %v1574 = vpop.permute.xlu0 %1573
        %1575 = vrot.lane.b32.xlu0 %v1556, 127
        %v1576 = vpop.permute.xlu0 %1575
        %1577 = vrot.lane.b32.xlu0 %v1557, 127
        %v1578 = vpop.permute.xlu0 %1577
        %1579 = vrot.lane.b32.xlu0 %v1558, 127
        %v1580 = vpop.permute.xlu0 %1579
        %1581 = vrot.lane.b32.xlu0 %v1559, 127
        %v1582 = vpop.permute.xlu0 %1581
        %1583 = vrot.lane.b32.xlu0 %v1560, 127
        %v1584 = vpop.permute.xlu0 %1583
        %v1593 = vcombine.low %v1570, %v1578
        %v1594 = vcombine.high %v1570, %v1578
        %v1596 = vunpack.c.l.s4 1983009808
        %v1597 = vunpack.c.0.s8 %v1596
        %v1598 = vlaneseq
        %v1599 = vshrl.u32 %v1598, 7
        %v1600 = vsub.s32 %v1597, %v1599
        %v1601 = vrot.slane %v1593, %v1600
        %v1603 = vunpack.c.l.s4 1983009808
        %v1604 = vunpack.c.0.s8 %v1603
        %v1605 = vlaneseq
        %v1606 = vshrl.u32 %v1605, 7
        %v1607 = vsub.s32 %v1604, %v1606
        %v1608 = vrot.slane %v1594, %v1607
        %v1609 = vcombine.low %v1574, %v1582
        %v1610 = vcombine.high %v1574, %v1582
        %v1612 = vunpack.c.l.s4 1983009808
        %v1613 = vunpack.c.0.s8 %v1612
        %v1614 = vlaneseq
        %v1615 = vshrl.u32 %v1614, 7
        %v1616 = vsub.s32 %v1613, %v1615
        %v1617 = vrot.slane %v1609, %v1616
        %v1619 = vunpack.c.l.s4 1983009808
        %v1620 = vunpack.c.0.s8 %v1619
        %v1621 = vlaneseq
        %v1622 = vshrl.u32 %v1621, 7
        %v1623 = vsub.s32 %v1620, %v1622
        %v1624 = vrot.slane %v1610, %v1623
        %v1625 = vcombine.low %v1601, %v1617
        %v1626 = vcombine.high %v1601, %v1617
        %v1628 = vunpack.c.l.s4 1934713408
        %v1629 = vunpack.c.0.s8 %v1628
        %v1630 = vlaneseq
        %v1631 = vshrl.u32 %v1630, 7
        %v1632 = vsub.s32 %v1629, %v1631
        %v1633 = vrot.slane %v1625, %v1632
        %v1635 = vunpack.c.l.s4 1934713408
        %v1636 = vunpack.c.0.s8 %v1635
        %v1637 = vlaneseq
        %v1638 = vshrl.u32 %v1637, 7
        %v1639 = vsub.s32 %v1636, %v1638
        %v1640 = vrot.slane %v1626, %v1639
        %v1641 = vcombine.low %v1608, %v1624
        %v1642 = vcombine.high %v1608, %v1624
        %v1644 = vunpack.c.l.s4 1934713408
        %v1645 = vunpack.c.0.s8 %v1644
        %v1646 = vlaneseq
        %v1647 = vshrl.u32 %v1646, 7
        %v1648 = vsub.s32 %v1645, %v1647
        %v1649 = vrot.slane %v1641, %v1648
        %v1651 = vunpack.c.l.s4 1934713408
        %v1652 = vunpack.c.0.s8 %v1651
        %v1653 = vlaneseq
        %v1654 = vshrl.u32 %v1653, 7
        %v1655 = vsub.s32 %v1652, %v1654
        %v1656 = vrot.slane %v1642, %v1655
        %v1657 = vcombine.high %v1633, 0.0
        %v1658 = vcombine.high %v1640, 0.0
        %v1659 = vcombine.high %v1649, 0.0
        %v1660 = vcombine.high %v1656, 0.0
        %v1661 = vcombine.low %v1572, %v1580
        %v1662 = vcombine.high %v1572, %v1580
        %v1664 = vunpack.c.l.s4 1983009808
        %v1665 = vunpack.c.0.s8 %v1664
        %v1666 = vlaneseq
        %v1667 = vshrl.u32 %v1666, 7
        %v1668 = vsub.s32 %v1665, %v1667
        %v1669 = vrot.slane %v1661, %v1668
        %v1671 = vunpack.c.l.s4 1983009808
        %v1672 = vunpack.c.0.s8 %v1671
        %v1673 = vlaneseq
        %v1674 = vshrl.u32 %v1673, 7
        %v1675 = vsub.s32 %v1672, %v1674
        %v1676 = vrot.slane %v1662, %v1675
        %v1677 = vcombine.low %v1576, %v1584
        %v1678 = vcombine.high %v1576, %v1584
        %v1680 = vunpack.c.l.s4 1983009808
        %v1681 = vunpack.c.0.s8 %v1680
        %v1682 = vlaneseq
        %v1683 = vshrl.u32 %v1682, 7
        %v1684 = vsub.s32 %v1681, %v1683
        %v1685 = vrot.slane %v1677, %v1684
        %v1687 = vunpack.c.l.s4 1983009808
        %v1688 = vunpack.c.0.s8 %v1687
        %v1689 = vlaneseq
        %v1690 = vshrl.u32 %v1689, 7
        %v1691 = vsub.s32 %v1688, %v1690
        %v1692 = vrot.slane %v1678, %v1691
        %v1693 = vcombine.low %v1669, %v1685
        %v1694 = vcombine.high %v1669, %v1685
        %v1696 = vunpack.c.l.s4 1934713408
        %v1697 = vunpack.c.0.s8 %v1696
        %v1698 = vlaneseq
        %v1699 = vshrl.u32 %v1698, 7
        %v1700 = vsub.s32 %v1697, %v1699
        %v1701 = vrot.slane %v1693, %v1700
        %v1703 = vunpack.c.l.s4 1934713408
        %v1704 = vunpack.c.0.s8 %v1703
        %v1705 = vlaneseq
        %v1706 = vshrl.u32 %v1705, 7
        %v1707 = vsub.s32 %v1704, %v1706
        %v1708 = vrot.slane %v1694, %v1707
        %v1709 = vcombine.low %v1676, %v1692
        %v1710 = vcombine.high %v1676, %v1692
        %v1712 = vunpack.c.l.s4 1934713408
        %v1713 = vunpack.c.0.s8 %v1712
        %v1714 = vlaneseq
        %v1715 = vshrl.u32 %v1714, 7
        %v1716 = vsub.s32 %v1713, %v1715
        %v1717 = vrot.slane %v1709, %v1716
        %v1719 = vunpack.c.l.s4 1934713408
        %v1720 = vunpack.c.0.s8 %v1719
        %v1721 = vlaneseq
        %v1722 = vshrl.u32 %v1721, 7
        %v1723 = vsub.s32 %v1720, %v1722
        %v1724 = vrot.slane %v1710, %v1723
        %v1725 = vcombine.high %v1701, 0.0
        %v1726 = vcombine.high %v1708, 0.0
        %v1727 = vcombine.high %v1717, 0.0
        %v1728 = vcombine.high %v1724, 0.0
        %1730 = vrot.lane.b32.xlu0 %v1657, 16
        %v1731 = vpop.permute.xlu0 %1730
        %1734 = vrot.lane.b32.xlu0 %v1640, 32
        %v1735 = vpop.permute.xlu0 %1734
        %1738 = vrot.lane.b32.xlu0 %v1658, 48
        %v1739 = vpop.permute.xlu0 %1738
        %1742 = vrot.lane.b32.xlu0 %v1649, 64
        %v1743 = vpop.permute.xlu0 %1742
        %1746 = vrot.lane.b32.xlu0 %v1659, 80
        %v1747 = vpop.permute.xlu0 %1746
        %1750 = vrot.lane.b32.xlu0 %v1656, 96
        %v1751 = vpop.permute.xlu0 %1750
        %1754 = vrot.lane.b32.xlu0 %v1660, 112
        %v1755 = vpop.permute.xlu0 %1754
        %1758 = vrot.lane.b32.xlu0 %v1725, 16
        %v1759 = vpop.permute.xlu0 %1758
        %1762 = vrot.lane.b32.xlu0 %v1708, 32
        %v1763 = vpop.permute.xlu0 %1762
        %1766 = vrot.lane.b32.xlu0 %v1726, 48
        %v1767 = vpop.permute.xlu0 %1766
        %1770 = vrot.lane.b32.xlu0 %v1717, 64
        %v1771 = vpop.permute.xlu0 %1770
        %1774 = vrot.lane.b32.xlu0 %v1727, 80
        %v1775 = vpop.permute.xlu0 %1774
        %1778 = vrot.lane.b32.xlu0 %v1724, 96
        %v1779 = vpop.permute.xlu0 %1778
        %1782 = vrot.lane.b32.xlu0 %v1728, 112
        %v1783 = vpop.permute.xlu0 %1782
        %v1785 = vsel %vm496, %v1633, %v1731
        %v1786 = vsel %vm498, %v1785, %v1735
        %v1787 = vsel %vm500, %v1786, %v1739
        %v1788 = vsel %vm502, %v1787, %v1743
        %v1789 = vsel %vm504, %v1788, %v1747
        %v1790 = vsel %vm506, %v1789, %v1751
        %v1791 = vsel %vm508, %v1790, %v1755
        %v1792 = vsel %vm496, %v1701, %v1759
        %v1793 = vsel %vm498, %v1792, %v1763
        %v1794 = vsel %vm500, %v1793, %v1767
        %v1795 = vsel %vm502, %v1794, %v1771
        %v1796 = vsel %vm504, %v1795, %v1775
        %v1797 = vsel %vm506, %v1796, %v1779
        %v1798 = vsel %vm508, %v1797, %v1783
        %v1800 = vsel %vm517, %v289, 0
        %v1803 = vsel %vm521, %v1791, 0
        %v1806 = vsel %vm521, %v1798, 0
        %1808 = vmatprep.subr.mxu0 %v1806
        %1809 = vmatpush1.msra.mxu0 %v1803
        %1810 = vmatprep.subr.mxu0 0.0
        %1811 = vmatpush1.msra.mxu0 0.0
        %1812 = vmatprep.subr.mxu0 0.0
        %1813 = vmatpush1.msra.mxu0 0.0
        %1814 = vmatprep.subr.mxu0 0.0
        %1815 = vmatpush1.msra.mxu0 0.0
        %1816 = vmatprep.subr.mxu0 0.0
        %1817 = vmatpush1.msra.mxu0 0.0
        %1818 = vmatprep.subr.mxu0 0.0
        %1819 = vmatpush1.msra.mxu0 0.0
        %1820 = vmatprep.subr.mxu0 0.0
        %1821 = vmatpush1.msra.mxu0 0.0
        %1822 = vmatprep.subr.mxu0 0.0
        %1823 = vmatpush1.msra.mxu0 0.0
        %1824 = vmatprep.subr.mxu0 0.0
        %1825 = vmatpush1.msra.mxu0 0.0
        %1826 = vmatprep.subr.mxu0 0.0
        %1827 = vmatpush1.msra.mxu0 0.0
        %1828 = vmatprep.subr.mxu0 0.0
        %1829 = vmatpush1.msra.mxu0 0.0
        %1830 = vmatprep.subr.mxu0 0.0
        %1831 = vmatpush1.msra.mxu0 0.0
        %1832 = vmatprep.subr.mxu0 0.0
        %1833 = vmatpush1.msra.mxu0 0.0
        %1834 = vmatprep.subr.mxu0 0.0
        %1835 = vmatpush1.msra.mxu0 0.0
        %1836 = vmatprep.subr.mxu0 0.0
        %1837 = vmatpush1.msra.mxu0 0.0
        %1838 = vmatprep.subr.mxu0 0.0
        %1839 = vmatpush1.msra.mxu0 0.0
        %1840 = vmatprep.subr.mxu0 0.0
        %1841 = vmatpush1.msra.mxu0 0.0
        %1842 = vmatprep.subr.mxu0 0.0
        %1843 = vmatpush1.msra.mxu0 0.0
        %1844 = vmatprep.subr.mxu0 0.0
        %1845 = vmatpush1.msra.mxu0 0.0
        %1846 = vmatprep.subr.mxu0 0.0
        %1847 = vmatpush1.msra.mxu0 0.0
        %1848 = vmatprep.subr.mxu0 0.0
        %1849 = vmatpush1.msra.mxu0 0.0
        %1850 = vmatprep.subr.mxu0 0.0
        %1851 = vmatpush1.msra.mxu0 0.0
        %1852 = vmatprep.subr.mxu0 0.0
        %1853 = vmatpush1.msra.mxu0 0.0
        %1854 = vmatprep.subr.mxu0 0.0
        %1855 = vmatpush1.msra.mxu0 0.0
        %1856 = vmatprep.subr.mxu0 0.0
        %1857 = vmatpush1.msra.mxu0 0.0
        %1858 = vmatprep.subr.mxu0 0.0
        %1859 = vmatpush1.msra.mxu0 0.0
        %1860 = vmatprep.subr.mxu0 0.0
        %1861 = vmatpush1.msra.mxu0 0.0
        %1862 = vmatprep.subr.mxu0 0.0
        %1863 = vmatpush1.msra.mxu0 0.0
        %1864 = vmatprep.subr.mxu0 0.0
        %1865 = vmatpush1.msra.mxu0 0.0
        %1866 = vmatprep.subr.mxu0 0.0
        %1867 = vmatpush1.msra.mxu0 0.0
        %1868 = vmatprep.subr.mxu0 0.0
        %1869 = vmatpush1.msra.mxu0 0.0
        %1870 = vmatprep.subr.mxu0 0.0
        %1871 = vmatpush1.msra.mxu0 0.0
        %1872 = vmatprep.mubr.f32.mxu0 0.0
        %1873 = vmatmul.mubr.f32.gmra.mrb[0].mxu0 %v1800
        %v1874 = vpop.f32.mrb[0].mxu0
        %v1875 = vadd.f32 0.0, %v1874
        %v1876 = vpop.f32.mrb[0].mxu0
        %v1877 = vadd.f32 0.0, %v1876
        %1878 = vdwg.mxu0
        %v1879 = vadd.f32 %v1551, %v1875
        %v1880 = vadd.f32 %v1552, %v1877
        %v1881 = vld [vmem:[%s255 + $0x1] sm:$0xff]
        %v1882 = vld [vmem:[%s255 + $0x9] sm:$0xff]
        %v1883 = vld [vmem:[%s255 + $0x19] sm:$0xff]
        %v1884 = vld [vmem:[%s255 + $0x21] sm:$0xff]
        %v1885 = vld [vmem:[%s255 + $0x31] sm:$0xff]
        %v1886 = vld [vmem:[%s255 + $0x39] sm:$0xff]
        %v1887 = vld [vmem:[%s255 + $0x49] sm:$0xff]
        %v1888 = vld [vmem:[%s255 + $0x51] sm:$0xff]
        %1897 = vrot.lane.b32.xlu0 %v1881, 126
        %v1898 = vpop.permute.xlu0 %1897
        %1899 = vrot.lane.b32.xlu0 %v1882, 126
        %v1900 = vpop.permute.xlu0 %1899
        %1901 = vrot.lane.b32.xlu0 %v1883, 126
        %v1902 = vpop.permute.xlu0 %1901
        %1903 = vrot.lane.b32.xlu0 %v1884, 126
        %v1904 = vpop.permute.xlu0 %1903
        %1905 = vrot.lane.b32.xlu0 %v1885, 126
        %v1906 = vpop.permute.xlu0 %1905
        %1907 = vrot.lane.b32.xlu0 %v1886, 126
        %v1908 = vpop.permute.xlu0 %1907
        %1909 = vrot.lane.b32.xlu0 %v1887, 126
        %v1910 = vpop.permute.xlu0 %1909
        %1911 = vrot.lane.b32.xlu0 %v1888, 126
        %v1912 = vpop.permute.xlu0 %1911
        %v1921 = vcombine.low %v1898, %v1906
        %v1922 = vcombine.high %v1898, %v1906
        %v1924 = vunpack.c.l.s4 1983009808
        %v1925 = vunpack.c.0.s8 %v1924
        %v1926 = vlaneseq
        %v1927 = vshrl.u32 %v1926, 7
        %v1928 = vsub.s32 %v1925, %v1927
        %v1929 = vrot.slane %v1921, %v1928
        %v1931 = vunpack.c.l.s4 1983009808
        %v1932 = vunpack.c.0.s8 %v1931
        %v1933 = vlaneseq
        %v1934 = vshrl.u32 %v1933, 7
        %v1935 = vsub.s32 %v1932, %v1934
        %v1936 = vrot.slane %v1922, %v1935
        %v1937 = vcombine.low %v1902, %v1910
        %v1938 = vcombine.high %v1902, %v1910
        %v1940 = vunpack.c.l.s4 1983009808
        %v1941 = vunpack.c.0.s8 %v1940
        %v1942 = vlaneseq
        %v1943 = vshrl.u32 %v1942, 7
        %v1944 = vsub.s32 %v1941, %v1943
        %v1945 = vrot.slane %v1937, %v1944
        %v1947 = vunpack.c.l.s4 1983009808
        %v1948 = vunpack.c.0.s8 %v1947
        %v1949 = vlaneseq
        %v1950 = vshrl.u32 %v1949, 7
        %v1951 = vsub.s32 %v1948, %v1950
        %v1952 = vrot.slane %v1938, %v1951
        %v1953 = vcombine.low %v1929, %v1945
        %v1954 = vcombine.high %v1929, %v1945
        %v1956 = vunpack.c.l.s4 1934713408
        %v1957 = vunpack.c.0.s8 %v1956
        %v1958 = vlaneseq
        %v1959 = vshrl.u32 %v1958, 7
        %v1960 = vsub.s32 %v1957, %v1959
        %v1961 = vrot.slane %v1953, %v1960
        %v1963 = vunpack.c.l.s4 1934713408
        %v1964 = vunpack.c.0.s8 %v1963
        %v1965 = vlaneseq
        %v1966 = vshrl.u32 %v1965, 7
        %v1967 = vsub.s32 %v1964, %v1966
        %v1968 = vrot.slane %v1954, %v1967
        %v1969 = vcombine.low %v1936, %v1952
        %v1970 = vcombine.high %v1936, %v1952
        %v1972 = vunpack.c.l.s4 1934713408
        %v1973 = vunpack.c.0.s8 %v1972
        %v1974 = vlaneseq
        %v1975 = vshrl.u32 %v1974, 7
        %v1976 = vsub.s32 %v1973, %v1975
        %v1977 = vrot.slane %v1969, %v1976
        %v1979 = vunpack.c.l.s4 1934713408
        %v1980 = vunpack.c.0.s8 %v1979
        %v1981 = vlaneseq
        %v1982 = vshrl.u32 %v1981, 7
        %v1983 = vsub.s32 %v1980, %v1982
        %v1984 = vrot.slane %v1970, %v1983
        %v1985 = vcombine.high %v1961, 0.0
        %v1986 = vcombine.high %v1968, 0.0
        %v1987 = vcombine.high %v1977, 0.0
        %v1988 = vcombine.high %v1984, 0.0
        %v1989 = vcombine.low %v1900, %v1908
        %v1990 = vcombine.high %v1900, %v1908
        %v1992 = vunpack.c.l.s4 1983009808
        %v1993 = vunpack.c.0.s8 %v1992
        %v1994 = vlaneseq
        %v1995 = vshrl.u32 %v1994, 7
        %v1996 = vsub.s32 %v1993, %v1995
        %v1997 = vrot.slane %v1989, %v1996
        %v1999 = vunpack.c.l.s4 1983009808
        %v2000 = vunpack.c.0.s8 %v1999
        %v2001 = vlaneseq
        %v2002 = vshrl.u32 %v2001, 7
        %v2003 = vsub.s32 %v2000, %v2002
        %v2004 = vrot.slane %v1990, %v2003
        %v2005 = vcombine.low %v1904, %v1912
        %v2006 = vcombine.high %v1904, %v1912
        %v2008 = vunpack.c.l.s4 1983009808
        %v2009 = vunpack.c.0.s8 %v2008
        %v2010 = vlaneseq
        %v2011 = vshrl.u32 %v2010, 7
        %v2012 = vsub.s32 %v2009, %v2011
        %v2013 = vrot.slane %v2005, %v2012
        %v2015 = vunpack.c.l.s4 1983009808
        %v2016 = vunpack.c.0.s8 %v2015
        %v2017 = vlaneseq
        %v2018 = vshrl.u32 %v2017, 7
        %v2019 = vsub.s32 %v2016, %v2018
        %v2020 = vrot.slane %v2006, %v2019
        %v2021 = vcombine.low %v1997, %v2013
        %v2022 = vcombine.high %v1997, %v2013
        %v2024 = vunpack.c.l.s4 1934713408
        %v2025 = vunpack.c.0.s8 %v2024
        %v2026 = vlaneseq
        %v2027 = vshrl.u32 %v2026, 7
        %v2028 = vsub.s32 %v2025, %v2027
        %v2029 = vrot.slane %v2021, %v2028
        %v2031 = vunpack.c.l.s4 1934713408
        %v2032 = vunpack.c.0.s8 %v2031
        %v2033 = vlaneseq
        %v2034 = vshrl.u32 %v2033, 7
        %v2035 = vsub.s32 %v2032, %v2034
        %v2036 = vrot.slane %v2022, %v2035
        %v2037 = vcombine.low %v2004, %v2020
        %v2038 = vcombine.high %v2004, %v2020
        %v2040 = vunpack.c.l.s4 1934713408
        %v2041 = vunpack.c.0.s8 %v2040
        %v2042 = vlaneseq
        %v2043 = vshrl.u32 %v2042, 7
        %v2044 = vsub.s32 %v2041, %v2043
        %v2045 = vrot.slane %v2037, %v2044
        %v2047 = vunpack.c.l.s4 1934713408
        %v2048 = vunpack.c.0.s8 %v2047
        %v2049 = vlaneseq
        %v2050 = vshrl.u32 %v2049, 7
        %v2051 = vsub.s32 %v2048, %v2050
        %v2052 = vrot.slane %v2038, %v2051
        %v2053 = vcombine.high %v2029, 0.0
        %v2054 = vcombine.high %v2036, 0.0
        %v2055 = vcombine.high %v2045, 0.0
        %v2056 = vcombine.high %v2052, 0.0
        %2058 = vrot.lane.b32.xlu0 %v1985, 16
        %v2059 = vpop.permute.xlu0 %2058
        %2062 = vrot.lane.b32.xlu0 %v1968, 32
        %v2063 = vpop.permute.xlu0 %2062
        %2066 = vrot.lane.b32.xlu0 %v1986, 48
        %v2067 = vpop.permute.xlu0 %2066
        %2070 = vrot.lane.b32.xlu0 %v1977, 64
        %v2071 = vpop.permute.xlu0 %2070
        %2074 = vrot.lane.b32.xlu0 %v1987, 80
        %v2075 = vpop.permute.xlu0 %2074
        %2078 = vrot.lane.b32.xlu0 %v1984, 96
        %v2079 = vpop.permute.xlu0 %2078
        %2082 = vrot.lane.b32.xlu0 %v1988, 112
        %v2083 = vpop.permute.xlu0 %2082
        %2086 = vrot.lane.b32.xlu0 %v2053, 16
        %v2087 = vpop.permute.xlu0 %2086
        %2090 = vrot.lane.b32.xlu0 %v2036, 32
        %v2091 = vpop.permute.xlu0 %2090
        %2094 = vrot.lane.b32.xlu0 %v2054, 48
        %v2095 = vpop.permute.xlu0 %2094
        %2098 = vrot.lane.b32.xlu0 %v2045, 64
        %v2099 = vpop.permute.xlu0 %2098
        %2102 = vrot.lane.b32.xlu0 %v2055, 80
        %v2103 = vpop.permute.xlu0 %2102
        %2106 = vrot.lane.b32.xlu0 %v2052, 96
        %v2107 = vpop.permute.xlu0 %2106
        %2110 = vrot.lane.b32.xlu0 %v2056, 112
        %v2111 = vpop.permute.xlu0 %2110
        %v2113 = vsel %vm496, %v1961, %v2059
        %v2114 = vsel %vm498, %v2113, %v2063
        %v2115 = vsel %vm500, %v2114, %v2067
        %v2116 = vsel %vm502, %v2115, %v2071
        %v2117 = vsel %vm504, %v2116, %v2075
        %v2118 = vsel %vm506, %v2117, %v2079
        %v2119 = vsel %vm508, %v2118, %v2083
        %v2120 = vsel %vm496, %v2029, %v2087
        %v2121 = vsel %vm498, %v2120, %v2091
        %v2122 = vsel %vm500, %v2121, %v2095
        %v2123 = vsel %vm502, %v2122, %v2099
        %v2124 = vsel %vm504, %v2123, %v2103
        %v2125 = vsel %vm506, %v2124, %v2107
        %v2126 = vsel %vm508, %v2125, %v2111
        %v2128 = vsel %vm517, %v290, 0
        %v2131 = vsel %vm521, %v2119, 0
        %v2134 = vsel %vm521, %v2126, 0
        %2136 = vmatprep.subr.mxu0 %v2134
        %2137 = vmatpush1.msra.mxu0 %v2131
        %2138 = vmatprep.subr.mxu0 0.0
        %2139 = vmatpush1.msra.mxu0 0.0
        %2140 = vmatprep.subr.mxu0 0.0
        %2141 = vmatpush1.msra.mxu0 0.0
        %2142 = vmatprep.subr.mxu0 0.0
        %2143 = vmatpush1.msra.mxu0 0.0
        %2144 = vmatprep.subr.mxu0 0.0
        %2145 = vmatpush1.msra.mxu0 0.0
        %2146 = vmatprep.subr.mxu0 0.0
        %2147 = vmatpush1.msra.mxu0 0.0
        %2148 = vmatprep.subr.mxu0 0.0
        %2149 = vmatpush1.msra.mxu0 0.0
        %2150 = vmatprep.subr.mxu0 0.0
        %2151 = vmatpush1.msra.mxu0 0.0
        %2152 = vmatprep.subr.mxu0 0.0
        %2153 = vmatpush1.msra.mxu0 0.0
        %2154 = vmatprep.subr.mxu0 0.0
        %2155 = vmatpush1.msra.mxu0 0.0
        %2156 = vmatprep.subr.mxu0 0.0
        %2157 = vmatpush1.msra.mxu0 0.0
        %2158 = vmatprep.subr.mxu0 0.0
        %2159 = vmatpush1.msra.mxu0 0.0
        %2160 = vmatprep.subr.mxu0 0.0
        %2161 = vmatpush1.msra.mxu0 0.0
        %2162 = vmatprep.subr.mxu0 0.0
        %2163 = vmatpush1.msra.mxu0 0.0
        %2164 = vmatprep.subr.mxu0 0.0
        %2165 = vmatpush1.msra.mxu0 0.0
        %2166 = vmatprep.subr.mxu0 0.0
        %2167 = vmatpush1.msra.mxu0 0.0
        %2168 = vmatprep.subr.mxu0 0.0
        %2169 = vmatpush1.msra.mxu0 0.0
        %2170 = vmatprep.subr.mxu0 0.0
        %2171 = vmatpush1.msra.mxu0 0.0
        %2172 = vmatprep.subr.mxu0 0.0
        %2173 = vmatpush1.msra.mxu0 0.0
        %2174 = vmatprep.subr.mxu0 0.0
        %2175 = vmatpush1.msra.mxu0 0.0
        %2176 = vmatprep.subr.mxu0 0.0
        %2177 = vmatpush1.msra.mxu0 0.0
        %2178 = vmatprep.subr.mxu0 0.0
        %2179 = vmatpush1.msra.mxu0 0.0
        %2180 = vmatprep.subr.mxu0 0.0
        %2181 = vmatpush1.msra.mxu0 0.0
        %2182 = vmatprep.subr.mxu0 0.0
        %2183 = vmatpush1.msra.mxu0 0.0
        %2184 = vmatprep.subr.mxu0 0.0
        %2185 = vmatpush1.msra.mxu0 0.0
        %2186 = vmatprep.subr.mxu0 0.0
        %2187 = vmatpush1.msra.mxu0 0.0
        %2188 = vmatprep.subr.mxu0 0.0
        %2189 = vmatpush1.msra.mxu0 0.0
        %2190 = vmatprep.subr.mxu0 0.0
        %2191 = vmatpush1.msra.mxu0 0.0
        %2192 = vmatprep.subr.mxu0 0.0
        %2193 = vmatpush1.msra.mxu0 0.0
        %2194 = vmatprep.subr.mxu0 0.0
        %2195 = vmatpush1.msra.mxu0 0.0
        %2196 = vmatprep.subr.mxu0 0.0
        %2197 = vmatpush1.msra.mxu0 0.0
        %2198 = vmatprep.subr.mxu0 0.0
        %2199 = vmatpush1.msra.mxu0 0.0
        %2200 = vmatprep.mubr.f32.mxu0 0.0
        %2201 = vmatmul.mubr.f32.gmra.mrb[0].mxu0 %v2128
        %v2202 = vpop.f32.mrb[0].mxu0
        %v2203 = vadd.f32 0.0, %v2202
        %v2204 = vpop.f32.mrb[0].mxu0
        %v2205 = vadd.f32 0.0, %v2204
        %2206 = vdwg.mxu0
        %v2207 = vadd.f32 %v1879, %v2203
        %v2208 = vadd.f32 %v1880, %v2205
        %v2209 = vld [vmem:[%s255 + $0x2] sm:$0xff]
        %v2210 = vld [vmem:[%s255 + $0xa] sm:$0xff]
        %v2211 = vld [vmem:[%s255 + $0x1a] sm:$0xff]
        %v2212 = vld [vmem:[%s255 + $0x22] sm:$0xff]
        %v2213 = vld [vmem:[%s255 + $0x32] sm:$0xff]
        %v2214 = vld [vmem:[%s255 + $0x3a] sm:$0xff]
        %v2215 = vld [vmem:[%s255 + $0x4a] sm:$0xff]
        %v2216 = vld [vmem:[%s255 + $0x52] sm:$0xff]
        %v2217 = vcombine.low %v2209, %v2213
        %v2218 = vcombine.high %v2209, %v2213
        %v2220 = vunpack.c.l.s4 1983009808
        %v2221 = vunpack.c.0.s8 %v2220
        %v2222 = vlaneseq
        %v2223 = vshrl.u32 %v2222, 7
        %v2224 = vsub.s32 %v2221, %v2223
        %v2225 = vrot.slane %v2217, %v2224
        %v2227 = vunpack.c.l.s4 1983009808
        %v2228 = vunpack.c.0.s8 %v2227
        %v2229 = vlaneseq
        %v2230 = vshrl.u32 %v2229, 7
        %v2231 = vsub.s32 %v2228, %v2230
        %v2232 = vrot.slane %v2218, %v2231
        %v2233 = vcombine.low %v2211, %v2215
        %v2234 = vcombine.high %v2211, %v2215
        %v2236 = vunpack.c.l.s4 1983009808
        %v2237 = vunpack.c.0.s8 %v2236
        %v2238 = vlaneseq
        %v2239 = vshrl.u32 %v2238, 7
        %v2240 = vsub.s32 %v2237, %v2239
        %v2241 = vrot.slane %v2233, %v2240
        %v2243 = vunpack.c.l.s4 1983009808
        %v2244 = vunpack.c.0.s8 %v2243
        %v2245 = vlaneseq
        %v2246 = vshrl.u32 %v2245, 7
        %v2247 = vsub.s32 %v2244, %v2246
        %v2248 = vrot.slane %v2234, %v2247
        %v2249 = vcombine.low %v2225, %v2241
        %v2250 = vcombine.high %v2225, %v2241
        %v2252 = vunpack.c.l.s4 1934713408
        %v2253 = vunpack.c.0.s8 %v2252
        %v2254 = vlaneseq
        %v2255 = vshrl.u32 %v2254, 7
        %v2256 = vsub.s32 %v2253, %v2255
        %v2257 = vrot.slane %v2249, %v2256
        %v2259 = vunpack.c.l.s4 1934713408
        %v2260 = vunpack.c.0.s8 %v2259
        %v2261 = vlaneseq
        %v2262 = vshrl.u32 %v2261, 7
        %v2263 = vsub.s32 %v2260, %v2262
        %v2264 = vrot.slane %v2250, %v2263
        %v2265 = vcombine.low %v2232, %v2248
        %v2266 = vcombine.high %v2232, %v2248
        %v2268 = vunpack.c.l.s4 1934713408
        %v2269 = vunpack.c.0.s8 %v2268
        %v2270 = vlaneseq
        %v2271 = vshrl.u32 %v2270, 7
        %v2272 = vsub.s32 %v2269, %v2271
        %v2273 = vrot.slane %v2265, %v2272
        %v2275 = vunpack.c.l.s4 1934713408
        %v2276 = vunpack.c.0.s8 %v2275
        %v2277 = vlaneseq
        %v2278 = vshrl.u32 %v2277, 7
        %v2279 = vsub.s32 %v2276, %v2278
        %v2280 = vrot.slane %v2266, %v2279
        %v2281 = vcombine.high %v2257, 0.0
        %v2282 = vcombine.high %v2264, 0.0
        %v2283 = vcombine.high %v2273, 0.0
        %v2284 = vcombine.high %v2280, 0.0
        %v2285 = vcombine.low %v2210, %v2214
        %v2286 = vcombine.high %v2210, %v2214
        %v2288 = vunpack.c.l.s4 1983009808
        %v2289 = vunpack.c.0.s8 %v2288
        %v2290 = vlaneseq
        %v2291 = vshrl.u32 %v2290, 7
        %v2292 = vsub.s32 %v2289, %v2291
        %v2293 = vrot.slane %v2285, %v2292
        %v2295 = vunpack.c.l.s4 1983009808
        %v2296 = vunpack.c.0.s8 %v2295
        %v2297 = vlaneseq
        %v2298 = vshrl.u32 %v2297, 7
        %v2299 = vsub.s32 %v2296, %v2298
        %v2300 = vrot.slane %v2286, %v2299
        %v2301 = vcombine.low %v2212, %v2216
        %v2302 = vcombine.high %v2212, %v2216
        %v2304 = vunpack.c.l.s4 1983009808
        %v2305 = vunpack.c.0.s8 %v2304
        %v2306 = vlaneseq
        %v2307 = vshrl.u32 %v2306, 7
        %v2308 = vsub.s32 %v2305, %v2307
        %v2309 = vrot.slane %v2301, %v2308
        %v2311 = vunpack.c.l.s4 1983009808
        %v2312 = vunpack.c.0.s8 %v2311
        %v2313 = vlaneseq
        %v2314 = vshrl.u32 %v2313, 7
        %v2315 = vsub.s32 %v2312, %v2314
        %v2316 = vrot.slane %v2302, %v2315
        %v2317 = vcombine.low %v2293, %v2309
        %v2318 = vcombine.high %v2293, %v2309
        %v2320 = vunpack.c.l.s4 1934713408
        %v2321 = vunpack.c.0.s8 %v2320
        %v2322 = vlaneseq
        %v2323 = vshrl.u32 %v2322, 7
        %v2324 = vsub.s32 %v2321, %v2323
        %v2325 = vrot.slane %v2317, %v2324
        %v2327 = vunpack.c.l.s4 1934713408
        %v2328 = vunpack.c.0.s8 %v2327
        %v2329 = vlaneseq
        %v2330 = vshrl.u32 %v2329, 7
        %v2331 = vsub.s32 %v2328, %v2330
        %v2332 = vrot.slane %v2318, %v2331
        %v2333 = vcombine.low %v2300, %v2316
        %v2334 = vcombine.high %v2300, %v2316
        %v2336 = vunpack.c.l.s4 1934713408
        %v2337 = vunpack.c.0.s8 %v2336
        %v2338 = vlaneseq
        %v2339 = vshrl.u32 %v2338, 7
        %v2340 = vsub.s32 %v2337, %v2339
        %v2341 = vrot.slane %v2333, %v2340
        %v2343 = vunpack.c.l.s4 1934713408
        %v2344 = vunpack.c.0.s8 %v2343
        %v2345 = vlaneseq
        %v2346 = vshrl.u32 %v2345, 7
        %v2347 = vsub.s32 %v2344, %v2346
        %v2348 = vrot.slane %v2334, %v2347
        %v2349 = vcombine.high %v2325, 0.0
        %v2350 = vcombine.high %v2332, 0.0
        %v2351 = vcombine.high %v2341, 0.0
        %v2352 = vcombine.high %v2348, 0.0
        %2354 = vrot.lane.b32.xlu0 %v2281, 16
        %v2355 = vpop.permute.xlu0 %2354
        %2358 = vrot.lane.b32.xlu0 %v2264, 32
        %v2359 = vpop.permute.xlu0 %2358
        %2362 = vrot.lane.b32.xlu0 %v2282, 48
        %v2363 = vpop.permute.xlu0 %2362
        %2366 = vrot.lane.b32.xlu0 %v2273, 64
        %v2367 = vpop.permute.xlu0 %2366
        %2370 = vrot.lane.b32.xlu0 %v2283, 80
        %v2371 = vpop.permute.xlu0 %2370
        %2374 = vrot.lane.b32.xlu0 %v2280, 96
        %v2375 = vpop.permute.xlu0 %2374
        %2378 = vrot.lane.b32.xlu0 %v2284, 112
        %v2379 = vpop.permute.xlu0 %2378
        %2382 = vrot.lane.b32.xlu0 %v2349, 16
        %v2383 = vpop.permute.xlu0 %2382
        %2386 = vrot.lane.b32.xlu0 %v2332, 32
        %v2387 = vpop.permute.xlu0 %2386
        %2390 = vrot.lane.b32.xlu0 %v2350, 48
        %v2391 = vpop.permute.xlu0 %2390
        %2394 = vrot.lane.b32.xlu0 %v2341, 64
        %v2395 = vpop.permute.xlu0 %2394
        %2398 = vrot.lane.b32.xlu0 %v2351, 80
        %v2399 = vpop.permute.xlu0 %2398
        %2402 = vrot.lane.b32.xlu0 %v2348, 96
        %v2403 = vpop.permute.xlu0 %2402
        %2406 = vrot.lane.b32.xlu0 %v2352, 112
        %v2407 = vpop.permute.xlu0 %2406
        %v2409 = vsel %vm496, %v2257, %v2355
        %v2410 = vsel %vm498, %v2409, %v2359
        %v2411 = vsel %vm500, %v2410, %v2363
        %v2412 = vsel %vm502, %v2411, %v2367
        %v2413 = vsel %vm504, %v2412, %v2371
        %v2414 = vsel %vm506, %v2413, %v2375
        %v2415 = vsel %vm508, %v2414, %v2379
        %v2416 = vsel %vm496, %v2325, %v2383
        %v2417 = vsel %vm498, %v2416, %v2387
        %v2418 = vsel %vm500, %v2417, %v2391
        %v2419 = vsel %vm502, %v2418, %v2395
        %v2420 = vsel %vm504, %v2419, %v2399
        %v2421 = vsel %vm506, %v2420, %v2403
        %v2422 = vsel %vm508, %v2421, %v2407
        %v2424 = vsel %vm517, %v291, 0
        %v2427 = vsel %vm521, %v2415, 0
        %v2430 = vsel %vm521, %v2422, 0
        %2432 = vmatprep.subr.mxu0 %v2430
        %2433 = vmatpush1.msra.mxu0 %v2427
        %2434 = vmatprep.subr.mxu0 0.0
        %2435 = vmatpush1.msra.mxu0 0.0
        %2436 = vmatprep.subr.mxu0 0.0
        %2437 = vmatpush1.msra.mxu0 0.0
        %2438 = vmatprep.subr.mxu0 0.0
        %2439 = vmatpush1.msra.mxu0 0.0
        %2440 = vmatprep.subr.mxu0 0.0
        %2441 = vmatpush1.msra.mxu0 0.0
        %2442 = vmatprep.subr.mxu0 0.0
        %2443 = vmatpush1.msra.mxu0 0.0
        %2444 = vmatprep.subr.mxu0 0.0
        %2445 = vmatpush1.msra.mxu0 0.0
        %2446 = vmatprep.subr.mxu0 0.0
        %2447 = vmatpush1.msra.mxu0 0.0
        %2448 = vmatprep.subr.mxu0 0.0
        %2449 = vmatpush1.msra.mxu0 0.0
        %2450 = vmatprep.subr.mxu0 0.0
        %2451 = vmatpush1.msra.mxu0 0.0
        %2452 = vmatprep.subr.mxu0 0.0
        %2453 = vmatpush1.msra.mxu0 0.0
        %2454 = vmatprep.subr.mxu0 0.0
        %2455 = vmatpush1.msra.mxu0 0.0
        %2456 = vmatprep.subr.mxu0 0.0
        %2457 = vmatpush1.msra.mxu0 0.0
        %2458 = vmatprep.subr.mxu0 0.0
        %2459 = vmatpush1.msra.mxu0 0.0
        %2460 = vmatprep.subr.mxu0 0.0
        %2461 = vmatpush1.msra.mxu0 0.0
        %2462 = vmatprep.subr.mxu0 0.0
        %2463 = vmatpush1.msra.mxu0 0.0
        %2464 = vmatprep.subr.mxu0 0.0
        %2465 = vmatpush1.msra.mxu0 0.0
        %2466 = vmatprep.subr.mxu0 0.0
        %2467 = vmatpush1.msra.mxu0 0.0
        %2468 = vmatprep.subr.mxu0 0.0
        %2469 = vmatpush1.msra.mxu0 0.0
        %2470 = vmatprep.subr.mxu0 0.0
        %2471 = vmatpush1.msra.mxu0 0.0
        %2472 = vmatprep.subr.mxu0 0.0
        %2473 = vmatpush1.msra.mxu0 0.0
        %2474 = vmatprep.subr.mxu0 0.0
        %2475 = vmatpush1.msra.mxu0 0.0
        %2476 = vmatprep.subr.mxu0 0.0
        %2477 = vmatpush1.msra.mxu0 0.0
        %2478 = vmatprep.subr.mxu0 0.0
        %2479 = vmatpush1.msra.mxu0 0.0
        %2480 = vmatprep.subr.mxu0 0.0
        %2481 = vmatpush1.msra.mxu0 0.0
        %2482 = vmatprep.subr.mxu0 0.0
        %2483 = vmatpush1.msra.mxu0 0.0
        %2484 = vmatprep.subr.mxu0 0.0
        %2485 = vmatpush1.msra.mxu0 0.0
        %2486 = vmatprep.subr.mxu0 0.0
        %2487 = vmatpush1.msra.mxu0 0.0
        %2488 = vmatprep.subr.mxu0 0.0
        %2489 = vmatpush1.msra.mxu0 0.0
        %2490 = vmatprep.subr.mxu0 0.0
        %2491 = vmatpush1.msra.mxu0 0.0
        %2492 = vmatprep.subr.mxu0 0.0
        %2493 = vmatpush1.msra.mxu0 0.0
        %2494 = vmatprep.subr.mxu0 0.0
        %2495 = vmatpush1.msra.mxu0 0.0
        %2496 = vmatprep.mubr.f32.mxu0 0.0
        %2497 = vmatmul.mubr.f32.gmra.mrb[0].mxu0 %v2424
        %v2498 = vpop.f32.mrb[0].mxu0
        %v2499 = vadd.f32 0.0, %v2498
        %v2500 = vpop.f32.mrb[0].mxu0
        %v2501 = vadd.f32 0.0, %v2500
        %2502 = vdwg.mxu0
        %v2503 = vadd.f32 %v2207, %v2499
        %v2504 = vadd.f32 %v2208, %v2501
        %v2505 = vld [vmem:[%s255 + $0x2] sm:$0xff]
        %v2506 = vld [vmem:[%s255 + $0xa] sm:$0xff]
        %v2507 = vld [vmem:[%s255 + $0x1a] sm:$0xff]
        %v2508 = vld [vmem:[%s255 + $0x22] sm:$0xff]
        %v2509 = vld [vmem:[%s255 + $0x32] sm:$0xff]
        %v2510 = vld [vmem:[%s255 + $0x3a] sm:$0xff]
        %v2511 = vld [vmem:[%s255 + $0x4a] sm:$0xff]
        %v2512 = vld [vmem:[%s255 + $0x52] sm:$0xff]
        %2521 = vrot.lane.b32.xlu0 %v2505, 127
        %v2522 = vpop.permute.xlu0 %2521
        %2523 = vrot.lane.b32.xlu0 %v2506, 127
        %v2524 = vpop.permute.xlu0 %2523
        %2525 = vrot.lane.b32.xlu0 %v2507, 127
        %v2526 = vpop.permute.xlu0 %2525
        %2527 = vrot.lane.b32.xlu0 %v2508, 127
        %v2528 = vpop.permute.xlu0 %2527
        %2529 = vrot.lane.b32.xlu0 %v2509, 127
        %v2530 = vpop.permute.xlu0 %2529
        %2531 = vrot.lane.b32.xlu0 %v2510, 127
        %v2532 = vpop.permute.xlu0 %2531
        %2533 = vrot.lane.b32.xlu0 %v2511, 127
        %v2534 = vpop.permute.xlu0 %2533
        %2535 = vrot.lane.b32.xlu0 %v2512, 127
        %v2536 = vpop.permute.xlu0 %2535
        %v2545 = vcombine.low %v2522, %v2530
        %v2546 = vcombine.high %v2522, %v2530
        %v2548 = vunpack.c.l.s4 1983009808
        %v2549 = vunpack.c.0.s8 %v2548
        %v2550 = vlaneseq
        %v2551 = vshrl.u32 %v2550, 7
        %v2552 = vsub.s32 %v2549, %v2551
        %v2553 = vrot.slane %v2545, %v2552
        %v2555 = vunpack.c.l.s4 1983009808
        %v2556 = vunpack.c.0.s8 %v2555
        %v2557 = vlaneseq
        %v2558 = vshrl.u32 %v2557, 7
        %v2559 = vsub.s32 %v2556, %v2558
        %v2560 = vrot.slane %v2546, %v2559
        %v2561 = vcombine.low %v2526, %v2534
        %v2562 = vcombine.high %v2526, %v2534
        %v2564 = vunpack.c.l.s4 1983009808
        %v2565 = vunpack.c.0.s8 %v2564
        %v2566 = vlaneseq
        %v2567 = vshrl.u32 %v2566, 7
        %v2568 = vsub.s32 %v2565, %v2567
        %v2569 = vrot.slane %v2561, %v2568
        %v2571 = vunpack.c.l.s4 1983009808
        %v2572 = vunpack.c.0.s8 %v2571
        %v2573 = vlaneseq
        %v2574 = vshrl.u32 %v2573, 7
        %v2575 = vsub.s32 %v2572, %v2574
        %v2576 = vrot.slane %v2562, %v2575
        %v2577 = vcombine.low %v2553, %v2569
        %v2578 = vcombine.high %v2553, %v2569
        %v2580 = vunpack.c.l.s4 1934713408
        %v2581 = vunpack.c.0.s8 %v2580
        %v2582 = vlaneseq
        %v2583 = vshrl.u32 %v2582, 7
        %v2584 = vsub.s32 %v2581, %v2583
        %v2585 = vrot.slane %v2577, %v2584
        %v2587 = vunpack.c.l.s4 1934713408
        %v2588 = vunpack.c.0.s8 %v2587
        %v2589 = vlaneseq
        %v2590 = vshrl.u32 %v2589, 7
        %v2591 = vsub.s32 %v2588, %v2590
        %v2592 = vrot.slane %v2578, %v2591
        %v2593 = vcombine.low %v2560, %v2576
        %v2594 = vcombine.high %v2560, %v2576
        %v2596 = vunpack.c.l.s4 1934713408
        %v2597 = vunpack.c.0.s8 %v2596
        %v2598 = vlaneseq
        %v2599 = vshrl.u32 %v2598, 7
        %v2600 = vsub.s32 %v2597, %v2599
        %v2601 = vrot.slane %v2593, %v2600
        %v2603 = vunpack.c.l.s4 1934713408
        %v2604 = vunpack.c.0.s8 %v2603
        %v2605 = vlaneseq
        %v2606 = vshrl.u32 %v2605, 7
        %v2607 = vsub.s32 %v2604, %v2606
        %v2608 = vrot.slane %v2594, %v2607
        %v2609 = vcombine.high %v2585, 0.0
        %v2610 = vcombine.high %v2592, 0.0
        %v2611 = vcombine.high %v2601, 0.0
        %v2612 = vcombine.high %v2608, 0.0
        %v2613 = vcombine.low %v2524, %v2532
        %v2614 = vcombine.high %v2524, %v2532
        %v2616 = vunpack.c.l.s4 1983009808
        %v2617 = vunpack.c.0.s8 %v2616
        %v2618 = vlaneseq
        %v2619 = vshrl.u32 %v2618, 7
        %v2620 = vsub.s32 %v2617, %v2619
        %v2621 = vrot.slane %v2613, %v2620
        %v2623 = vunpack.c.l.s4 1983009808
        %v2624 = vunpack.c.0.s8 %v2623
        %v2625 = vlaneseq
        %v2626 = vshrl.u32 %v2625, 7
        %v2627 = vsub.s32 %v2624, %v2626
        %v2628 = vrot.slane %v2614, %v2627
        %v2629 = vcombine.low %v2528, %v2536
        %v2630 = vcombine.high %v2528, %v2536
        %v2632 = vunpack.c.l.s4 1983009808
        %v2633 = vunpack.c.0.s8 %v2632
        %v2634 = vlaneseq
        %v2635 = vshrl.u32 %v2634, 7
        %v2636 = vsub.s32 %v2633, %v2635
        %v2637 = vrot.slane %v2629, %v2636
        %v2639 = vunpack.c.l.s4 1983009808
        %v2640 = vunpack.c.0.s8 %v2639
        %v2641 = vlaneseq
        %v2642 = vshrl.u32 %v2641, 7
        %v2643 = vsub.s32 %v2640, %v2642
        %v2644 = vrot.slane %v2630, %v2643
        %v2645 = vcombine.low %v2621, %v2637
        %v2646 = vcombine.high %v2621, %v2637
        %v2648 = vunpack.c.l.s4 1934713408
        %v2649 = vunpack.c.0.s8 %v2648
        %v2650 = vlaneseq
        %v2651 = vshrl.u32 %v2650, 7
        %v2652 = vsub.s32 %v2649, %v2651
        %v2653 = vrot.slane %v2645, %v2652
        %v2655 = vunpack.c.l.s4 1934713408
        %v2656 = vunpack.c.0.s8 %v2655
        %v2657 = vlaneseq
        %v2658 = vshrl.u32 %v2657, 7
        %v2659 = vsub.s32 %v2656, %v2658
        %v2660 = vrot.slane %v2646, %v2659
        %v2661 = vcombine.low %v2628, %v2644
        %v2662 = vcombine.high %v2628, %v2644
        %v2664 = vunpack.c.l.s4 1934713408
        %v2665 = vunpack.c.0.s8 %v2664
        %v2666 = vlaneseq
        %v2667 = vshrl.u32 %v2666, 7
        %v2668 = vsub.s32 %v2665, %v2667
        %v2669 = vrot.slane %v2661, %v2668
        %v2671 = vunpack.c.l.s4 1934713408
        %v2672 = vunpack.c.0.s8 %v2671
        %v2673 = vlaneseq
        %v2674 = vshrl.u32 %v2673, 7
        %v2675 = vsub.s32 %v2672, %v2674
        %v2676 = vrot.slane %v2662, %v2675
        %v2677 = vcombine.high %v2653, 0.0
        %v2678 = vcombine.high %v2660, 0.0
        %v2679 = vcombine.high %v2669, 0.0
        %v2680 = vcombine.high %v2676, 0.0
        %2682 = vrot.lane.b32.xlu0 %v2609, 16
        %v2683 = vpop.permute.xlu0 %2682
        %2686 = vrot.lane.b32.xlu0 %v2592, 32
        %v2687 = vpop.permute.xlu0 %2686
        %2690 = vrot.lane.b32.xlu0 %v2610, 48
        %v2691 = vpop.permute.xlu0 %2690
        %2694 = vrot.lane.b32.xlu0 %v2601, 64
        %v2695 = vpop.permute.xlu0 %2694
        %2698 = vrot.lane.b32.xlu0 %v2611, 80
        %v2699 = vpop.permute.xlu0 %2698
        %2702 = vrot.lane.b32.xlu0 %v2608, 96
        %v2703 = vpop.permute.xlu0 %2702
        %2706 = vrot.lane.b32.xlu0 %v2612, 112
        %v2707 = vpop.permute.xlu0 %2706
        %2710 = vrot.lane.b32.xlu0 %v2677, 16
        %v2711 = vpop.permute.xlu0 %2710
        %2714 = vrot.lane.b32.xlu0 %v2660, 32
        %v2715 = vpop.permute.xlu0 %2714
        %2718 = vrot.lane.b32.xlu0 %v2678, 48
        %v2719 = vpop.permute.xlu0 %2718
        %2722 = vrot.lane.b32.xlu0 %v2669, 64
        %v2723 = vpop.permute.xlu0 %2722
        %2726 = vrot.lane.b32.xlu0 %v2679, 80
        %v2727 = vpop.permute.xlu0 %2726
        %2730 = vrot.lane.b32.xlu0 %v2676, 96
        %v2731 = vpop.permute.xlu0 %2730
        %2734 = vrot.lane.b32.xlu0 %v2680, 112
        %v2735 = vpop.permute.xlu0 %2734
        %v2737 = vsel %vm496, %v2585, %v2683
        %v2738 = vsel %vm498, %v2737, %v2687
        %v2739 = vsel %vm500, %v2738, %v2691
        %v2740 = vsel %vm502, %v2739, %v2695
        %v2741 = vsel %vm504, %v2740, %v2699
        %v2742 = vsel %vm506, %v2741, %v2703
        %v2743 = vsel %vm508, %v2742, %v2707
        %v2744 = vsel %vm496, %v2653, %v2711
        %v2745 = vsel %vm498, %v2744, %v2715
        %v2746 = vsel %vm500, %v2745, %v2719
        %v2747 = vsel %vm502, %v2746, %v2723
        %v2748 = vsel %vm504, %v2747, %v2727
        %v2749 = vsel %vm506, %v2748, %v2731
        %v2750 = vsel %vm508, %v2749, %v2735
        %v2752 = vsel %vm517, %v292, 0
        %v2755 = vsel %vm521, %v2743, 0
        %v2758 = vsel %vm521, %v2750, 0
        %2760 = vmatprep.subr.mxu0 %v2758
        %2761 = vmatpush1.msra.mxu0 %v2755
        %2762 = vmatprep.subr.mxu0 0.0
        %2763 = vmatpush1.msra.mxu0 0.0
        %2764 = vmatprep.subr.mxu0 0.0
        %2765 = vmatpush1.msra.mxu0 0.0
        %2766 = vmatprep.subr.mxu0 0.0
        %2767 = vmatpush1.msra.mxu0 0.0
        %2768 = vmatprep.subr.mxu0 0.0
        %2769 = vmatpush1.msra.mxu0 0.0
        %2770 = vmatprep.subr.mxu0 0.0
        %2771 = vmatpush1.msra.mxu0 0.0
        %2772 = vmatprep.subr.mxu0 0.0
        %2773 = vmatpush1.msra.mxu0 0.0
        %2774 = vmatprep.subr.mxu0 0.0
        %2775 = vmatpush1.msra.mxu0 0.0
        %2776 = vmatprep.subr.mxu0 0.0
        %2777 = vmatpush1.msra.mxu0 0.0
        %2778 = vmatprep.subr.mxu0 0.0
        %2779 = vmatpush1.msra.mxu0 0.0
        %2780 = vmatprep.subr.mxu0 0.0
        %2781 = vmatpush1.msra.mxu0 0.0
        %2782 = vmatprep.subr.mxu0 0.0
        %2783 = vmatpush1.msra.mxu0 0.0
        %2784 = vmatprep.subr.mxu0 0.0
        %2785 = vmatpush1.msra.mxu0 0.0
        %2786 = vmatprep.subr.mxu0 0.0
        %2787 = vmatpush1.msra.mxu0 0.0
        %2788 = vmatprep.subr.mxu0 0.0
        %2789 = vmatpush1.msra.mxu0 0.0
        %2790 = vmatprep.subr.mxu0 0.0
        %2791 = vmatpush1.msra.mxu0 0.0
        %2792 = vmatprep.subr.mxu0 0.0
        %2793 = vmatpush1.msra.mxu0 0.0
        %2794 = vmatprep.subr.mxu0 0.0
        %2795 = vmatpush1.msra.mxu0 0.0
        %2796 = vmatprep.subr.mxu0 0.0
        %2797 = vmatpush1.msra.mxu0 0.0
        %2798 = vmatprep.subr.mxu0 0.0
        %2799 = vmatpush1.msra.mxu0 0.0
        %2800 = vmatprep.subr.mxu0 0.0
        %2801 = vmatpush1.msra.mxu0 0.0
        %2802 = vmatprep.subr.mxu0 0.0
        %2803 = vmatpush1.msra.mxu0 0.0
        %2804 = vmatprep.subr.mxu0 0.0
        %2805 = vmatpush1.msra.mxu0 0.0
        %2806 = vmatprep.subr.mxu0 0.0
        %2807 = vmatpush1.msra.mxu0 0.0
        %2808 = vmatprep.subr.mxu0 0.0
        %2809 = vmatpush1.msra.mxu0 0.0
        %2810 = vmatprep.subr.mxu0 0.0
        %2811 = vmatpush1.msra.mxu0 0.0
        %2812 = vmatprep.subr.mxu0 0.0
        %2813 = vmatpush1.msra.mxu0 0.0
        %2814 = vmatprep.subr.mxu0 0.0
        %2815 = vmatpush1.msra.mxu0 0.0
        %2816 = vmatprep.subr.mxu0 0.0
        %2817 = vmatpush1.msra.mxu0 0.0
        %2818 = vmatprep.subr.mxu0 0.0
        %2819 = vmatpush1.msra.mxu0 0.0
        %2820 = vmatprep.subr.mxu0 0.0
        %2821 = vmatpush1.msra.mxu0 0.0
        %2822 = vmatprep.subr.mxu0 0.0
        %2823 = vmatpush1.msra.mxu0 0.0
        %2824 = vmatprep.mubr.f32.mxu0 0.0
        %2825 = vmatmul.mubr.f32.gmra.mrb[0].mxu0 %v2752
        %v2826 = vpop.f32.mrb[0].mxu0
        %v2827 = vadd.f32 0.0, %v2826
        %v2828 = vpop.f32.mrb[0].mxu0
        %v2829 = vadd.f32 0.0, %v2828
        %2830 = vdwg.mxu0
        %v2831 = vadd.f32 %v2503, %v2827
        %v2832 = vadd.f32 %v2504, %v2829
        %v2833 = vld [vmem:[%s255 + $0x2] sm:$0xff]
        %v2834 = vld [vmem:[%s255 + $0xa] sm:$0xff]
        %v2835 = vld [vmem:[%s255 + $0x1a] sm:$0xff]
        %v2836 = vld [vmem:[%s255 + $0x22] sm:$0xff]
        %v2837 = vld [vmem:[%s255 + $0x32] sm:$0xff]
        %v2838 = vld [vmem:[%s255 + $0x3a] sm:$0xff]
        %v2839 = vld [vmem:[%s255 + $0x4a] sm:$0xff]
        %v2840 = vld [vmem:[%s255 + $0x52] sm:$0xff]
        %2849 = vrot.lane.b32.xlu0 %v2833, 126
        %v2850 = vpop.permute.xlu0 %2849
        %2851 = vrot.lane.b32.xlu0 %v2834, 126
        %v2852 = vpop.permute.xlu0 %2851
        %2853 = vrot.lane.b32.xlu0 %v2835, 126
        %v2854 = vpop.permute.xlu0 %2853
        %2855 = vrot.lane.b32.xlu0 %v2836, 126
        %v2856 = vpop.permute.xlu0 %2855
        %2857 = vrot.lane.b32.xlu0 %v2837, 126
        %v2858 = vpop.permute.xlu0 %2857
        %2859 = vrot.lane.b32.xlu0 %v2838, 126
        %v2860 = vpop.permute.xlu0 %2859
        %2861 = vrot.lane.b32.xlu0 %v2839, 126
        %v2862 = vpop.permute.xlu0 %2861
        %2863 = vrot.lane.b32.xlu0 %v2840, 126
        %v2864 = vpop.permute.xlu0 %2863
        %v2873 = vcombine.low %v2850, %v2858
        %v2874 = vcombine.high %v2850, %v2858
        %v2876 = vunpack.c.l.s4 1983009808
        %v2877 = vunpack.c.0.s8 %v2876
        %v2878 = vlaneseq
        %v2879 = vshrl.u32 %v2878, 7
        %v2880 = vsub.s32 %v2877, %v2879
        %v2881 = vrot.slane %v2873, %v2880
        %v2883 = vunpack.c.l.s4 1983009808
        %v2884 = vunpack.c.0.s8 %v2883
        %v2885 = vlaneseq
        %v2886 = vshrl.u32 %v2885, 7
        %v2887 = vsub.s32 %v2884, %v2886
        %v2888 = vrot.slane %v2874, %v2887
        %v2889 = vcombine.low %v2854, %v2862
        %v2890 = vcombine.high %v2854, %v2862
        %v2892 = vunpack.c.l.s4 1983009808
        %v2893 = vunpack.c.0.s8 %v2892
        %v2894 = vlaneseq
        %v2895 = vshrl.u32 %v2894, 7
        %v2896 = vsub.s32 %v2893, %v2895
        %v2897 = vrot.slane %v2889, %v2896
        %v2899 = vunpack.c.l.s4 1983009808
        %v2900 = vunpack.c.0.s8 %v2899
        %v2901 = vlaneseq
        %v2902 = vshrl.u32 %v2901, 7
        %v2903 = vsub.s32 %v2900, %v2902
        %v2904 = vrot.slane %v2890, %v2903
        %v2905 = vcombine.low %v2881, %v2897
        %v2906 = vcombine.high %v2881, %v2897
        %v2908 = vunpack.c.l.s4 1934713408
        %v2909 = vunpack.c.0.s8 %v2908
        %v2910 = vlaneseq
        %v2911 = vshrl.u32 %v2910, 7
        %v2912 = vsub.s32 %v2909, %v2911
        %v2913 = vrot.slane %v2905, %v2912
        %v2915 = vunpack.c.l.s4 1934713408
        %v2916 = vunpack.c.0.s8 %v2915
        %v2917 = vlaneseq
        %v2918 = vshrl.u32 %v2917, 7
        %v2919 = vsub.s32 %v2916, %v2918
        %v2920 = vrot.slane %v2906, %v2919
        %v2921 = vcombine.low %v2888, %v2904
        %v2922 = vcombine.high %v2888, %v2904
        %v2924 = vunpack.c.l.s4 1934713408
        %v2925 = vunpack.c.0.s8 %v2924
        %v2926 = vlaneseq
        %v2927 = vshrl.u32 %v2926, 7
        %v2928 = vsub.s32 %v2925, %v2927
        %v2929 = vrot.slane %v2921, %v2928
        %v2931 = vunpack.c.l.s4 1934713408
        %v2932 = vunpack.c.0.s8 %v2931
        %v2933 = vlaneseq
        %v2934 = vshrl.u32 %v2933, 7
        %v2935 = vsub.s32 %v2932, %v2934
        %v2936 = vrot.slane %v2922, %v2935
        %v2937 = vcombine.high %v2913, 0.0
        %v2938 = vcombine.high %v2920, 0.0
        %v2939 = vcombine.high %v2929, 0.0
        %v2940 = vcombine.high %v2936, 0.0
        %v2941 = vcombine.low %v2852, %v2860
        %v2942 = vcombine.high %v2852, %v2860
        %v2944 = vunpack.c.l.s4 1983009808
        %v2945 = vunpack.c.0.s8 %v2944
        %v2946 = vlaneseq
        %v2947 = vshrl.u32 %v2946, 7
        %v2948 = vsub.s32 %v2945, %v2947
        %v2949 = vrot.slane %v2941, %v2948
        %v2951 = vunpack.c.l.s4 1983009808
        %v2952 = vunpack.c.0.s8 %v2951
        %v2953 = vlaneseq
        %v2954 = vshrl.u32 %v2953, 7
        %v2955 = vsub.s32 %v2952, %v2954
        %v2956 = vrot.slane %v2942, %v2955
        %v2957 = vcombine.low %v2856, %v2864
        %v2958 = vcombine.high %v2856, %v2864
        %v2960 = vunpack.c.l.s4 1983009808
        %v2961 = vunpack.c.0.s8 %v2960
        %v2962 = vlaneseq
        %v2963 = vshrl.u32 %v2962, 7
        %v2964 = vsub.s32 %v2961, %v2963
        %v2965 = vrot.slane %v2957, %v2964
        %v2967 = vunpack.c.l.s4 1983009808
        %v2968 = vunpack.c.0.s8 %v2967
        %v2969 = vlaneseq
        %v2970 = vshrl.u32 %v2969, 7
        %v2971 = vsub.s32 %v2968, %v2970
        %v2972 = vrot.slane %v2958, %v2971
        %v2973 = vcombine.low %v2949, %v2965
        %v2974 = vcombine.high %v2949, %v2965
        %v2976 = vunpack.c.l.s4 1934713408
        %v2977 = vunpack.c.0.s8 %v2976
        %v2978 = vlaneseq
        %v2979 = vshrl.u32 %v2978, 7
        %v2980 = vsub.s32 %v2977, %v2979
        %v2981 = vrot.slane %v2973, %v2980
        %v2983 = vunpack.c.l.s4 1934713408
        %v2984 = vunpack.c.0.s8 %v2983
        %v2985 = vlaneseq
        %v2986 = vshrl.u32 %v2985, 7
        %v2987 = vsub.s32 %v2984, %v2986
        %v2988 = vrot.slane %v2974, %v2987
        %v2989 = vcombine.low %v2956, %v2972
        %v2990 = vcombine.high %v2956, %v2972
        %v2992 = vunpack.c.l.s4 1934713408
        %v2993 = vunpack.c.0.s8 %v2992
        %v2994 = vlaneseq
        %v2995 = vshrl.u32 %v2994, 7
        %v2996 = vsub.s32 %v2993, %v2995
        %v2997 = vrot.slane %v2989, %v2996
        %v2999 = vunpack.c.l.s4 1934713408
        %v3000 = vunpack.c.0.s8 %v2999
        %v3001 = vlaneseq
        %v3002 = vshrl.u32 %v3001, 7
        %v3003 = vsub.s32 %v3000, %v3002
        %v3004 = vrot.slane %v2990, %v3003
        %v3005 = vcombine.high %v2981, 0.0
        %v3006 = vcombine.high %v2988, 0.0
        %v3007 = vcombine.high %v2997, 0.0
        %v3008 = vcombine.high %v3004, 0.0
        %3010 = vrot.lane.b32.xlu0 %v2937, 16
        %v3011 = vpop.permute.xlu0 %3010
        %3014 = vrot.lane.b32.xlu0 %v2920, 32
        %v3015 = vpop.permute.xlu0 %3014
        %3018 = vrot.lane.b32.xlu0 %v2938, 48
        %v3019 = vpop.permute.xlu0 %3018
        %3022 = vrot.lane.b32.xlu0 %v2929, 64
        %v3023 = vpop.permute.xlu0 %3022
        %3026 = vrot.lane.b32.xlu0 %v2939, 80
        %v3027 = vpop.permute.xlu0 %3026
        %3030 = vrot.lane.b32.xlu0 %v2936, 96
        %v3031 = vpop.permute.xlu0 %3030
        %3034 = vrot.lane.b32.xlu0 %v2940, 112
        %v3035 = vpop.permute.xlu0 %3034
        %3038 = vrot.lane.b32.xlu0 %v3005, 16
        %v3039 = vpop.permute.xlu0 %3038
        %3042 = vrot.lane.b32.xlu0 %v2988, 32
        %v3043 = vpop.permute.xlu0 %3042
        %3046 = vrot.lane.b32.xlu0 %v3006, 48
        %v3047 = vpop.permute.xlu0 %3046
        %3050 = vrot.lane.b32.xlu0 %v2997, 64
        %v3051 = vpop.permute.xlu0 %3050
        %3054 = vrot.lane.b32.xlu0 %v3007, 80
        %v3055 = vpop.permute.xlu0 %3054
        %3058 = vrot.lane.b32.xlu0 %v3004, 96
        %v3059 = vpop.permute.xlu0 %3058
        %3062 = vrot.lane.b32.xlu0 %v3008, 112
        %v3063 = vpop.permute.xlu0 %3062
        %v3065 = vsel %vm496, %v2913, %v3011
        %v3066 = vsel %vm498, %v3065, %v3015
        %v3067 = vsel %vm500, %v3066, %v3019
        %v3068 = vsel %vm502, %v3067, %v3023
        %v3069 = vsel %vm504, %v3068, %v3027
        %v3070 = vsel %vm506, %v3069, %v3031
        %v3071 = vsel %vm508, %v3070, %v3035
        %v3072 = vsel %vm496, %v2981, %v3039
        %v3073 = vsel %vm498, %v3072, %v3043
        %v3074 = vsel %vm500, %v3073, %v3047
        %v3075 = vsel %vm502, %v3074, %v3051
        %v3076 = vsel %vm504, %v3075, %v3055
        %v3077 = vsel %vm506, %v3076, %v3059
        %v3078 = vsel %vm508, %v3077, %v3063
        %v3080 = vsel %vm517, %v293, 0
        %v3083 = vsel %vm521, %v3071, 0
        %v3086 = vsel %vm521, %v3078, 0
        %3088 = vmatprep.subr.mxu0 %v3086
        %3089 = vmatpush1.msra.mxu0 %v3083
        %3090 = vmatprep.subr.mxu0 0.0
        %3091 = vmatpush1.msra.mxu0 0.0
        %3092 = vmatprep.subr.mxu0 0.0
        %3093 = vmatpush1.msra.mxu0 0.0
        %3094 = vmatprep.subr.mxu0 0.0
        %3095 = vmatpush1.msra.mxu0 0.0
        %3096 = vmatprep.subr.mxu0 0.0
        %3097 = vmatpush1.msra.mxu0 0.0
        %3098 = vmatprep.subr.mxu0 0.0
        %3099 = vmatpush1.msra.mxu0 0.0
        %3100 = vmatprep.subr.mxu0 0.0
        %3101 = vmatpush1.msra.mxu0 0.0
        %3102 = vmatprep.subr.mxu0 0.0
        %3103 = vmatpush1.msra.mxu0 0.0
        %3104 = vmatprep.subr.mxu0 0.0
        %3105 = vmatpush1.msra.mxu0 0.0
        %3106 = vmatprep.subr.mxu0 0.0
        %3107 = vmatpush1.msra.mxu0 0.0
        %3108 = vmatprep.subr.mxu0 0.0
        %3109 = vmatpush1.msra.mxu0 0.0
        %3110 = vmatprep.subr.mxu0 0.0
        %3111 = vmatpush1.msra.mxu0 0.0
        %3112 = vmatprep.subr.mxu0 0.0
        %3113 = vmatpush1.msra.mxu0 0.0
        %3114 = vmatprep.subr.mxu0 0.0
        %3115 = vmatpush1.msra.mxu0 0.0
        %3116 = vmatprep.subr.mxu0 0.0
        %3117 = vmatpush1.msra.mxu0 0.0
        %3118 = vmatprep.subr.mxu0 0.0
        %3119 = vmatpush1.msra.mxu0 0.0
        %3120 = vmatprep.subr.mxu0 0.0
        %3121 = vmatpush1.msra.mxu0 0.0
        %3122 = vmatprep.subr.mxu0 0.0
        %3123 = vmatpush1.msra.mxu0 0.0
        %3124 = vmatprep.subr.mxu0 0.0
        %3125 = vmatpush1.msra.mxu0 0.0
        %3126 = vmatprep.subr.mxu0 0.0
        %3127 = vmatpush1.msra.mxu0 0.0
        %3128 = vmatprep.subr.mxu0 0.0
        %3129 = vmatpush1.msra.mxu0 0.0
        %3130 = vmatprep.subr.mxu0 0.0
        %3131 = vmatpush1.msra.mxu0 0.0
        %3132 = vmatprep.subr.mxu0 0.0
        %3133 = vmatpush1.msra.mxu0 0.0
        %3134 = vmatprep.subr.mxu0 0.0
        %3135 = vmatpush1.msra.mxu0 0.0
        %3136 = vmatprep.subr.mxu0 0.0
        %3137 = vmatpush1.msra.mxu0 0.0
        %3138 = vmatprep.subr.mxu0 0.0
        %3139 = vmatpush1.msra.mxu0 0.0
        %3140 = vmatprep.subr.mxu0 0.0
        %3141 = vmatpush1.msra.mxu0 0.0
        %3142 = vmatprep.subr.mxu0 0.0
        %3143 = vmatpush1.msra.mxu0 0.0
        %3144 = vmatprep.subr.mxu0 0.0
        %3145 = vmatpush1.msra.mxu0 0.0
        %3146 = vmatprep.subr.mxu0 0.0
        %3147 = vmatpush1.msra.mxu0 0.0
        %3148 = vmatprep.subr.mxu0 0.0
        %3149 = vmatpush1.msra.mxu0 0.0
        %3150 = vmatprep.subr.mxu0 0.0
        %3151 = vmatpush1.msra.mxu0 0.0
        %3152 = vmatprep.mubr.f32.mxu0 0.0
        %3153 = vmatmul.mubr.f32.gmra.mrb[0].mxu0 %v3080
        %v3154 = vpop.f32.mrb[0].mxu0
        %v3155 = vadd.f32 0.0, %v3154
        %v3156 = vpop.f32.mrb[0].mxu0
        %v3157 = vadd.f32 0.0, %v3156
        %3158 = vdwg.mxu0
        %v3159 = vadd.f32 %v2831, %v3155
        %v3160 = vadd.f32 %v2832, %v3157
        %3161 = vst [vmem:[#allocation2] sm:$0xff] %v3159
        %3162 = vst [vmem:[#allocation2 + $0x8] sm:$0xff] %v3160
        %p3163 = scmp.eq.s32.totalorder %s24, 2
        // Predicated region
        $region75: #{tpu_custom_call.1} parent=65 // pred_check
          %p3164 = pneg %p3163
        $region76: #{tpu_custom_call.1} parent=65 // pred_check_branch
          %3166 = sbr.rel (%p3164) target = $region78
        $region77: #{tpu_custom_call.1} parent=65 // pred_region
          %v3167 = vld [vmem:[#allocation2] sm:$0xff]
          %v3168 = vld [vmem:[#allocation2 + $0x8] sm:$0xff]
          %v3169 = vld [vmem:[%s2] sm:$0xff]
          %3171 = vset.pattern.permute.xlu0 0
          %3172 = vperm.xlu0 %3171, %v3169
          %v3173 = vpop.permute.xlu0 %3172
          %v3175 = vadd.f32 %v3167, %v3173
          %v3176 = vadd.f32 %v3168, %v3173
          %3178 = vrot.lane.b32.xlu0 %v3175, 112
          %v3179 = vpop.permute.xlu0 %3178
          %3181 = vrot.lane.b32.xlu0 %v3175, 96
          %v3182 = vpop.permute.xlu0 %3181
          %3184 = vrot.lane.b32.xlu0 %v3175, 80
          %v3185 = vpop.permute.xlu0 %3184
          %3187 = vrot.lane.b32.xlu0 %v3175, 64
          %v3188 = vpop.permute.xlu0 %3187
          %3190 = vrot.lane.b32.xlu0 %v3175, 48
          %v3191 = vpop.permute.xlu0 %3190
          %3193 = vrot.lane.b32.xlu0 %v3175, 32
          %v3194 = vpop.permute.xlu0 %3193
          %3196 = vrot.lane.b32.xlu0 %v3175, 16
          %v3197 = vpop.permute.xlu0 %3196
          %3200 = vrot.lane.b32.xlu0 %v3176, 112
          %v3201 = vpop.permute.xlu0 %3200
          %3203 = vrot.lane.b32.xlu0 %v3176, 96
          %v3204 = vpop.permute.xlu0 %3203
          %3206 = vrot.lane.b32.xlu0 %v3176, 80
          %v3207 = vpop.permute.xlu0 %3206
          %3209 = vrot.lane.b32.xlu0 %v3176, 64
          %v3210 = vpop.permute.xlu0 %3209
          %3212 = vrot.lane.b32.xlu0 %v3176, 48
          %v3213 = vpop.permute.xlu0 %3212
          %3215 = vrot.lane.b32.xlu0 %v3176, 32
          %v3216 = vpop.permute.xlu0 %3215
          %3218 = vrot.lane.b32.xlu0 %v3176, 16
          %v3219 = vpop.permute.xlu0 %3218
          %v3221 = vcombine.low %v3175, %v3182
          %v3222 = vcombine.high %v3175, %v3182
          %v3224 = vunpack.c.l.s4 1983009808
          %v3225 = vunpack.c.0.s8 %v3224
          %v3226 = vlaneseq
          %v3227 = vshrl.u32 %v3226, 7
          %v3228 = vsub.s32 %v3225, %v3227
          %v3229 = vrot.slane %v3221, %v3228
          %v3231 = vunpack.c.l.s4 1983009808
          %v3232 = vunpack.c.0.s8 %v3231
          %v3233 = vlaneseq
          %v3234 = vshrl.u32 %v3233, 7
          %v3235 = vsub.s32 %v3232, %v3234
          %v3236 = vrot.slane %v3222, %v3235
          %v3237 = vcombine.low %v3179, %v3185
          %v3238 = vcombine.high %v3179, %v3185
          %v3240 = vunpack.c.l.s4 1983009808
          %v3241 = vunpack.c.0.s8 %v3240
          %v3242 = vlaneseq
          %v3243 = vshrl.u32 %v3242, 7
          %v3244 = vsub.s32 %v3241, %v3243
          %v3245 = vrot.slane %v3237, %v3244
          %v3247 = vunpack.c.l.s4 1983009808
          %v3248 = vunpack.c.0.s8 %v3247
          %v3249 = vlaneseq
          %v3250 = vshrl.u32 %v3249, 7
          %v3251 = vsub.s32 %v3248, %v3250
          %v3252 = vrot.slane %v3238, %v3251
          %v3253 = vcombine.low %v3188, %v3194
          %v3254 = vcombine.high %v3188, %v3194
          %v3256 = vunpack.c.l.s4 1983009808
          %v3257 = vunpack.c.0.s8 %v3256
          %v3258 = vlaneseq
          %v3259 = vshrl.u32 %v3258, 7
          %v3260 = vsub.s32 %v3257, %v3259
          %v3261 = vrot.slane %v3253, %v3260
          %v3263 = vunpack.c.l.s4 1983009808
          %v3264 = vunpack.c.0.s8 %v3263
          %v3265 = vlaneseq
          %v3266 = vshrl.u32 %v3265, 7
          %v3267 = vsub.s32 %v3264, %v3266
          %v3268 = vrot.slane %v3254, %v3267
          %v3269 = vcombine.low %v3191, %v3197
          %v3270 = vcombine.high %v3191, %v3197
          %v3272 = vunpack.c.l.s4 1983009808
          %v3273 = vunpack.c.0.s8 %v3272
          %v3274 = vlaneseq
          %v3275 = vshrl.u32 %v3274, 7
          %v3276 = vsub.s32 %v3273, %v3275
          %v3277 = vrot.slane %v3269, %v3276
          %v3279 = vunpack.c.l.s4 1983009808
          %v3280 = vunpack.c.0.s8 %v3279
          %v3281 = vlaneseq
          %v3282 = vshrl.u32 %v3281, 7
          %v3283 = vsub.s32 %v3280, %v3282
          %v3284 = vrot.slane %v3270, %v3283
          %v3285 = vcombine.low %v3229, %v3245
          %v3286 = vcombine.high %v3229, %v3245
          %v3288 = vunpack.c.l.s4 1934713408
          %v3289 = vunpack.c.0.s8 %v3288
          %v3290 = vlaneseq
          %v3291 = vshrl.u32 %v3290, 7
          %v3292 = vsub.s32 %v3289, %v3291
          %v3293 = vrot.slane %v3285, %v3292
          %v3295 = vunpack.c.l.s4 1934713408
          %v3296 = vunpack.c.0.s8 %v3295
          %v3297 = vlaneseq
          %v3298 = vshrl.u32 %v3297, 7
          %v3299 = vsub.s32 %v3296, %v3298
          %v3300 = vrot.slane %v3286, %v3299
          %v3301 = vcombine.low %v3236, %v3252
          %v3302 = vcombine.high %v3236, %v3252
          %v3304 = vunpack.c.l.s4 1934713408
          %v3305 = vunpack.c.0.s8 %v3304
          %v3306 = vlaneseq
          %v3307 = vshrl.u32 %v3306, 7
          %v3308 = vsub.s32 %v3305, %v3307
          %v3309 = vrot.slane %v3301, %v3308
          %v3311 = vunpack.c.l.s4 1934713408
          %v3312 = vunpack.c.0.s8 %v3311
          %v3313 = vlaneseq
          %v3314 = vshrl.u32 %v3313, 7
          %v3315 = vsub.s32 %v3312, %v3314
          %v3316 = vrot.slane %v3302, %v3315
          %v3317 = vcombine.low %v3261, %v3277
          %v3318 = vcombine.high %v3261, %v3277
          %v3320 = vunpack.c.l.s4 1934713408
          %v3321 = vunpack.c.0.s8 %v3320
          %v3322 = vlaneseq
          %v3323 = vshrl.u32 %v3322, 7
          %v3324 = vsub.s32 %v3321, %v3323
          %v3325 = vrot.slane %v3317, %v3324
          %v3327 = vunpack.c.l.s4 1934713408
          %v3328 = vunpack.c.0.s8 %v3327
          %v3329 = vlaneseq
          %v3330 = vshrl.u32 %v3329, 7
          %v3331 = vsub.s32 %v3328, %v3330
          %v3332 = vrot.slane %v3318, %v3331
          %v3333 = vcombine.low %v3268, %v3284
          %v3334 = vcombine.high %v3268, %v3284
          %v3336 = vunpack.c.l.s4 1934713408
          %v3337 = vunpack.c.0.s8 %v3336
          %v3338 = vlaneseq
          %v3339 = vshrl.u32 %v3338, 7
          %v3340 = vsub.s32 %v3337, %v3339
          %v3341 = vrot.slane %v3333, %v3340
          %v3343 = vunpack.c.l.s4 1934713408
          %v3344 = vunpack.c.0.s8 %v3343
          %v3345 = vlaneseq
          %v3346 = vshrl.u32 %v3345, 7
          %v3347 = vsub.s32 %v3344, %v3346
          %v3348 = vrot.slane %v3334, %v3347
          %v3349 = vcombine.low %v3293, %v3325
          %v3350 = vcombine.high %v3293, %v3325
          %v3351 = vcombine.low %v3300, %v3332
          %v3352 = vcombine.high %v3300, %v3332
          %v3353 = vcombine.low %v3309, %v3341
          %v3354 = vcombine.high %v3309, %v3341
          %v3355 = vcombine.low %v3316, %v3348
          %v3356 = vcombine.high %v3316, %v3348
          %v3357 = vcombine.low %v3176, %v3204
          %v3358 = vcombine.high %v3176, %v3204
          %v3360 = vunpack.c.l.s4 1983009808
          %v3361 = vunpack.c.0.s8 %v3360
          %v3362 = vlaneseq
          %v3363 = vshrl.u32 %v3362, 7
          %v3364 = vsub.s32 %v3361, %v3363
          %v3365 = vrot.slane %v3357, %v3364
          %v3367 = vunpack.c.l.s4 1983009808
          %v3368 = vunpack.c.0.s8 %v3367
          %v3369 = vlaneseq
          %v3370 = vshrl.u32 %v3369, 7
          %v3371 = vsub.s32 %v3368, %v3370
          %v3372 = vrot.slane %v3358, %v3371
          %v3373 = vcombine.low %v3201, %v3207
          %v3374 = vcombine.high %v3201, %v3207
          %v3376 = vunpack.c.l.s4 1983009808
          %v3377 = vunpack.c.0.s8 %v3376
          %v3378 = vlaneseq
          %v3379 = vshrl.u32 %v3378, 7
          %v3380 = vsub.s32 %v3377, %v3379
          %v3381 = vrot.slane %v3373, %v3380
          %v3383 = vunpack.c.l.s4 1983009808
          %v3384 = vunpack.c.0.s8 %v3383
          %v3385 = vlaneseq
          %v3386 = vshrl.u32 %v3385, 7
          %v3387 = vsub.s32 %v3384, %v3386
          %v3388 = vrot.slane %v3374, %v3387
          %v3389 = vcombine.low %v3210, %v3216
          %v3390 = vcombine.high %v3210, %v3216
          %v3392 = vunpack.c.l.s4 1983009808
          %v3393 = vunpack.c.0.s8 %v3392
          %v3394 = vlaneseq
          %v3395 = vshrl.u32 %v3394, 7
          %v3396 = vsub.s32 %v3393, %v3395
          %v3397 = vrot.slane %v3389, %v3396
          %v3399 = vunpack.c.l.s4 1983009808
          %v3400 = vunpack.c.0.s8 %v3399
          %v3401 = vlaneseq
          %v3402 = vshrl.u32 %v3401, 7
          %v3403 = vsub.s32 %v3400, %v3402
          %v3404 = vrot.slane %v3390, %v3403
          %v3405 = vcombine.low %v3213, %v3219
          %v3406 = vcombine.high %v3213, %v3219
          %v3408 = vunpack.c.l.s4 1983009808
          %v3409 = vunpack.c.0.s8 %v3408
          %v3410 = vlaneseq
          %v3411 = vshrl.u32 %v3410, 7
          %v3412 = vsub.s32 %v3409, %v3411
          %v3413 = vrot.slane %v3405, %v3412
          %v3415 = vunpack.c.l.s4 1983009808
          %v3416 = vunpack.c.0.s8 %v3415
          %v3417 = vlaneseq
          %v3418 = vshrl.u32 %v3417, 7
          %v3419 = vsub.s32 %v3416, %v3418
          %v3420 = vrot.slane %v3406, %v3419
          %v3421 = vcombine.low %v3365, %v3381
          %v3422 = vcombine.high %v3365, %v3381
          %v3424 = vunpack.c.l.s4 1934713408
          %v3425 = vunpack.c.0.s8 %v3424
          %v3426 = vlaneseq
          %v3427 = vshrl.u32 %v3426, 7
          %v3428 = vsub.s32 %v3425, %v3427
          %v3429 = vrot.slane %v3421, %v3428
          %v3431 = vunpack.c.l.s4 1934713408
          %v3432 = vunpack.c.0.s8 %v3431
          %v3433 = vlaneseq
          %v3434 = vshrl.u32 %v3433, 7
          %v3435 = vsub.s32 %v3432, %v3434
          %v3436 = vrot.slane %v3422, %v3435
          %v3437 = vcombine.low %v3372, %v3388
          %v3438 = vcombine.high %v3372, %v3388
          %v3440 = vunpack.c.l.s4 1934713408
          %v3441 = vunpack.c.0.s8 %v3440
          %v3442 = vlaneseq
          %v3443 = vshrl.u32 %v3442, 7
          %v3444 = vsub.s32 %v3441, %v3443
          %v3445 = vrot.slane %v3437, %v3444
          %v3447 = vunpack.c.l.s4 1934713408
          %v3448 = vunpack.c.0.s8 %v3447
          %v3449 = vlaneseq
          %v3450 = vshrl.u32 %v3449, 7
          %v3451 = vsub.s32 %v3448, %v3450
          %v3452 = vrot.slane %v3438, %v3451
          %v3453 = vcombine.low %v3397, %v3413
          %v3454 = vcombine.high %v3397, %v3413
          %v3456 = vunpack.c.l.s4 1934713408
          %v3457 = vunpack.c.0.s8 %v3456
          %v3458 = vlaneseq
          %v3459 = vshrl.u32 %v3458, 7
          %v3460 = vsub.s32 %v3457, %v3459
          %v3461 = vrot.slane %v3453, %v3460
          %v3463 = vunpack.c.l.s4 1934713408
          %v3464 = vunpack.c.0.s8 %v3463
          %v3465 = vlaneseq
          %v3466 = vshrl.u32 %v3465, 7
          %v3467 = vsub.s32 %v3464, %v3466
          %v3468 = vrot.slane %v3454, %v3467
          %v3469 = vcombine.low %v3404, %v3420
          %v3470 = vcombine.high %v3404, %v3420
          %v3472 = vunpack.c.l.s4 1934713408
          %v3473 = vunpack.c.0.s8 %v3472
          %v3474 = vlaneseq
          %v3475 = vshrl.u32 %v3474, 7
          %v3476 = vsub.s32 %v3473, %v3475
          %v3477 = vrot.slane %v3469, %v3476
          %v3479 = vunpack.c.l.s4 1934713408
          %v3480 = vunpack.c.0.s8 %v3479
          %v3481 = vlaneseq
          %v3482 = vshrl.u32 %v3481, 7
          %v3483 = vsub.s32 %v3480, %v3482
          %v3484 = vrot.slane %v3470, %v3483
          %v3485 = vcombine.low %v3429, %v3461
          %v3486 = vcombine.high %v3429, %v3461
          %v3487 = vcombine.low %v3436, %v3468
          %v3488 = vcombine.high %v3436, %v3468
          %v3489 = vcombine.low %v3445, %v3477
          %v3490 = vcombine.high %v3445, %v3477
          %v3491 = vcombine.low %v3452, %v3484
          %v3492 = vcombine.high %v3452, %v3484
          %3493 = vst.msk [vmem:[%s275] sm:$0xff] %vm496, %v3349
          %3494 = vst.msk [vmem:[%s275 + $0x8] sm:$0xff] %vm496, %v3485
          %3495 = vst.msk [vmem:[%s275 + $0x10] sm:$0xff] %vm496, %v3350
          %3496 = vst.msk [vmem:[%s275 + $0x18] sm:$0xff] %vm496, %v3486
          %3497 = vst.msk [vmem:[%s275 + $0x20] sm:$0xff] %vm496, %v3351
          %3498 = vst.msk [vmem:[%s275 + $0x28] sm:$0xff] %vm496, %v3487
          %3499 = vst.msk [vmem:[%s275 + $0x30] sm:$0xff] %vm496, %v3352
          %3500 = vst.msk [vmem:[%s275 + $0x38] sm:$0xff] %vm496, %v3488
          %3501 = vst.msk [vmem:[%s275 + $0x40] sm:$0xff] %vm496, %v3353
          %3502 = vst.msk [vmem:[%s275 + $0x48] sm:$0xff] %vm496, %v3489
          %3503 = vst.msk [vmem:[%s275 + $0x50] sm:$0xff] %vm496, %v3354
          %3504 = vst.msk [vmem:[%s275 + $0x58] sm:$0xff] %vm496, %v3490
          %3505 = vst.msk [vmem:[%s275 + $0x60] sm:$0xff] %vm496, %v3355
          %3506 = vst.msk [vmem:[%s275 + $0x68] sm:$0xff] %vm496, %v3491
          %3507 = vst.msk [vmem:[%s275 + $0x70] sm:$0xff] %vm496, %v3356
          %3508 = vst.msk [vmem:[%s275 + $0x78] sm:$0xff] %vm496, %v3492
        $region78: #{tpu_custom_call.1} parent=65 // pred_fallthru
          _
        %s3509 = sand.u32 %s118, 1
        %s3510 = scalar_lea.sflag [#allocation5], %s3509
        %s3511 = sand.u32 %s118, 1
        %s3512 = smul.addr %s3511, 128
        %s3513 = scalar_lea.vmem [#allocation4], %s3512
        // Predicated region
        $region79: #{tpu_custom_call.1} parent=65 // pred_check
          %p3514 = pneg %p128
        $region80: #{tpu_custom_call.1} parent=65 // pred_check_branch
          %3516 = sbr.rel (%p3514) target = $region82
        $region81: #{tpu_custom_call.1} parent=65 // pred_region
          #allocation7 [shape = 'u32[6]{0}', space=smem, size = 0x18, scoped, tag = 'DMA stride descriptor']
          %s3518 = ssub.s32 2048, 2048
          %3519 = vsyncadd %s3510, %s3518
          %s3520 = smul.addr %s23, 2
          %s3521 = smul.addr %s22, 128
          %s3522 = sadd.s32 %s3520, %s3521
          %s3523 = smul.addr %s3522, 128
          %s3524 = scalar_lea.hbm %s3, %s3523
          %s3526 = sshll.u32 1, 14
          %s3527 = sxor.u32 4294967295, %s3526
          %s3530 = sshll.u32 7, 18
          %s3531 = sxor.u32 4294967295, %s3530
          %s3532 = sand.u32 0, %s3531
          %s3534 = sor.u32 %s3532, 0
          %s3536 = sshll.u32 3, 24
          %s3537 = sxor.u32 4294967295, %s3536
          %s3538 = sand.u32 %s3534, %s3537
          %s3540 = sor.u32 %s3538, 0
          %s3541 = sshll.u32 %s3513, 4
          %s3542 = int_to_ptr.vmem [resolvable:$true] %s3541
          %3548 = sst [smem:[#allocation7]] 256
          %s3549 = scalar_lea.smem [#allocation7], 1
          %3550 = sst [smem:[%s3549]] 2048
          %s3551 = scalar_lea.smem [#allocation7], 2
          %3552 = sst [smem:[%s3551]] 2
          %s3553 = scalar_lea.smem [#allocation7], 3
          %3554 = sst [smem:[%s3553]] 128
          %s3555 = scalar_lea.smem [#allocation7], 4
          %3556 = sst [smem:[%s3555]] 128
          %s3557 = scalar_lea.smem [#allocation7], 5
          %3558 = sst [smem:[%s3557]] 8
          %3560 = dma.general %s3542, 2048, %s3524, %s3510, [#allocation6], [#allocation7], %s3540, 0
        $region82: #{tpu_custom_call.1} parent=65 // pred_fallthru
          _
      $region66: #{tpu_custom_call.1} parent=5 // pred_fallthru
        _
      %p3561 = scmp.le.s32.totalorder 2, %s12
      // Predicated region
      $region83: #{tpu_custom_call.1} parent=5 // pred_check
        %p3562 = pneg %p3561
      $region84: #{tpu_custom_call.1} parent=5 // pred_check_branch
        %3564 = sbr.rel (%p3562) target = $region86
      $region85: #{tpu_custom_call.1} parent=5 // pred_region
        %s3565 = ssub.s32 %s12, 2
        // Predicated region
        $region87: #{tpu_custom_call.1} parent=85 // pred_check
          %p3566 = pneg %p134
        $region88: #{tpu_custom_call.1} parent=85 // pred_check_branch
          %3568 = sbr.rel (%p3566) target = $region90
        $region89: #{tpu_custom_call.1} parent=85 // pred_region
          %s3569 = sand.u32 %s119, 1
          %s3570 = scalar_lea.sflag [#allocation5], %s3569
          %s3571 = sand.u32 %s119, 1
          %s3572 = smul.addr %s3571, 128
          %s3573 = scalar_lea.vmem [#allocation4], %s3572
          %3574 = dma.done %s3570, 2048
        $region90: #{tpu_custom_call.1} parent=85 // pred_fallthru
          _
      $region86: #{tpu_custom_call.1} parent=5 // pred_fallthru
        _
    $region6: #{tpu_custom_call.1} parent=1 // loop_footer
      %s16 = sadd.s32 1, %s12
    $region7: #{tpu_custom_call.1} parent=1 // loop_footer_branch
      %11 = sbr.rel target = $region3
    $region8: #{tpu_custom_call.1} parent=1 // loop_exit
      _
    %3575 = vsyncpa [#allocation5], 1
    %s3576 = scalar_lea.sflag [#allocation5], 1
    %3577 = vsyncpa %s3576, 1

</llo_original>
